<compile_context>
chip_gen: v6e
topology: v6e:2x2x1
jax: 0.10.0
libtpu: 0.0.40
codegen_flags: <defaults>
</compile_context>

<pallas_src>
import jax
import jax.numpy as jnp
from jax import lax
from jax.experimental import pallas as pl
from jax.experimental.pallas import tpu as pltpu


def _round_up(x, m):
    return (x + m - 1) // m * m


def conv_bn2d(x, conv_w, conv_b, gamma, beta, running_mean, running_var,
              *, padding, eps=1e-5, tile_rows=512, compute_dtype=None):
    """Fused Conv2d(kernel K, stride 1, padding P) + BatchNorm2d (eval mode).

    x:       (B, C_in, H, W)   NCHW, f32 or bf16
    conv_w:  (C_out, C_in, K, K)
    conv_b, gamma, beta, running_mean, running_var: (C_out,)
    returns: (B, C_out, H_out, W_out) NCHW, dtype of x
    """
    B, C_in, H, W = x.shape
    C_out, C_in_w, K, K2 = conv_w.shape
    assert C_in_w == C_in and K == K2
    assert K <= 9, "tap-offset padding below assumes K <= 9"
    P = padding
    H_out = H + 2 * P - K + 1
    W_out = W + 2 * P - K + 1
    assert H_out >= 1 and W_out >= 1

    out_dtype = x.dtype
    cdt = jnp.dtype(compute_dtype) if compute_dtype is not None else jnp.dtype(x.dtype)
    cdt_sz = cdt.itemsize
    out_sz = jnp.dtype(out_dtype).itemsize

    # ---- lane-dense channel padding -----------------------------------------
    C_in_pad = _round_up(C_in, 128)
    C_out_pad = _round_up(C_out, 128)

    # ---- geometry: width padded to a sublane multiple ------------------------
    Wp = _round_up(W + 2 * P, 8)           # padded row width (flat layout pitch)
    KK = K * K
    pad_extra = _round_up(K - 1, 8) if K > 1 else 0   # roll / kw-offset slack rows

    # ---- output-row tile selection (TH image rows per grid step) -------------
    TH = max(1, min(H_out, max(1, tile_rows // Wp)))

    def _vmem_bytes(th):
        l_tile = th * Wp
        x_rows = (th + K - 1) * Wp + pad_extra
        return (2 * x_rows * C_in_pad * cdt_sz        # x double buffer
                + 2 * x_rows * C_in_pad * 4           # rolled-copy temporaries
                + KK * C_in_pad * C_out_pad * cdt_sz  # packed weights
                + 2 * l_tile * C_out_pad * out_sz     # output double buffer
                + l_tile * C_out_pad * 4              # f32 accumulator
                + 4 * C_out_pad * 4)                  # scale / bias rows

    try:
        vmem_cap = int(pltpu.get_tpu_info().vmem_capacity_bytes)
    except Exception:                                  # noqa: BLE001
        vmem_cap = 64 * 1024 * 1024                    # v7x-conservative fallback
    vmem_cap_usable = max(8 << 20, vmem_cap - (16 << 20))
    while TH > 1 and 2 * _vmem_bytes(TH) + (8 << 20) > vmem_cap_usable:
        TH = max(1, TH // 2)

    NT = (H_out + TH - 1) // TH
    L_TILE = TH * Wp                        # flat output rows per grid step
    H_out_pad = NT * TH
    Hp_pad = H_out_pad + K - 1              # padded input image height
    X_ROWS = (TH + K - 1) * Wp + pad_extra  # haloed x rows DMA'd per step
    n_rows = Hp_pad * Wp + pad_extra        # flat padded x rows per batch

    # ---- x layout: NHWC, spatial pad, flatten, fold batch into rows ----------
    x_nhwc = jnp.transpose(x, (0, 2, 3, 1)).astype(cdt)          # (B,H,W,Cin)
    x_pad = jnp.pad(x_nhwc, ((0, 0),
                             (P, Hp_pad - H - P),
                             (P, Wp - W - P),
                             (0, C_in_pad - C_in)))
    x_flat = x_pad.reshape(B, Hp_pad * Wp, C_in_pad)
    if pad_extra:
        x_flat = jnp.pad(x_flat, ((0, 0), (0, pad_extra), (0, 0)))
    x_flat = x_flat.reshape(B * n_rows, C_in_pad)                # (B*n_rows, Cin_p)

    # ---- weights packed as (K*K, C_in_pad, C_out_pad); BN applied in f32 -----
    w_pack = jnp.transpose(conv_w, (2, 3, 1, 0)).reshape(KK, C_in, C_out)
    w_pack = jnp.pad(w_pack, ((0, 0), (0, C_in_pad - C_in), (0, C_out_pad - C_out)))
    w_pack = w_pack.astype(cdt)

    scale = (gamma / jnp.sqrt(running_var + eps)).astype(jnp.float32)   # (C_out,)
    b_eff = ((conv_b - running_mean) * scale + beta).astype(jnp.float32)
    s_row = jnp.pad(scale, (0, C_out_pad - C_out)).reshape(1, C_out_pad)
    b_row = jnp.pad(b_eff, (0, C_out_pad - C_out)).reshape(1, C_out_pad)

    use_sublane_roll = (cdt_sz == 4)        # roll path only for 32-bit tiles

    def kernel(x_hbm, w_ref, s_ref, b_ref, o_ref, xbuf, sem, acc_ref):
        b = pl.program_id(0)
        t = pl.program_id(1)
        nt = pl.num_programs(1)
        slot = t % 2

        def start_fetch(tile_idx, sl):
            base = b * n_rows + tile_idx * L_TILE
            pltpu.make_async_copy(x_hbm.at[pl.ds(base, X_ROWS)],
                                  xbuf.at[sl], sem.at[sl]).start()

        @pl.when(t == 0)                    # prime this batch's first tile
        def _():
            start_fetch(t, slot)

        @pl.when(t + 1 < nt)                # prefetch next tile of same batch
        def _():
            start_fetch(t + 1, 1 - slot)

        # wait for the tile we compute on (started at prime or previous step)
        pltpu.make_async_copy(x_hbm.at[pl.ds(0, X_ROWS)],
                              xbuf.at[slot], sem.at[slot]).wait()

        xv = xbuf[slot]                     # (X_ROWS, C_in_pad), read once
        for kw in range(K):
            if kw == 0 or not use_sublane_roll:
                xk, col_off = xv, kw
            else:
                # hoist the kw offset into one XLU roll so every LHS slice
                # below starts on a sublane (8-row) boundary
                xk, col_off = pltpu.roll(xv, X_ROWS - kw, axis=0), 0
            for kh in range(K):
                start = kh * Wp + col_off
                xs = xk[start:start + L_TILE, :]
                contrib = jnp.dot(xs, w_ref[kh * K + kw],
                                  preferred_element_type=jnp.float32)
                if kh == 0 and kw == 0:
                    acc_ref[...] = contrib
                else:
                    acc_ref[...] += contrib
        # fused eval-mode BN epilogue on the f32 accumulator (single pass)
        o_ref[...] = (acc_ref[...] * s_ref[...] + b_ref[...]).astype(o_ref.dtype)

    vmem_need = 2 * _vmem_bytes(TH) + (8 << 20)
    vmem_limit = int(min(vmem_cap_usable, max(vmem_need, 16 << 20)))

    cost = pl.CostEstimate(
        flops=int(2 * B * NT * KK * L_TILE * C_in_pad * C_out_pad),
        transcendentals=0,
        bytes_accessed=int(B * NT * X_ROWS * C_in_pad * cdt_sz
                           + B * NT * L_TILE * C_out_pad * out_sz
                           + KK * C_in_pad * C_out_pad * cdt_sz
                           + 2 * C_out_pad * 4))

    out_flat = pl.pallas_call(
        kernel,
        out_shape=jax.ShapeDtypeStruct((B, NT * L_TILE, C_out_pad), out_dtype),
        grid_spec=pltpu.PrefetchScalarGridSpec(
            num_scalar_prefetch=0,
            grid=(B, NT),
            in_specs=[
                pl.BlockSpec(memory_space=pl.ANY),                 # x stays in HBM
                pl.BlockSpec((KK, C_in_pad, C_out_pad), lambda b, t: (0, 0, 0)),
                pl.BlockSpec((1, C_out_pad), lambda b, t: (0, 0)),
                pl.BlockSpec((1, C_out_pad), lambda b, t: (0, 0)),
            ],
            out_specs=pl.BlockSpec((pl.Squeezed(), L_TILE, C_out_pad),
                                   lambda b, t: (b, t, 0)),
            scratch_shapes=[
                pltpu.VMEM((2, X_ROWS, C_in_pad), cdt),            # x double buffer
                pltpu.SemaphoreType.DMA((2,)),
                pltpu.VMEM((L_TILE, C_out_pad), jnp.float32),      # f32 accumulator
            ],
        ),
        compiler_params=pltpu.CompilerParams(
            dimension_semantics=("parallel", "arbitrary"),
            vmem_limit_bytes=vmem_limit),
        cost_estimate=cost,
    )(x_flat, w_pack, s_row, b_row)

    # strip row/column/channel padding, back to NCHW
    out = out_flat.reshape(B, H_out_pad, Wp, C_out_pad)[:, :H_out, :W_out, :C_out]
    return jnp.transpose(out, (0, 3, 1, 2))


def conv_bn2d_ref(x, conv_w, conv_b, gamma, beta, mean, var, *, padding,
                  eps=1e-5):
    """Pure-JAX f32 reference matching the PyTorch forward (eval-mode BN)."""
    y = lax.conv_general_dilated(
        x.astype(jnp.float32), conv_w.astype(jnp.float32),
        window_strides=(1, 1),
        padding=((padding, padding), (padding, padding)),
        dimension_numbers=('NCHW', 'OIHW', 'NCHW'))
    y = y + conv_b[None, :, None, None]
    scale = gamma / jnp.sqrt(var + eps)
    return ((y - mean[None, :, None, None]) * scale[None, :, None, None]
            + beta[None, :, None, None])


if __name__ == "__main__":
    key = jax.random.PRNGKey(0)
    ks = jax.random.split(key, 8)

    # ---- case 1: small f32 shapes; tile_rows=256 forces NT=2 row tiles -------
    B, C_in, C_out, H, W, K, P = 2, 8, 16, 16, 16, 3, 1
    x = jax.random.normal(ks[0], (B, C_in, H, W), dtype=jnp.float32)
    conv_w = jax.random.normal(ks[1], (C_out, C_in, K, K), dtype=jnp.float32) * 0.1
    conv_b = jax.random.normal(ks[2], (C_out,), dtype=jnp.float32) * 0.1
    gamma = 1.0 + 0.1 * jax.random.normal(ks[3], (C_out,), dtype=jnp.float32)
    beta = 0.1 * jax.random.normal(ks[4], (C_out,), dtype=jnp.float32)
    r_mean = 0.1 * jax.random.normal(ks[5], (C_out,), dtype=jnp.float32)
    r_var = 0.5 + jax.random.uniform(ks[6], (C_out,), dtype=jnp.float32)

    out = conv_bn2d(x, conv_w, conv_b, gamma, beta, r_mean, r_var,
                    padding=P, tile_rows=256)
    out = jax.block_until_ready(out)
    ref = conv_bn2d_ref(x, conv_w, conv_b, gamma, beta, r_mean, r_var, padding=P)
    assert out.shape == (B, C_out, H, W), out.shape
    assert jnp.allclose(out, ref, atol=1e-4, rtol=1e-4), "f32 mismatch vs reference"

    # ---- case 2: bf16, lane-dense 128 channels, single row tile --------------
    B2, C2, H2, W2 = 1, 128, 16, 16
    ks2 = jax.random.split(ks[7], 7)
    x2 = jax.random.normal(ks2[0], (B2, C2, H2, W2), jnp.float32).astype(jnp.bfloat16)
    w2 = (jax.random.normal(ks2[1], (C2, C2, K, K), jnp.float32) * 0.05
          ).astype(jnp.bfloat16)
    b2 = 0.1 * jax.random.normal(ks2[2], (C2,), jnp.float32)
    g2 = 1.0 + 0.1 * jax.random.normal(ks2[3], (C2,), jnp.float32)
    be2 = 0.1 * jax.random.normal(ks2[4], (C2,), jnp.float32)
    m2 = 0.1 * jax.random.normal(ks2[5], (C2,), jnp.float32)
    v2 = 0.5 + jax.random.uniform(ks2[6], (C2,), jnp.float32)

    out2 = conv_bn2d(x2, w2, b2, g2, be2, m2, v2, padding=P)
    out2 = jax.block_until_ready(out2)
    ref2 = conv_bn2d_ref(x2, w2, b2, g2, be2, m2, v2, padding=P)
    assert out2.shape == (B2, C2, H2, W2), out2.shape
    assert jnp.allclose(out2.astype(jnp.float32), ref2, atol=5e-2, rtol=5e-2), \
        "bf16 mismatch vs reference"

    print("KERNEL_OK")
</pallas_src>

<mosaic_0001>
module attributes {stable_mosaic.version = 11 : i64} {
  func.func @kernel(%arg0: i32, %arg1: i32, %arg2: memref<1072x128xf32, #tpu.memory_space<any>>, %arg3: memref<9x128x128xf32, #tpu.memory_space<vmem>>, %arg4: memref<1x128xf32, #tpu.memory_space<vmem>>, %arg5: memref<1x128xf32, #tpu.memory_space<vmem>>, %arg6: memref<1x240x128xf32, #tpu.memory_space<vmem>>, %arg7: memref<2x296x128xf32, #tpu.memory_space<vmem>>, %arg8: memref<2x!tpu.dma_semaphore, #tpu.memory_space<semaphore_mem>>, %arg9: memref<240x128xf32, #tpu.memory_space<vmem>>) attributes {dimension_semantics = [#tpu.dimension_semantics<parallel>, #tpu.dimension_semantics<arbitrary>], iteration_bounds = array<i64: 2, 2>, scalar_prefetch = 0 : i64, scratch_operands = 3 : i64, tpu.core_type = #tpu.core_type<tc>, window_params = [{}, {pipeline_mode = #tpu.pipeline_mode<synchronous>, transform_indices = @transform_1, window_bounds = array<i64: 9, 128, 128>}, {pipeline_mode = #tpu.pipeline_mode<synchronous>, transform_indices = @transform_2, window_bounds = array<i64: 1, 128>}, {pipeline_mode = #tpu.pipeline_mode<synchronous>, transform_indices = @transform_3, window_bounds = array<i64: 1, 128>}, {transform_indices = @transform_4, window_bounds = array<i64: 1, 240, 128>}]} {
    %c2_i32 = arith.constant 2 : i32
    %c0_i32 = arith.constant 0 : i32
    %0 = arith.cmpi eq, %c2_i32, %c0_i32 : i32
    %c1_i32 = arith.constant 1 : i32
    %1 = arith.select %0, %c1_i32, %c2_i32 : i32
    %2 = arith.remsi %arg1, %1 : i32
    %c0_i32_0 = arith.constant 0 : i32
    %3 = arith.cmpi ne, %2, %c0_i32_0 : i32
    %c0_i32_1 = arith.constant 0 : i32
    %4 = arith.cmpi slt, %2, %c0_i32_1 : i32
    %c0_i32_2 = arith.constant 0 : i32
    %5 = arith.cmpi slt, %1, %c0_i32_2 : i32
    %6 = arith.xori %4, %5 : i1
    %7 = arith.andi %6, %3 : i1
    %8 = arith.addi %2, %1 : i32
    %9 = arith.select %7, %8, %2 : i32
    %c0_i32_3 = arith.constant 0 : i32
    %10 = arith.cmpi eq, %arg1, %c0_i32_3 : i32
    %11 = arith.extui %10 : i1 to i32
    %c0_i32_4 = arith.constant 0 : i32
    %12 = arith.cmpi ne, %11, %c0_i32_4 : i32
    scf.if %12 {
      %c536_i32 = arith.constant 536 : i32
      %98 = arith.muli %arg0, %c536_i32 : i32
      %c240_i32 = arith.constant 240 : i32
      %99 = arith.muli %arg1, %c240_i32 : i32
      %100 = arith.addi %98, %99 : i32
      %c0_i32_83 = arith.constant 0 : i32
      %101 = tpu.memref_slice %arg2[%100, %c0_i32_83] : memref<1072x128xf32, #tpu.memory_space<any>> -> memref<296x128xf32, #tpu.memory_space<any>>
      %c0_i32_84 = arith.constant 0 : i32
      %c0_i32_85 = arith.constant 0 : i32
      %102 = tpu.memref_slice %arg7[%9, %c0_i32_84, %c0_i32_85] : memref<2x296x128xf32, #tpu.memory_space<vmem>> -> memref<1x296x128xf32, #tpu.memory_space<vmem>>
      %103 = tpu.memref_squeeze %102 : memref<1x296x128xf32, #tpu.memory_space<vmem>> -> memref<296x128xf32, #tpu.memory_space<vmem>>
      %104 = tpu.memref_slice %arg8[%9] : memref<2x!tpu.dma_semaphore, #tpu.memory_space<semaphore_mem>> -> memref<1x!tpu.dma_semaphore, #tpu.memory_space<semaphore_mem>>
      %105 = tpu.memref_squeeze %104 : memref<1x!tpu.dma_semaphore, #tpu.memory_space<semaphore_mem>> -> memref<!tpu.dma_semaphore, #tpu.memory_space<semaphore_mem>>
      tpu.enqueue_dma source(%101 : memref<296x128xf32, #tpu.memory_space<any>>) target(%103 : memref<296x128xf32, #tpu.memory_space<vmem>>) target_semaphore(%105 : memref<!tpu.dma_semaphore, #tpu.memory_space<semaphore_mem>>)
    } else {
    }
    %c1_i32_5 = arith.constant 1 : i32
    %13 = arith.addi %arg1, %c1_i32_5 : i32
    %c2_i32_6 = arith.constant 2 : i32
    %14 = arith.cmpi slt, %13, %c2_i32_6 : i32
    %15 = arith.extui %14 : i1 to i32
    %c0_i32_7 = arith.constant 0 : i32
    %16 = arith.cmpi ne, %15, %c0_i32_7 : i32
    scf.if %16 {
      %c1_i32_83 = arith.constant 1 : i32
      %98 = arith.addi %arg1, %c1_i32_83 : i32
      %c1_i32_84 = arith.constant 1 : i32
      %99 = arith.subi %c1_i32_84, %9 : i32
      %c536_i32 = arith.constant 536 : i32
      %100 = arith.muli %arg0, %c536_i32 : i32
      %c240_i32 = arith.constant 240 : i32
      %101 = arith.muli %98, %c240_i32 : i32
      %102 = arith.addi %100, %101 : i32
      %c0_i32_85 = arith.constant 0 : i32
      %103 = tpu.memref_slice %arg2[%102, %c0_i32_85] : memref<1072x128xf32, #tpu.memory_space<any>> -> memref<296x128xf32, #tpu.memory_space<any>>
      %c0_i32_86 = arith.constant 0 : i32
      %c0_i32_87 = arith.constant 0 : i32
      %104 = tpu.memref_slice %arg7[%99, %c0_i32_86, %c0_i32_87] : memref<2x296x128xf32, #tpu.memory_space<vmem>> -> memref<1x296x128xf32, #tpu.memory_space<vmem>>
      %105 = tpu.memref_squeeze %104 : memref<1x296x128xf32, #tpu.memory_space<vmem>> -> memref<296x128xf32, #tpu.memory_space<vmem>>
      %106 = tpu.memref_slice %arg8[%99] : memref<2x!tpu.dma_semaphore, #tpu.memory_space<semaphore_mem>> -> memref<1x!tpu.dma_semaphore, #tpu.memory_space<semaphore_mem>>
      %107 = tpu.memref_squeeze %106 : memref<1x!tpu.dma_semaphore, #tpu.memory_space<semaphore_mem>> -> memref<!tpu.dma_semaphore, #tpu.memory_space<semaphore_mem>>
      tpu.enqueue_dma source(%103 : memref<296x128xf32, #tpu.memory_space<any>>) target(%105 : memref<296x128xf32, #tpu.memory_space<vmem>>) target_semaphore(%107 : memref<!tpu.dma_semaphore, #tpu.memory_space<semaphore_mem>>)
    } else {
    }
    %c0_i32_8 = arith.constant 0 : i32
    %c0_i32_9 = arith.constant 0 : i32
    %17 = tpu.memref_slice %arg2[%c0_i32_8, %c0_i32_9] : memref<1072x128xf32, #tpu.memory_space<any>> -> memref<296x128xf32, #tpu.memory_space<any>>
    %c0_i32_10 = arith.constant 0 : i32
    %c0_i32_11 = arith.constant 0 : i32
    %18 = tpu.memref_slice %arg7[%9, %c0_i32_10, %c0_i32_11] : memref<2x296x128xf32, #tpu.memory_space<vmem>> -> memref<1x296x128xf32, #tpu.memory_space<vmem>>
    %19 = tpu.memref_squeeze %18 : memref<1x296x128xf32, #tpu.memory_space<vmem>> -> memref<296x128xf32, #tpu.memory_space<vmem>>
    %20 = tpu.memref_slice %arg8[%9] : memref<2x!tpu.dma_semaphore, #tpu.memory_space<semaphore_mem>> -> memref<1x!tpu.dma_semaphore, #tpu.memory_space<semaphore_mem>>
    %21 = tpu.memref_squeeze %20 : memref<1x!tpu.dma_semaphore, #tpu.memory_space<semaphore_mem>> -> memref<!tpu.dma_semaphore, #tpu.memory_space<semaphore_mem>>
    tpu.wait_dma2 semaphore(%21 : memref<!tpu.dma_semaphore, #tpu.memory_space<semaphore_mem>>) src(%17 : memref<296x128xf32, #tpu.memory_space<any>>) dst(%19 : memref<296x128xf32, #tpu.memory_space<vmem>>)
    %22 = arith.index_cast %9 : i32 to index
    %c0 = arith.constant 0 : index
    %c0_12 = arith.constant 0 : index
    %23 = vector.load %arg7[%22, %c0, %c0_12] : memref<2x296x128xf32, #tpu.memory_space<vmem>>, vector<1x296x128xf32>
    %24 = vector.shape_cast %23 : vector<1x296x128xf32> to vector<296x128xf32>
    %25 = vector.extract_strided_slice %24 {offsets = [0, 0], sizes = [240, 128], strides = [1, 1]} : vector<296x128xf32> to vector<240x128xf32>
    %c0_13 = arith.constant 0 : index
    %c0_14 = arith.constant 0 : index
    %c0_15 = arith.constant 0 : index
    %26 = vector.load %arg3[%c0_13, %c0_14, %c0_15] : memref<9x128x128xf32, #tpu.memory_space<vmem>>, vector<1x128x128xf32>
    %27 = vector.shape_cast %26 : vector<1x128x128xf32> to vector<128x128xf32>
    %cst = arith.constant dense<0.000000e+00> : vector<240x128xf32>
    %28 = tpu.matmul %25, %27, %cst {dimension_numbers = #tpu.dot_dimension_numbers<[1], [0], [0], [1], [0, 0, 1, 1], [], []>} : vector<240x128xf32>, vector<128x128xf32>, vector<240x128xf32> -> vector<240x128xf32>
    %c0_16 = arith.constant 0 : index
    %c0_17 = arith.constant 0 : index
    %29 = vector.load %arg9[%c0_16, %c0_17] : memref<240x128xf32, #tpu.memory_space<vmem>>, vector<240x128xf32>
    tpu.vector_store %arg9[%c0_16, %c0_17], %28 {strides = array<i32>} : memref<240x128xf32, #tpu.memory_space<vmem>>, vector<240x128xf32>,
    %30 = vector.extract_strided_slice %24 {offsets = [24, 0], sizes = [240, 128], strides = [1, 1]} : vector<296x128xf32> to vector<240x128xf32>
    %c3 = arith.constant 3 : index
    %c0_18 = arith.constant 0 : index
    %c0_19 = arith.constant 0 : index
    %31 = vector.load %arg3[%c3, %c0_18, %c0_19] : memref<9x128x128xf32, #tpu.memory_space<vmem>>, vector<1x128x128xf32>
    %32 = vector.shape_cast %31 : vector<1x128x128xf32> to vector<128x128xf32>
    %cst_20 = arith.constant dense<0.000000e+00> : vector<240x128xf32>
    %33 = tpu.matmul %30, %32, %cst_20 {dimension_numbers = #tpu.dot_dimension_numbers<[1], [0], [0], [1], [0, 0, 1, 1], [], []>} : vector<240x128xf32>, vector<128x128xf32>, vector<240x128xf32> -> vector<240x128xf32>
    %c0_21 = arith.constant 0 : index
    %c0_22 = arith.constant 0 : index
    %34 = vector.load %arg9[%c0_21, %c0_22] : memref<240x128xf32, #tpu.memory_space<vmem>>, vector<240x128xf32>
    %35 = arith.addf %34, %33 : vector<240x128xf32>
    %c0_23 = arith.constant 0 : index
    %c0_24 = arith.constant 0 : index
    %36 = vector.load %arg9[%c0_23, %c0_24] : memref<240x128xf32, #tpu.memory_space<vmem>>, vector<240x128xf32>
    tpu.vector_store %arg9[%c0_23, %c0_24], %35 {strides = array<i32>} : memref<240x128xf32, #tpu.memory_space<vmem>>, vector<240x128xf32>,
    %37 = vector.extract_strided_slice %24 {offsets = [48, 0], sizes = [240, 128], strides = [1, 1]} : vector<296x128xf32> to vector<240x128xf32>
    %c6 = arith.constant 6 : index
    %c0_25 = arith.constant 0 : index
    %c0_26 = arith.constant 0 : index
    %38 = vector.load %arg3[%c6, %c0_25, %c0_26] : memref<9x128x128xf32, #tpu.memory_space<vmem>>, vector<1x128x128xf32>
    %39 = vector.shape_cast %38 : vector<1x128x128xf32> to vector<128x128xf32>
    %cst_27 = arith.constant dense<0.000000e+00> : vector<240x128xf32>
    %40 = tpu.matmul %37, %39, %cst_27 {dimension_numbers = #tpu.dot_dimension_numbers<[1], [0], [0], [1], [0, 0, 1, 1], [], []>} : vector<240x128xf32>, vector<128x128xf32>, vector<240x128xf32> -> vector<240x128xf32>
    %c0_28 = arith.constant 0 : index
    %c0_29 = arith.constant 0 : index
    %41 = vector.load %arg9[%c0_28, %c0_29] : memref<240x128xf32, #tpu.memory_space<vmem>>, vector<240x128xf32>
    %42 = arith.addf %41, %40 : vector<240x128xf32>
    %c0_30 = arith.constant 0 : index
    %c0_31 = arith.constant 0 : index
    %43 = vector.load %arg9[%c0_30, %c0_31] : memref<240x128xf32, #tpu.memory_space<vmem>>, vector<240x128xf32>
    tpu.vector_store %arg9[%c0_30, %c0_31], %42 {strides = array<i32>} : memref<240x128xf32, #tpu.memory_space<vmem>>, vector<240x128xf32>,
    %c295_i32 = arith.constant 295 : i32
    %44 = tpu.dynamic_rotate %24 by %c295_i32 dim 0 : vector<296x128xf32>, i32 -> vector<296x128xf32>
    %45 = vector.extract_strided_slice %44 {offsets = [0, 0], sizes = [240, 128], strides = [1, 1]} : vector<296x128xf32> to vector<240x128xf32>
    %c1 = arith.constant 1 : index
    %c0_32 = arith.constant 0 : index
    %c0_33 = arith.constant 0 : index
    %46 = vector.load %arg3[%c1, %c0_32, %c0_33] : memref<9x128x128xf32, #tpu.memory_space<vmem>>, vector<1x128x128xf32>
    %47 = vector.shape_cast %46 : vector<1x128x128xf32> to vector<128x128xf32>
    %cst_34 = arith.constant dense<0.000000e+00> : vector<240x128xf32>
    %48 = tpu.matmul %45, %47, %cst_34 {dimension_numbers = #tpu.dot_dimension_numbers<[1], [0], [0], [1], [0, 0, 1, 1], [], []>} : vector<240x128xf32>, vector<128x128xf32>, vector<240x128xf32> -> vector<240x128xf32>
    %c0_35 = arith.constant 0 : index
    %c0_36 = arith.constant 0 : index
    %49 = vector.load %arg9[%c0_35, %c0_36] : memref<240x128xf32, #tpu.memory_space<vmem>>, vector<240x128xf32>
    %50 = arith.addf %49, %48 : vector<240x128xf32>
    %c0_37 = arith.constant 0 : index
    %c0_38 = arith.constant 0 : index
    %51 = vector.load %arg9[%c0_37, %c0_38] : memref<240x128xf32, #tpu.memory_space<vmem>>, vector<240x128xf32>
    tpu.vector_store %arg9[%c0_37, %c0_38], %50 {strides = array<i32>} : memref<240x128xf32, #tpu.memory_space<vmem>>, vector<240x128xf32>,
    %52 = vector.extract_strided_slice %44 {offsets = [24, 0], sizes = [240, 128], strides = [1, 1]} : vector<296x128xf32> to vector<240x128xf32>
    %c4 = arith.constant 4 : index
    %c0_39 = arith.constant 0 : index
    %c0_40 = arith.constant 0 : index
    %53 = vector.load %arg3[%c4, %c0_39, %c0_40] : memref<9x128x128xf32, #tpu.memory_space<vmem>>, vector<1x128x128xf32>
    %54 = vector.shape_cast %53 : vector<1x128x128xf32> to vector<128x128xf32>
    %cst_41 = arith.constant dense<0.000000e+00> : vector<240x128xf32>
    %55 = tpu.matmul %52, %54, %cst_41 {dimension_numbers = #tpu.dot_dimension_numbers<[1], [0], [0], [1], [0, 0, 1, 1], [], []>} : vector<240x128xf32>, vector<128x128xf32>, vector<240x128xf32> -> vector<240x128xf32>
    %c0_42 = arith.constant 0 : index
    %c0_43 = arith.constant 0 : index
    %56 = vector.load %arg9[%c0_42, %c0_43] : memref<240x128xf32, #tpu.memory_space<vmem>>, vector<240x128xf32>
    %57 = arith.addf %56, %55 : vector<240x128xf32>
    %c0_44 = arith.constant 0 : index
    %c0_45 = arith.constant 0 : index
    %58 = vector.load %arg9[%c0_44, %c0_45] : memref<240x128xf32, #tpu.memory_space<vmem>>, vector<240x128xf32>
    tpu.vector_store %arg9[%c0_44, %c0_45], %57 {strides = array<i32>} : memref<240x128xf32, #tpu.memory_space<vmem>>, vector<240x128xf32>,
    %59 = vector.extract_strided_slice %44 {offsets = [48, 0], sizes = [240, 128], strides = [1, 1]} : vector<296x128xf32> to vector<240x128xf32>
    %c7 = arith.constant 7 : index
    %c0_46 = arith.constant 0 : index
    %c0_47 = arith.constant 0 : index
    %60 = vector.load %arg3[%c7, %c0_46, %c0_47] : memref<9x128x128xf32, #tpu.memory_space<vmem>>, vector<1x128x128xf32>
    %61 = vector.shape_cast %60 : vector<1x128x128xf32> to vector<128x128xf32>
    %cst_48 = arith.constant dense<0.000000e+00> : vector<240x128xf32>
    %62 = tpu.matmul %59, %61, %cst_48 {dimension_numbers = #tpu.dot_dimension_numbers<[1], [0], [0], [1], [0, 0, 1, 1], [], []>} : vector<240x128xf32>, vector<128x128xf32>, vector<240x128xf32> -> vector<240x128xf32>
    %c0_49 = arith.constant 0 : index
    %c0_50 = arith.constant 0 : index
    %63 = vector.load %arg9[%c0_49, %c0_50] : memref<240x128xf32, #tpu.memory_space<vmem>>, vector<240x128xf32>
    %64 = arith.addf %63, %62 : vector<240x128xf32>
    %c0_51 = arith.constant 0 : index
    %c0_52 = arith.constant 0 : index
    %65 = vector.load %arg9[%c0_51, %c0_52] : memref<240x128xf32, #tpu.memory_space<vmem>>, vector<240x128xf32>
    tpu.vector_store %arg9[%c0_51, %c0_52], %64 {strides = array<i32>} : memref<240x128xf32, #tpu.memory_space<vmem>>, vector<240x128xf32>,
    %c294_i32 = arith.constant 294 : i32
    %66 = tpu.dynamic_rotate %24 by %c294_i32 dim 0 : vector<296x128xf32>, i32 -> vector<296x128xf32>
    %67 = vector.extract_strided_slice %66 {offsets = [0, 0], sizes = [240, 128], strides = [1, 1]} : vector<296x128xf32> to vector<240x128xf32>
    %c2 = arith.constant 2 : index
    %c0_53 = arith.constant 0 : index
    %c0_54 = arith.constant 0 : index
    %68 = vector.load %arg3[%c2, %c0_53, %c0_54] : memref<9x128x128xf32, #tpu.memory_space<vmem>>, vector<1x128x128xf32>
    %69 = vector.shape_cast %68 : vector<1x128x128xf32> to vector<128x128xf32>
    %cst_55 = arith.constant dense<0.000000e+00> : vector<240x128xf32>
    %70 = tpu.matmul %67, %69, %cst_55 {dimension_numbers = #tpu.dot_dimension_numbers<[1], [0], [0], [1], [0, 0, 1, 1], [], []>} : vector<240x128xf32>, vector<128x128xf32>, vector<240x128xf32> -> vector<240x128xf32>
    %c0_56 = arith.constant 0 : index
    %c0_57 = arith.constant 0 : index
    %71 = vector.load %arg9[%c0_56, %c0_57] : memref<240x128xf32, #tpu.memory_space<vmem>>, vector<240x128xf32>
    %72 = arith.addf %71, %70 : vector<240x128xf32>
    %c0_58 = arith.constant 0 : index
    %c0_59 = arith.constant 0 : index
    %73 = vector.load %arg9[%c0_58, %c0_59] : memref<240x128xf32, #tpu.memory_space<vmem>>, vector<240x128xf32>
    tpu.vector_store %arg9[%c0_58, %c0_59], %72 {strides = array<i32>} : memref<240x128xf32, #tpu.memory_space<vmem>>, vector<240x128xf32>,
    %74 = vector.extract_strided_slice %66 {offsets = [24, 0], sizes = [240, 128], strides = [1, 1]} : vector<296x128xf32> to vector<240x128xf32>
    %c5 = arith.constant 5 : index
    %c0_60 = arith.constant 0 : index
    %c0_61 = arith.constant 0 : index
    %75 = vector.load %arg3[%c5, %c0_60, %c0_61] : memref<9x128x128xf32, #tpu.memory_space<vmem>>, vector<1x128x128xf32>
    %76 = vector.shape_cast %75 : vector<1x128x128xf32> to vector<128x128xf32>
    %cst_62 = arith.constant dense<0.000000e+00> : vector<240x128xf32>
    %77 = tpu.matmul %74, %76, %cst_62 {dimension_numbers = #tpu.dot_dimension_numbers<[1], [0], [0], [1], [0, 0, 1, 1], [], []>} : vector<240x128xf32>, vector<128x128xf32>, vector<240x128xf32> -> vector<240x128xf32>
    %c0_63 = arith.constant 0 : index
    %c0_64 = arith.constant 0 : index
    %78 = vector.load %arg9[%c0_63, %c0_64] : memref<240x128xf32, #tpu.memory_space<vmem>>, vector<240x128xf32>
    %79 = arith.addf %78, %77 : vector<240x128xf32>
    %c0_65 = arith.constant 0 : index
    %c0_66 = arith.constant 0 : index
    %80 = vector.load %arg9[%c0_65, %c0_66] : memref<240x128xf32, #tpu.memory_space<vmem>>, vector<240x128xf32>
    tpu.vector_store %arg9[%c0_65, %c0_66], %79 {strides = array<i32>} : memref<240x128xf32, #tpu.memory_space<vmem>>, vector<240x128xf32>,
    %81 = vector.extract_strided_slice %66 {offsets = [48, 0], sizes = [240, 128], strides = [1, 1]} : vector<296x128xf32> to vector<240x128xf32>
    %c8 = arith.constant 8 : index
    %c0_67 = arith.constant 0 : index
    %c0_68 = arith.constant 0 : index
    %82 = vector.load %arg3[%c8, %c0_67, %c0_68] : memref<9x128x128xf32, #tpu.memory_space<vmem>>, vector<1x128x128xf32>
    %83 = vector.shape_cast %82 : vector<1x128x128xf32> to vector<128x128xf32>
    %cst_69 = arith.constant dense<0.000000e+00> : vector<240x128xf32>
    %84 = tpu.matmul %81, %83, %cst_69 {dimension_numbers = #tpu.dot_dimension_numbers<[1], [0], [0], [1], [0, 0, 1, 1], [], []>} : vector<240x128xf32>, vector<128x128xf32>, vector<240x128xf32> -> vector<240x128xf32>
    %c0_70 = arith.constant 0 : index
    %c0_71 = arith.constant 0 : index
    %85 = vector.load %arg9[%c0_70, %c0_71] : memref<240x128xf32, #tpu.memory_space<vmem>>, vector<240x128xf32>
    %86 = arith.addf %85, %84 : vector<240x128xf32>
    %c0_72 = arith.constant 0 : index
    %c0_73 = arith.constant 0 : index
    %87 = vector.load %arg9[%c0_72, %c0_73] : memref<240x128xf32, #tpu.memory_space<vmem>>, vector<240x128xf32>
    tpu.vector_store %arg9[%c0_72, %c0_73], %86 {strides = array<i32>} : memref<240x128xf32, #tpu.memory_space<vmem>>, vector<240x128xf32>,
    %c0_74 = arith.constant 0 : index
    %c0_75 = arith.constant 0 : index
    %88 = vector.load %arg9[%c0_74, %c0_75] : memref<240x128xf32, #tpu.memory_space<vmem>>, vector<240x128xf32>
    %c0_76 = arith.constant 0 : index
    %c0_77 = arith.constant 0 : index
    %89 = vector.load %arg4[%c0_76, %c0_77] : memref<1x128xf32, #tpu.memory_space<vmem>>, vector<1x128xf32>
    %90 = vector.broadcast %89 : vector<1x128xf32> to vector<240x128xf32>
    %91 = arith.mulf %88, %90 : vector<240x128xf32>
    %c0_78 = arith.constant 0 : index
    %c0_79 = arith.constant 0 : index
    %92 = vector.load %arg5[%c0_78, %c0_79] : memref<1x128xf32, #tpu.memory_space<vmem>>, vector<1x128xf32>
    %93 = vector.broadcast %92 : vector<1x128xf32> to vector<240x128xf32>
    %94 = arith.addf %91, %93 : vector<240x128xf32>
    %c0_80 = arith.constant 0 : index
    %c0_81 = arith.constant 0 : index
    %c0_82 = arith.constant 0 : index
    %95 = vector.load %arg6[%c0_80, %c0_81, %c0_82] : memref<1x240x128xf32, #tpu.memory_space<vmem>>, vector<1x240x128xf32>
    %96 = vector.shape_cast %95 : vector<1x240x128xf32> to vector<240x128xf32>
    %97 = vector.shape_cast %94 : vector<240x128xf32> to vector<1x240x128xf32>
    tpu.vector_store %arg6[%c0_80, %c0_81, %c0_82], %97 {strides = array<i32>} : memref<1x240x128xf32, #tpu.memory_space<vmem>>, vector<1x240x128xf32>,
    return
  }
  func.func @transform_1(%arg0: i32, %arg1: i32) -> (i32, i32, i32) {
    %c0_i32 = arith.constant 0 : i32
    %c0_i32_0 = arith.constant 0 : i32
    %c0_i32_1 = arith.constant 0 : i32
    %c0_i32_2 = arith.constant 0 : i32
    return %c0_i32, %c0_i32_0, %c0_i32_1 : i32, i32, i32
  }
  func.func @transform_2(%arg0: i32, %arg1: i32) -> (i32, i32) {
    %c0_i32 = arith.constant 0 : i32
    %c0_i32_0 = arith.constant 0 : i32
    %c0_i32_1 = arith.constant 0 : i32
    return %c0_i32, %c0_i32_0 : i32, i32
  }
  func.func @transform_3(%arg0: i32, %arg1: i32) -> (i32, i32) {
    %c0_i32 = arith.constant 0 : i32
    %c0_i32_0 = arith.constant 0 : i32
    %c0_i32_1 = arith.constant 0 : i32
    return %c0_i32, %c0_i32_0 : i32, i32
  }
  func.func @transform_4(%arg0: i32, %arg1: i32) -> (i32, i32, i32) {
    %c0_i32 = arith.constant 0 : i32
    %c0_i32_0 = arith.constant 0 : i32
    return %arg0, %arg1, %c0_i32 : i32, i32, i32
  }
}

</mosaic_0001>

<llo_original>
// kernel: tpu_custom_call.1
$region0: #{tpu_custom_call.1}
  #allocation0 [shape = 'u32[]', space=smem, size = 0x4, offset = 0x4, fixed_abs, tag = 'smem constant byte address 0x4 - core index']
  #allocation1 [shape = 'u32[144,128]{1,0:T(1,128)}', space=vmem, size = 0x12000, scoped, tag = 'internal scratch']
  #allocation2 [shape = 'f32[2,296,128]{2,1,0:T(8,128)}', space=vmem, size = 0x4a000, scoped, tag = 'scratch operand']
  #allocation3 [shape = 's32[2]{0}', space=sflag, size = 0x8, scoped, tag = 'scratch operand']
  #allocation4 [shape = 'f32[240,128]{1,0:T(8,128)}', space=vmem, size = 0x1e000, scoped, tag = 'scratch operand']
  #allocation9 [shape = 's32[]', space=sflag, size = 0x4, offset = 0, fixed_abs, tag = 'sflag constant byte address 0x0 - dummy sync flag']
  #allocation10 [shape = 's32[]', space=sflag, size = 0x4, offset = 0, fixed_abs, tag = 'sflag constant byte address 0x0 - dummy sync flag']
  #allocation11 [shape = 'u32[]', space=smem, size = 0x4, offset = 0x44, fixed_abs, tag = 'smem constant byte address 0x44 - assertion arg 0']
  #allocation12 [shape = 'u32[]', space=smem, size = 0x4, offset = 0x48, fixed_abs, tag = 'smem constant byte address 0x48 - assertion arg 1']
  #allocation13 [shape = 's32[]', space=sflag, size = 0x4, offset = 0, fixed_abs, tag = 'sflag constant byte address 0x0 - dummy sync flag']
  #allocation14 [shape = 's32[]', space=sflag, size = 0x4, offset = 0, fixed_abs, tag = 'sflag constant byte address 0x0 - dummy sync flag']
  %s0 = inlined_call_operand.hbm [shape: f32[1072,128], index: 0, kind: input, shape index: {}]
  %s1 = inlined_call_operand.hbm [shape: f32[9,128,128], index: 1, kind: input, shape index: {}]
  %s2 = inlined_call_operand.vmem [shape: f32[1,128], index: 2, kind: input, shape index: {}]
  %s3 = inlined_call_operand.vmem [shape: f32[1,128], index: 3, kind: input, shape index: {}]
  %s4 = inlined_call_operand.hbm [shape: f32[2,480,128], index: 4, kind: output, shape index: {}]
  %s5 = sld [smem:[#allocation0]]
  $region65: #{tpu_custom_call.1} parent=0
    _
  %s7 = ssub.s32 1, %s5
  %s8 = scalar_select 0, %s7, %s5
  $region1: #{tpu_custom_call.1} parent=0
    #allocation5 [shape = 'u8[589824]{0}', space=vmem, size = 0x90000, scoped, tag = 'input window, operand 1, single buffered']
    #allocation6 [shape = 's32[2]{0}', space=sflag, size = 0x8, scoped, tag = 'scoped memory for tpu_custom_call.1']
    #allocation7 [shape = 's32[2]{0}', space=sflag, size = 0x8, scoped, tag = 'scoped memory for tpu_custom_call.1']
    #allocation8 [shape = 'u8[245760]{0}', space=vmem, size = 0x3c000, scoped, tag = 'output window, operand 0']
    %9 = vsyncpa [#allocation6], 0
    %10 = vsyncpa [#allocation7], 0
    %s11 = scalar_lea.sflag [#allocation7], 1
    %12 = vsyncpa %s11, 0
    loop: start=0, step=1, limit=6
    $region2: #{tpu_custom_call.1} parent=1 // loop_pre_header
      _
    $region3: #{tpu_custom_call.1} parent=1 // loop_header
      %s14 = sphi 0, %s18
      %p15 = scmp.ge.s32.totalorder %s14, 6
      %s21 = sphi 0, %s33
      %s22 = sphi 0, %s29
      %s23 = sphi 0, %s21
      %s24 = sphi 0, %s22
      %s25 = sphi 0, %s23
      %s26 = sphi 0, %s24
      %s34 = sphi 0, %s34
      %s36 = sphi 0, %s34
      %s37 = sphi 0, %s36
      %s51 = sphi 0, %s37
      %s55 = sphi 0, %s55
      %s57 = sphi 0, %s55
      %s58 = sphi 0, %s57
      %s72 = sphi 0, %s58
      %s76 = sphi 0, %s76
      %s78 = sphi 0, %s76
      %s79 = sphi 0, %s78
      %s93 = sphi 0, %s79
      %s101 = sphi 0, %s103
      %s104 = sphi 0, %s101
      %s105 = sphi 0, %s104
      %s121 = sphi 0, %s105
    $region4: #{tpu_custom_call.1} parent=1 // loop_header_branch
      %17 = sbr.rel (%p15) target = $region8
    $region5: #{tpu_custom_call.1} parent=1 // loop_body
      %s19 = ssub.s32 %s14, 1
      %s20 = ssub.s32 %s14, 2
      %s27 = sadd.s32 1, %s22
      %p28 = scmp.ge.s32.totalorder %s27, 2
      %s29 = scalar_select %p28, 0, %s27
      %s30 = sadd.s32 1, %s21
      %s31 = scalar_select %p28, %s30, %s21
      %p32 = scmp.ge.s32.totalorder %s31, 2
      %s33 = scalar_select %p32, 0, %s31
      %s35 = sadd.s32 %s34, 1
      %p38 = scmp.eq.s32.totalorder %s14, 3
      %p39 = scmp.ne.s32.totalorder %s34, %s36
      %p40 = scmp.eq.s32.totalorder %s14, 0
      %p41 = por %p39, %p40
      %p42 = scmp.ne.s32.totalorder %s34, %s36
      %p43 = scmp.eq.s32.totalorder %s19, 3
      %p44 = por %p42, %p43
      %p45 = scmp.ne.s32.totalorder %s36, %s37
      %p46 = scmp.eq.s32.totalorder %s19, 0
      %p47 = por %p45, %p46
      %p48 = scmp.ne.s32.totalorder %s36, %s37
      %p49 = scmp.eq.s32.totalorder %s20, 3
      %p50 = por %p48, %p49
      %p52 = scmp.ne.s32.totalorder %s37, %s51
      %p53 = scmp.eq.s32.totalorder %s20, 0
      %p54 = por %p52, %p53
      %s56 = sadd.s32 %s55, 1
      %p59 = scmp.eq.s32.totalorder %s14, 3
      %p60 = scmp.ne.s32.totalorder %s55, %s57
      %p61 = scmp.eq.s32.totalorder %s14, 0
      %p62 = por %p60, %p61
      %p63 = scmp.ne.s32.totalorder %s55, %s57
      %p64 = scmp.eq.s32.totalorder %s19, 3
      %p65 = por %p63, %p64
      %p66 = scmp.ne.s32.totalorder %s57, %s58
      %p67 = scmp.eq.s32.totalorder %s19, 0
      %p68 = por %p66, %p67
      %p69 = scmp.ne.s32.totalorder %s57, %s58
      %p70 = scmp.eq.s32.totalorder %s20, 3
      %p71 = por %p69, %p70
      %p73 = scmp.ne.s32.totalorder %s58, %s72
      %p74 = scmp.eq.s32.totalorder %s20, 0
      %p75 = por %p73, %p74
      %s77 = sadd.s32 %s76, 1
      %p80 = scmp.eq.s32.totalorder %s14, 3
      %p81 = scmp.ne.s32.totalorder %s76, %s78
      %p82 = scmp.eq.s32.totalorder %s14, 0
      %p83 = por %p81, %p82
      %p84 = scmp.ne.s32.totalorder %s76, %s78
      %p85 = scmp.eq.s32.totalorder %s19, 3
      %p86 = por %p84, %p85
      %p87 = scmp.ne.s32.totalorder %s78, %s79
      %p88 = scmp.eq.s32.totalorder %s19, 0
      %p89 = por %p87, %p88
      %p90 = scmp.ne.s32.totalorder %s78, %s79
      %p91 = scmp.eq.s32.totalorder %s20, 3
      %p92 = por %p90, %p91
      %p94 = scmp.ne.s32.totalorder %s79, %s93
      %p95 = scmp.eq.s32.totalorder %s20, 0
      %p96 = por %p94, %p95
      %s97 = ssub.s32 %s21, %s33
      %s98 = ssub.s32 %s22, %s29
      %s99 = sor.u32 %s97, %s98
      %p100 = scmp.eq.s32.totalorder %s99, 0
      %s102 = sadd.s32 %s101, 1
      %s103 = scalar_select %p100, %s101, %s102
      %p106 = pneg %p100
      %p107 = scmp.eq.s32.totalorder %s14, 3
      %p108 = por %p106, %p107
      %p109 = scmp.ne.s32.totalorder %s101, %s104
      %p110 = scmp.eq.s32.totalorder %s14, 0
      %p111 = por %p109, %p110
      %p112 = scmp.ne.s32.totalorder %s101, %s104
      %p113 = scmp.eq.s32.totalorder %s19, 3
      %p114 = por %p112, %p113
      %p115 = scmp.ne.s32.totalorder %s104, %s105
      %p116 = scmp.eq.s32.totalorder %s19, 0
      %p117 = por %p115, %p116
      %p118 = scmp.ne.s32.totalorder %s104, %s105
      %p119 = scmp.eq.s32.totalorder %s20, 3
      %p120 = por %p118, %p119
      %p122 = scmp.ne.s32.totalorder %s105, %s121
      %p123 = scmp.eq.s32.totalorder %s20, 0
      %p124 = por %p122, %p123
      %p125 = scmp.le.s32.totalorder 1, %s14
      %p126 = scmp.lt.s32.totalorder %s14, 5
      %p127 = pnand %p125, %p126
      %p128 = pneg %p127
      // Predicated region
      $region9: #{tpu_custom_call.1} parent=5 // pred_check
        _
      $region10: #{tpu_custom_call.1} parent=5 // pred_check_branch
        %130 = sbr.rel (%p127) target = $region12
      $region11: #{tpu_custom_call.1} parent=5 // pred_region
        %s131 = ssub.s32 %s14, 1
        // Predicated region
        $region13: #{tpu_custom_call.1} parent=11 // pred_check
          %p132 = pneg %p47
        $region14: #{tpu_custom_call.1} parent=11 // pred_check_branch
          %134 = sbr.rel (%p132) target = $region16
        $region15: #{tpu_custom_call.1} parent=11 // pred_region
          %s136 = ssub.s32 18432, 18432
          %137 = vsyncadd [#allocation6], %s136
          %s138 = sshll.u32 [#allocation5], 4
          %s139 = int_to_ptr.vmem [resolvable:$true] %s138
          %144 = dma.hbm_to_vmem [thread:$0]  %s1, 18432, %s139, [#allocation6], 128, 128, 8
        $region16: #{tpu_custom_call.1} parent=11 // pred_fallthru
          _
        // Predicated region
        $region17: #{tpu_custom_call.1} parent=11 // pred_check
          %p145 = pneg %p68
        $region18: #{tpu_custom_call.1} parent=11 // pred_check_branch
          %147 = sbr.rel (%p145) target = $region20
        $region19: #{tpu_custom_call.1} parent=11 // pred_region
          _
        $region20: #{tpu_custom_call.1} parent=11 // pred_fallthru
          _
        // Predicated region
        $region21: #{tpu_custom_call.1} parent=11 // pred_check
          %p148 = pneg %p89
        $region22: #{tpu_custom_call.1} parent=11 // pred_check_branch
          %150 = sbr.rel (%p148) target = $region24
        $region23: #{tpu_custom_call.1} parent=11 // pred_region
          _
        $region24: #{tpu_custom_call.1} parent=11 // pred_fallthru
          _
      $region12: #{tpu_custom_call.1} parent=5 // pred_fallthru
        _
      %p151 = scmp.lt.s32.totalorder %s14, 4
      // Predicated region
      $region25: #{tpu_custom_call.1} parent=5 // pred_check
        %p152 = pneg %p151
      $region26: #{tpu_custom_call.1} parent=5 // pred_check_branch
        %154 = sbr.rel (%p152) target = $region28
      $region27: #{tpu_custom_call.1} parent=5 // pred_region
        _
      $region28: #{tpu_custom_call.1} parent=5 // pred_fallthru
        _
      %p155 = scmp.le.s32.totalorder 1, %s14
      %p156 = scmp.lt.s32.totalorder %s14, 5
      %p157 = pnand %p155, %p156
      %p158 = pneg %p157
      // Predicated region
      $region29: #{tpu_custom_call.1} parent=5 // pred_check
        _
      $region30: #{tpu_custom_call.1} parent=5 // pred_check_branch
        %160 = sbr.rel (%p157) target = $region32
      $region31: #{tpu_custom_call.1} parent=5 // pred_region
        %s161 = ssub.s32 %s14, 1
        // Predicated region
        $region33: #{tpu_custom_call.1} parent=31 // pred_check
          %p162 = pneg %p47
        $region34: #{tpu_custom_call.1} parent=31 // pred_check_branch
          %164 = sbr.rel (%p162) target = $region36
        $region35: #{tpu_custom_call.1} parent=31 // pred_region
          %165 = dma.done [#allocation6], 18432
        $region36: #{tpu_custom_call.1} parent=31 // pred_fallthru
          _
        %p166 = pneg %p47
        %p167 = pneg %p44
        %p168 = pneg %p68
        %p169 = pneg %p65
        %p170 = pneg %p89
        %p171 = pneg %p86
        %p172 = pneg %p117
        %p173 = pneg %p114
        %s174 = sand.u32 %s104, 1
        %s175 = scalar_lea.sflag [#allocation7], %s174
        %s176 = sand.u32 %s104, 1
        %s177 = smul.addr %s176, 240
        %s178 = scalar_lea.vmem [#allocation8], %s177
        %s179 = smul.u32 30, %s24
        %p180 = scmp.lt.s32.totalorder %s24, 0
        %s181 = ssub.s32 0, %s24
        %s182 = scalar_select %p180, %s181, %s24
        %s183 = sand.u32 %s182, 1
        %s184 = ssub.s32 0, %s183
        %s185 = scalar_select %p180, %s184, %s183
        %p186 = scmp.ne.s32.totalorder %s185, 0
        %p187 = scmp.lt.s32.totalorder %s185, 0
        %p188 = pnand %p187, %p186
        %p189 = pneg %p188
        %s190 = sadd.s32 %s185, 2
        %s191 = scalar_select %p189, %s190, %s185
        %p192 = scmp.eq.s32.totalorder %s24, 0
        // Predicated region
        $region37: #{tpu_custom_call.1} parent=31 // pred_check
          %p193 = pneg %p192
        $region38: #{tpu_custom_call.1} parent=31 // pred_check_branch
          %195 = sbr.rel (%p193) target = $region40
        $region39: #{tpu_custom_call.1} parent=31 // pred_region
          %s196 = smul.u32 %s23, 536
          %s197 = smul.u32 %s24, 240
          %s198 = sadd.s32 %s196, %s197
          %s199 = smul.addr %s198, 16
          %s200 = scalar_lea.hbm %s0, %s199
          %s201 = smul.u32 %s191, 296
          %s202 = scalar_lea.vmem [#allocation2], %s201
          %s203 = scalar_lea.sflag [#allocation3], %s191
          // Predicated region
          $region41: #{tpu_custom_call.1} parent=39 // pred_check
            _
          $region42: #{tpu_custom_call.1} parent=39 // pred_check_branch
            %205 = sbr.rel target = $region44
          $region43: #{tpu_custom_call.1} parent=39 // pred_region
            %206 = sst [smem:[#allocation11]] [#allocation10]
            %207 = sst [smem:[#allocation12]] [#allocation9]
          $region44: #{tpu_custom_call.1} parent=39 // pred_fallthru
            _
          %209 = shalt.err (0)
          %s211 = sshll.u32 %s202, 4
          %s212 = int_to_ptr.vmem [resolvable:$true] %s211
          %214 = dma.hbm_to_vmem [thread:$0]  %s200, 4736, %s212, %s203
        $region40: #{tpu_custom_call.1} parent=31 // pred_fallthru
          _
        %s215 = sadd.s32 %s24, 1
        %p216 = scmp.lt.s32.totalorder %s215, 2
        // Predicated region
        $region45: #{tpu_custom_call.1} parent=31 // pred_check
          %p217 = pneg %p216
        $region46: #{tpu_custom_call.1} parent=31 // pred_check_branch
          %219 = sbr.rel (%p217) target = $region48
        $region47: #{tpu_custom_call.1} parent=31 // pred_region
          %s220 = ssub.s32 1, %s191
          %s221 = smul.u32 %s23, 536
          %s222 = smul.u32 %s215, 240
          %s223 = sadd.s32 %s221, %s222
          %s224 = smul.addr %s223, 16
          %s225 = scalar_lea.hbm %s0, %s224
          %s226 = smul.u32 %s220, 296
          %s227 = scalar_lea.vmem [#allocation2], %s226
          %s228 = scalar_lea.sflag [#allocation3], %s220
          // Predicated region
          $region49: #{tpu_custom_call.1} parent=47 // pred_check
            _
          $region50: #{tpu_custom_call.1} parent=47 // pred_check_branch
            %230 = sbr.rel target = $region52
          $region51: #{tpu_custom_call.1} parent=47 // pred_region
            %231 = sst [smem:[#allocation11]] [#allocation14]
            %232 = sst [smem:[#allocation12]] [#allocation13]
          $region52: #{tpu_custom_call.1} parent=47 // pred_fallthru
            _
          %234 = shalt.err (0)
          %s236 = sshll.u32 %s227, 4
          %s237 = int_to_ptr.vmem [resolvable:$true] %s236
          %239 = dma.hbm_to_vmem [thread:$0]  %s225, 4736, %s237, %s228
        $region48: #{tpu_custom_call.1} parent=31 // pred_fallthru
          _
        %s240 = smul.u32 %s191, 296
        %s241 = scalar_lea.vmem [#allocation2], %s240
        %s242 = scalar_lea.sflag [#allocation3], %s191
        %s243 = smul.u32 296, 1
        %s244 = sshll.u32 %s243, 4
        %245 = dma.done %s242, %s244
        %v246 = vld [vmem:[%s241] sm:$0xff]
        %v247 = vld [vmem:[%s241 + $0x8] sm:$0xff]
        %v248 = vld [vmem:[%s241 + $0x10] sm:$0xff]
        %v249 = vld [vmem:[%s241 + $0x18] sm:$0xff]
        %v250 = vld [vmem:[%s241 + $0x20] sm:$0xff]
        %v251 = vld [vmem:[%s241 + $0x28] sm:$0xff]
        %v252 = vld [vmem:[%s241 + $0x30] sm:$0xff]
        %v253 = vld [vmem:[%s241 + $0x38] sm:$0xff]
        %v254 = vld [vmem:[%s241 + $0x40] sm:$0xff]
        %v255 = vld [vmem:[%s241 + $0x48] sm:$0xff]
        %v256 = vld [vmem:[%s241 + $0x50] sm:$0xff]
        %v257 = vld [vmem:[%s241 + $0x58] sm:$0xff]
        %v258 = vld [vmem:[%s241 + $0x60] sm:$0xff]
        %v259 = vld [vmem:[%s241 + $0x68] sm:$0xff]
        %v260 = vld [vmem:[%s241 + $0x70] sm:$0xff]
        %v261 = vld [vmem:[%s241 + $0x78] sm:$0xff]
        %v262 = vld [vmem:[%s241 + $0x80] sm:$0xff]
        %v263 = vld [vmem:[%s241 + $0x88] sm:$0xff]
        %v264 = vld [vmem:[%s241 + $0x90] sm:$0xff]
        %v265 = vld [vmem:[%s241 + $0x98] sm:$0xff]
        %v266 = vld [vmem:[%s241 + $0xa0] sm:$0xff]
        %v267 = vld [vmem:[%s241 + $0xa8] sm:$0xff]
        %v268 = vld [vmem:[%s241 + $0xb0] sm:$0xff]
        %v269 = vld [vmem:[%s241 + $0xb8] sm:$0xff]
        %v270 = vld [vmem:[%s241 + $0xc0] sm:$0xff]
        %v271 = vld [vmem:[%s241 + $0xc8] sm:$0xff]
        %v272 = vld [vmem:[%s241 + $0xd0] sm:$0xff]
        %v273 = vld [vmem:[%s241 + $0xd8] sm:$0xff]
        %v274 = vld [vmem:[%s241 + $0xe0] sm:$0xff]
        %v275 = vld [vmem:[%s241 + $0xe8] sm:$0xff]
        %v276 = vld [vmem:[%s241 + $0xf0] sm:$0xff]
        %v277 = vld [vmem:[%s241 + $0xf8] sm:$0xff]
        %v278 = vld [vmem:[%s241 + $0x100] sm:$0xff]
        %v279 = vld [vmem:[%s241 + $0x108] sm:$0xff]
        %v280 = vld [vmem:[%s241 + $0x110] sm:$0xff]
        %v281 = vld [vmem:[%s241 + $0x118] sm:$0xff]
        %v282 = vld [vmem:[%s241 + $0x120] sm:$0xff]
        %v283 = vld [vmem:[#allocation5] sm:$0xff]
        %v284 = vld [vmem:[#allocation5 + $0x8] sm:$0xff]
        %v285 = vld [vmem:[#allocation5 + $0x10] sm:$0xff]
        %v286 = vld [vmem:[#allocation5 + $0x18] sm:$0xff]
        %v287 = vld [vmem:[#allocation5 + $0x20] sm:$0xff]
        %v288 = vld [vmem:[#allocation5 + $0x28] sm:$0xff]
        %v289 = vld [vmem:[#allocation5 + $0x30] sm:$0xff]
        %v290 = vld [vmem:[#allocation5 + $0x38] sm:$0xff]
        %v291 = vld [vmem:[#allocation5 + $0x40] sm:$0xff]
        %v292 = vld [vmem:[#allocation5 + $0x48] sm:$0xff]
        %v293 = vld [vmem:[#allocation5 + $0x50] sm:$0xff]
        %v294 = vld [vmem:[#allocation5 + $0x58] sm:$0xff]
        %v295 = vld [vmem:[#allocation5 + $0x60] sm:$0xff]
        %v296 = vld [vmem:[#allocation5 + $0x68] sm:$0xff]
        %v297 = vld [vmem:[#allocation5 + $0x70] sm:$0xff]
        %v298 = vld [vmem:[#allocation5 + $0x78] sm:$0xff]
        %299 = vmatprep.subr.mxu0 0.0
        %300 = vmatpush1.msra.mxu0 %v298
        %301 = vmatprep.subr.mxu0 0.0
        %302 = vmatpush1.msra.mxu0 %v297
        %303 = vmatprep.subr.mxu0 0.0
        %304 = vmatpush1.msra.mxu0 %v296
        %305 = vmatprep.subr.mxu0 0.0
        %306 = vmatpush1.msra.mxu0 %v295
        %307 = vmatprep.subr.mxu0 0.0
        %308 = vmatpush1.msra.mxu0 %v294
        %309 = vmatprep.subr.mxu0 0.0
        %310 = vmatpush1.msra.mxu0 %v293
        %311 = vmatprep.subr.mxu0 0.0
        %312 = vmatpush1.msra.mxu0 %v292
        %313 = vmatprep.subr.mxu0 0.0
        %314 = vmatpush1.msra.mxu0 %v291
        %315 = vmatprep.subr.mxu0 0.0
        %316 = vmatpush1.msra.mxu0 %v290
        %317 = vmatprep.subr.mxu0 0.0
        %318 = vmatpush1.msra.mxu0 %v289
        %319 = vmatprep.subr.mxu0 0.0
        %320 = vmatpush1.msra.mxu0 %v288
        %321 = vmatprep.subr.mxu0 0.0
        %322 = vmatpush1.msra.mxu0 %v287
        %323 = vmatprep.subr.mxu0 0.0
        %324 = vmatpush1.msra.mxu0 %v286
        %325 = vmatprep.subr.mxu0 0.0
        %326 = vmatpush1.msra.mxu0 %v285
        %327 = vmatprep.subr.mxu0 0.0
        %328 = vmatpush1.msra.mxu0 %v284
        %329 = vmatprep.subr.mxu0 0.0
        %330 = vmatpush1.msra.mxu0 %v283
        %331 = vmatprep.subr.mxu0 0.0
        %332 = vmatpush2.msra.mxu0 0.0
        %333 = vmatprep.subr.mxu0 0.0
        %334 = vmatpush2.msra.mxu0 0.0
        %335 = vmatprep.subr.mxu0 0.0
        %336 = vmatpush2.msra.mxu0 0.0
        %337 = vmatprep.subr.mxu0 0.0
        %338 = vmatpush2.msra.mxu0 0.0
        %339 = vmatprep.subr.mxu0 0.0
        %340 = vmatpush2.msra.mxu0 0.0
        %341 = vmatprep.subr.mxu0 0.0
        %342 = vmatpush2.msra.mxu0 0.0
        %343 = vmatprep.subr.mxu0 0.0
        %344 = vmatpush2.msra.mxu0 0.0
        %345 = vmatprep.subr.mxu0 0.0
        %346 = vmatpush2.msra.mxu0 0.0
        %347 = vmatprep.subr.mxu0 0.0
        %348 = vmatpush2.msra.mxu0 0.0
        %349 = vmatprep.subr.mxu0 0.0
        %350 = vmatpush2.msra.mxu0 0.0
        %351 = vmatprep.subr.mxu0 0.0
        %352 = vmatpush2.msra.mxu0 0.0
        %353 = vmatprep.subr.mxu0 0.0
        %354 = vmatpush2.msra.mxu0 0.0
        %355 = vmatprep.subr.mxu0 0.0
        %356 = vmatpush2.msra.mxu0 0.0
        %357 = vmatprep.subr.mxu0 0.0
        %358 = vmatpush2.msra.mxu0 0.0
        %359 = vmatprep.subr.mxu0 0.0
        %360 = vmatpush2.msra.mxu0 0.0
        %361 = vmatprep.subr.mxu0 0.0
        %362 = vmatpush2.msra.mxu0 0.0
        %363 = vmatprep.mubr.f32.mxu0 0.0
        %364 = vmatmul.mubr.f32.gmra.mxu0 %v246
        %v365 = vpop.f32.mrf.mxu0
        %v366 = vadd.f32 0.0, %v365
        %v367 = vpop.f32.mrf.mxu0
        %368 = vmatprep.mubr.f32.mxu0 0.0
        %369 = vmatmul.mubr.f32.gmra.mxu0 %v247
        %v370 = vpop.f32.mrf.mxu0
        %v371 = vadd.f32 0.0, %v370
        %v372 = vpop.f32.mrf.mxu0
        %373 = vmatprep.mubr.f32.mxu0 0.0
        %374 = vmatmul.mubr.f32.gmra.mxu0 %v248
        %v375 = vpop.f32.mrf.mxu0
        %v376 = vadd.f32 0.0, %v375
        %v377 = vpop.f32.mrf.mxu0
        %378 = vmatprep.mubr.f32.mxu0 0.0
        %379 = vmatmul.mubr.f32.gmra.mxu0 %v249
        %v380 = vpop.f32.mrf.mxu0
        %v381 = vadd.f32 0.0, %v380
        %v382 = vpop.f32.mrf.mxu0
        %383 = vmatprep.mubr.f32.mxu0 0.0
        %384 = vmatmul.mubr.f32.gmra.mxu0 %v250
        %v385 = vpop.f32.mrf.mxu0
        %v386 = vadd.f32 0.0, %v385
        %v387 = vpop.f32.mrf.mxu0
        %388 = vmatprep.mubr.f32.mxu0 0.0
        %389 = vmatmul.mubr.f32.gmra.mxu0 %v251
        %v390 = vpop.f32.mrf.mxu0
        %v391 = vadd.f32 0.0, %v390
        %v392 = vpop.f32.mrf.mxu0
        %393 = vmatprep.mubr.f32.mxu0 0.0
        %394 = vmatmul.mubr.f32.gmra.mxu0 %v252
        %v395 = vpop.f32.mrf.mxu0
        %v396 = vadd.f32 0.0, %v395
        %v397 = vpop.f32.mrf.mxu0
        %398 = vmatprep.mubr.f32.mxu0 0.0
        %399 = vmatmul.mubr.f32.gmra.mxu0 %v253
        %v400 = vpop.f32.mrf.mxu0
        %v401 = vadd.f32 0.0, %v400
        %v402 = vpop.f32.mrf.mxu0
        %403 = vmatprep.mubr.f32.mxu0 0.0
        %404 = vmatmul.mubr.f32.gmra.mxu0 %v254
        %v405 = vpop.f32.mrf.mxu0
        %v406 = vadd.f32 0.0, %v405
        %v407 = vpop.f32.mrf.mxu0
        %408 = vmatprep.mubr.f32.mxu0 0.0
        %409 = vmatmul.mubr.f32.gmra.mxu0 %v255
        %v410 = vpop.f32.mrf.mxu0
        %v411 = vadd.f32 0.0, %v410
        %v412 = vpop.f32.mrf.mxu0
        %413 = vmatprep.mubr.f32.mxu0 0.0
        %414 = vmatmul.mubr.f32.gmra.mxu0 %v256
        %v415 = vpop.f32.mrf.mxu0
        %v416 = vadd.f32 0.0, %v415
        %v417 = vpop.f32.mrf.mxu0
        %418 = vmatprep.mubr.f32.mxu0 0.0
        %419 = vmatmul.mubr.f32.gmra.mxu0 %v257
        %v420 = vpop.f32.mrf.mxu0
        %v421 = vadd.f32 0.0, %v420
        %v422 = vpop.f32.mrf.mxu0
        %423 = vmatprep.mubr.f32.mxu0 0.0
        %424 = vmatmul.mubr.f32.gmra.mxu0 %v258
        %v425 = vpop.f32.mrf.mxu0
        %v426 = vadd.f32 0.0, %v425
        %v427 = vpop.f32.mrf.mxu0
        %428 = vmatprep.mubr.f32.mxu0 0.0
        %429 = vmatmul.mubr.f32.gmra.mxu0 %v259
        %v430 = vpop.f32.mrf.mxu0
        %v431 = vadd.f32 0.0, %v430
        %v432 = vpop.f32.mrf.mxu0
        %433 = vmatprep.mubr.f32.mxu0 0.0
        %434 = vmatmul.mubr.f32.gmra.mxu0 %v260
        %v435 = vpop.f32.mrf.mxu0
        %v436 = vadd.f32 0.0, %v435
        %v437 = vpop.f32.mrf.mxu0
        %438 = vmatprep.mubr.f32.mxu0 0.0
        %439 = vmatmul.mubr.f32.gmra.mxu0 %v261
        %v440 = vpop.f32.mrf.mxu0
        %v441 = vadd.f32 0.0, %v440
        %v442 = vpop.f32.mrf.mxu0
        %443 = vmatprep.mubr.f32.mxu0 0.0
        %444 = vmatmul.mubr.f32.gmra.mxu0 %v262
        %v445 = vpop.f32.mrf.mxu0
        %v446 = vadd.f32 0.0, %v445
        %v447 = vpop.f32.mrf.mxu0
        %448 = vmatprep.mubr.f32.mxu0 0.0
        %449 = vmatmul.mubr.f32.gmra.mxu0 %v263
        %v450 = vpop.f32.mrf.mxu0
        %v451 = vadd.f32 0.0, %v450
        %v452 = vpop.f32.mrf.mxu0
        %453 = vmatprep.mubr.f32.mxu0 0.0
        %454 = vmatmul.mubr.f32.gmra.mxu0 %v264
        %v455 = vpop.f32.mrf.mxu0
        %v456 = vadd.f32 0.0, %v455
        %v457 = vpop.f32.mrf.mxu0
        %458 = vmatprep.mubr.f32.mxu0 0.0
        %459 = vmatmul.mubr.f32.gmra.mxu0 %v265
        %v460 = vpop.f32.mrf.mxu0
        %v461 = vadd.f32 0.0, %v460
        %v462 = vpop.f32.mrf.mxu0
        %463 = vmatprep.mubr.f32.mxu0 0.0
        %464 = vmatmul.mubr.f32.gmra.mxu0 %v266
        %v465 = vpop.f32.mrf.mxu0
        %v466 = vadd.f32 0.0, %v465
        %v467 = vpop.f32.mrf.mxu0
        %468 = vmatprep.mubr.f32.mxu0 0.0
        %469 = vmatmul.mubr.f32.gmra.mxu0 %v267
        %v470 = vpop.f32.mrf.mxu0
        %v471 = vadd.f32 0.0, %v470
        %v472 = vpop.f32.mrf.mxu0
        %473 = vmatprep.mubr.f32.mxu0 0.0
        %474 = vmatmul.mubr.f32.gmra.mxu0 %v268
        %v475 = vpop.f32.mrf.mxu0
        %v476 = vadd.f32 0.0, %v475
        %v477 = vpop.f32.mrf.mxu0
        %478 = vmatprep.mubr.f32.mxu0 0.0
        %479 = vmatmul.mubr.f32.gmra.mxu0 %v269
        %v480 = vpop.f32.mrf.mxu0
        %v481 = vadd.f32 0.0, %v480
        %v482 = vpop.f32.mrf.mxu0
        %483 = vmatprep.mubr.f32.mxu0 0.0
        %484 = vmatmul.mubr.f32.gmra.mxu0 %v270
        %v485 = vpop.f32.mrf.mxu0
        %v486 = vadd.f32 0.0, %v485
        %v487 = vpop.f32.mrf.mxu0
        %488 = vmatprep.mubr.f32.mxu0 0.0
        %489 = vmatmul.mubr.f32.gmra.mxu0 %v271
        %v490 = vpop.f32.mrf.mxu0
        %v491 = vadd.f32 0.0, %v490
        %v492 = vpop.f32.mrf.mxu0
        %493 = vmatprep.mubr.f32.mxu0 0.0
        %494 = vmatmul.mubr.f32.gmra.mxu0 %v272
        %v495 = vpop.f32.mrf.mxu0
        %v496 = vadd.f32 0.0, %v495
        %v497 = vpop.f32.mrf.mxu0
        %498 = vmatprep.mubr.f32.mxu0 0.0
        %499 = vmatmul.mubr.f32.gmra.mxu0 %v273
        %v500 = vpop.f32.mrf.mxu0
        %v501 = vadd.f32 0.0, %v500
        %v502 = vpop.f32.mrf.mxu0
        %503 = vmatprep.mubr.f32.mxu0 0.0
        %504 = vmatmul.mubr.f32.gmra.mxu0 %v274
        %v505 = vpop.f32.mrf.mxu0
        %v506 = vadd.f32 0.0, %v505
        %v507 = vpop.f32.mrf.mxu0
        %508 = vmatprep.mubr.f32.mxu0 0.0
        %509 = vmatmul.mubr.f32.gmra.mxu0 %v275
        %v510 = vpop.f32.mrf.mxu0
        %v511 = vadd.f32 0.0, %v510
        %v512 = vpop.f32.mrf.mxu0
        %513 = vdwg.mxu0
        %514 = vst [vmem:[#allocation4] sm:$0xff] %v366
        %515 = vst [vmem:[#allocation4 + $0x8] sm:$0xff] %v371
        %516 = vst [vmem:[#allocation4 + $0x10] sm:$0xff] %v376
        %517 = vst [vmem:[#allocation4 + $0x18] sm:$0xff] %v381
        %518 = vst [vmem:[#allocation4 + $0x20] sm:$0xff] %v386
        %519 = vst [vmem:[#allocation4 + $0x28] sm:$0xff] %v391
        %520 = vst [vmem:[#allocation4 + $0x30] sm:$0xff] %v396
        %521 = vst [vmem:[#allocation4 + $0x38] sm:$0xff] %v401
        %522 = vst [vmem:[#allocation4 + $0x40] sm:$0xff] %v406
        %523 = vst [vmem:[#allocation4 + $0x48] sm:$0xff] %v411
        %524 = vst [vmem:[#allocation4 + $0x50] sm:$0xff] %v416
        %525 = vst [vmem:[#allocation4 + $0x58] sm:$0xff] %v421
        %526 = vst [vmem:[#allocation4 + $0x60] sm:$0xff] %v426
        %527 = vst [vmem:[#allocation4 + $0x68] sm:$0xff] %v431
        %528 = vst [vmem:[#allocation4 + $0x70] sm:$0xff] %v436
        %529 = vst [vmem:[#allocation4 + $0x78] sm:$0xff] %v441
        %530 = vst [vmem:[#allocation4 + $0x80] sm:$0xff] %v446
        %531 = vst [vmem:[#allocation4 + $0x88] sm:$0xff] %v451
        %532 = vst [vmem:[#allocation4 + $0x90] sm:$0xff] %v456
        %533 = vst [vmem:[#allocation4 + $0x98] sm:$0xff] %v461
        %534 = vst [vmem:[#allocation4 + $0xa0] sm:$0xff] %v466
        %535 = vst [vmem:[#allocation4 + $0xa8] sm:$0xff] %v471
        %536 = vst [vmem:[#allocation4 + $0xb0] sm:$0xff] %v476
        %537 = vst [vmem:[#allocation4 + $0xb8] sm:$0xff] %v481
        %538 = vst [vmem:[#allocation4 + $0xc0] sm:$0xff] %v486
        %539 = vst [vmem:[#allocation4 + $0xc8] sm:$0xff] %v491
        %540 = vst [vmem:[#allocation4 + $0xd0] sm:$0xff] %v496
        %541 = vst [vmem:[#allocation4 + $0xd8] sm:$0xff] %v501
        %542 = vst [vmem:[#allocation4 + $0xe0] sm:$0xff] %v506
        %543 = vst [vmem:[#allocation4 + $0xe8] sm:$0xff] %v511
        %s544 = scalar_lea.vmem [#allocation5], 384
        %v545 = vld [vmem:[%s544] sm:$0xff]
        %v546 = vld [vmem:[%s544 + $0x8] sm:$0xff]
        %v547 = vld [vmem:[%s544 + $0x10] sm:$0xff]
        %v548 = vld [vmem:[%s544 + $0x18] sm:$0xff]
        %v549 = vld [vmem:[%s544 + $0x20] sm:$0xff]
        %v550 = vld [vmem:[%s544 + $0x28] sm:$0xff]
        %v551 = vld [vmem:[%s544 + $0x30] sm:$0xff]
        %v552 = vld [vmem:[%s544 + $0x38] sm:$0xff]
        %v553 = vld [vmem:[%s544 + $0x40] sm:$0xff]
        %v554 = vld [vmem:[%s544 + $0x48] sm:$0xff]
        %v555 = vld [vmem:[%s544 + $0x50] sm:$0xff]
        %v556 = vld [vmem:[%s544 + $0x58] sm:$0xff]
        %v557 = vld [vmem:[%s544 + $0x60] sm:$0xff]
        %v558 = vld [vmem:[%s544 + $0x68] sm:$0xff]
        %v559 = vld [vmem:[%s544 + $0x70] sm:$0xff]
        %v560 = vld [vmem:[%s544 + $0x78] sm:$0xff]
        %561 = vmatprep.subr.mxu0 0.0
        %562 = vmatpush1.msra.mxu0 %v560
        %563 = vmatprep.subr.mxu0 0.0
        %564 = vmatpush1.msra.mxu0 %v559
        %565 = vmatprep.subr.mxu0 0.0
        %566 = vmatpush1.msra.mxu0 %v558
        %567 = vmatprep.subr.mxu0 0.0
        %568 = vmatpush1.msra.mxu0 %v557
        %569 = vmatprep.subr.mxu0 0.0
        %570 = vmatpush1.msra.mxu0 %v556
        %571 = vmatprep.subr.mxu0 0.0
        %572 = vmatpush1.msra.mxu0 %v555
        %573 = vmatprep.subr.mxu0 0.0
        %574 = vmatpush1.msra.mxu0 %v554
        %575 = vmatprep.subr.mxu0 0.0
        %576 = vmatpush1.msra.mxu0 %v553
        %577 = vmatprep.subr.mxu0 0.0
        %578 = vmatpush1.msra.mxu0 %v552
        %579 = vmatprep.subr.mxu0 0.0
        %580 = vmatpush1.msra.mxu0 %v551
        %581 = vmatprep.subr.mxu0 0.0
        %582 = vmatpush1.msra.mxu0 %v550
        %583 = vmatprep.subr.mxu0 0.0
        %584 = vmatpush1.msra.mxu0 %v549
        %585 = vmatprep.subr.mxu0 0.0
        %586 = vmatpush1.msra.mxu0 %v548
        %587 = vmatprep.subr.mxu0 0.0
        %588 = vmatpush1.msra.mxu0 %v547
        %589 = vmatprep.subr.mxu0 0.0
        %590 = vmatpush1.msra.mxu0 %v546
        %591 = vmatprep.subr.mxu0 0.0
        %592 = vmatpush1.msra.mxu0 %v545
        %593 = vmatprep.subr.mxu0 0.0
        %594 = vmatpush2.msra.mxu0 0.0
        %595 = vmatprep.subr.mxu0 0.0
        %596 = vmatpush2.msra.mxu0 0.0
        %597 = vmatprep.subr.mxu0 0.0
        %598 = vmatpush2.msra.mxu0 0.0
        %599 = vmatprep.subr.mxu0 0.0
        %600 = vmatpush2.msra.mxu0 0.0
        %601 = vmatprep.subr.mxu0 0.0
        %602 = vmatpush2.msra.mxu0 0.0
        %603 = vmatprep.subr.mxu0 0.0
        %604 = vmatpush2.msra.mxu0 0.0
        %605 = vmatprep.subr.mxu0 0.0
        %606 = vmatpush2.msra.mxu0 0.0
        %607 = vmatprep.subr.mxu0 0.0
        %608 = vmatpush2.msra.mxu0 0.0
        %609 = vmatprep.subr.mxu0 0.0
        %610 = vmatpush2.msra.mxu0 0.0
        %611 = vmatprep.subr.mxu0 0.0
        %612 = vmatpush2.msra.mxu0 0.0
        %613 = vmatprep.subr.mxu0 0.0
        %614 = vmatpush2.msra.mxu0 0.0
        %615 = vmatprep.subr.mxu0 0.0
        %616 = vmatpush2.msra.mxu0 0.0
        %617 = vmatprep.subr.mxu0 0.0
        %618 = vmatpush2.msra.mxu0 0.0
        %619 = vmatprep.subr.mxu0 0.0
        %620 = vmatpush2.msra.mxu0 0.0
        %621 = vmatprep.subr.mxu0 0.0
        %622 = vmatpush2.msra.mxu0 0.0
        %623 = vmatprep.subr.mxu0 0.0
        %624 = vmatpush2.msra.mxu0 0.0
        %625 = vmatprep.mubr.f32.mxu0 0.0
        %626 = vmatmul.mubr.f32.gmra.mxu0 %v249
        %v627 = vpop.f32.mrf.mxu0
        %v628 = vadd.f32 0.0, %v627
        %v629 = vpop.f32.mrf.mxu0
        %630 = vmatprep.mubr.f32.mxu0 0.0
        %631 = vmatmul.mubr.f32.gmra.mxu0 %v250
        %v632 = vpop.f32.mrf.mxu0
        %v633 = vadd.f32 0.0, %v632
        %v634 = vpop.f32.mrf.mxu0
        %635 = vmatprep.mubr.f32.mxu0 0.0
        %636 = vmatmul.mubr.f32.gmra.mxu0 %v251
        %v637 = vpop.f32.mrf.mxu0
        %v638 = vadd.f32 0.0, %v637
        %v639 = vpop.f32.mrf.mxu0
        %640 = vmatprep.mubr.f32.mxu0 0.0
        %641 = vmatmul.mubr.f32.gmra.mxu0 %v252
        %v642 = vpop.f32.mrf.mxu0
        %v643 = vadd.f32 0.0, %v642
        %v644 = vpop.f32.mrf.mxu0
        %645 = vmatprep.mubr.f32.mxu0 0.0
        %646 = vmatmul.mubr.f32.gmra.mxu0 %v253
        %v647 = vpop.f32.mrf.mxu0
        %v648 = vadd.f32 0.0, %v647
        %v649 = vpop.f32.mrf.mxu0
        %650 = vmatprep.mubr.f32.mxu0 0.0
        %651 = vmatmul.mubr.f32.gmra.mxu0 %v254
        %v652 = vpop.f32.mrf.mxu0
        %v653 = vadd.f32 0.0, %v652
        %v654 = vpop.f32.mrf.mxu0
        %655 = vmatprep.mubr.f32.mxu0 0.0
        %656 = vmatmul.mubr.f32.gmra.mxu0 %v255
        %v657 = vpop.f32.mrf.mxu0
        %v658 = vadd.f32 0.0, %v657
        %v659 = vpop.f32.mrf.mxu0
        %660 = vmatprep.mubr.f32.mxu0 0.0
        %661 = vmatmul.mubr.f32.gmra.mxu0 %v256
        %v662 = vpop.f32.mrf.mxu0
        %v663 = vadd.f32 0.0, %v662
        %v664 = vpop.f32.mrf.mxu0
        %665 = vmatprep.mubr.f32.mxu0 0.0
        %666 = vmatmul.mubr.f32.gmra.mxu0 %v257
        %v667 = vpop.f32.mrf.mxu0
        %v668 = vadd.f32 0.0, %v667
        %v669 = vpop.f32.mrf.mxu0
        %670 = vmatprep.mubr.f32.mxu0 0.0
        %671 = vmatmul.mubr.f32.gmra.mxu0 %v258
        %v672 = vpop.f32.mrf.mxu0
        %v673 = vadd.f32 0.0, %v672
        %v674 = vpop.f32.mrf.mxu0
        %675 = vmatprep.mubr.f32.mxu0 0.0
        %676 = vmatmul.mubr.f32.gmra.mxu0 %v259
        %v677 = vpop.f32.mrf.mxu0
        %v678 = vadd.f32 0.0, %v677
        %v679 = vpop.f32.mrf.mxu0
        %680 = vmatprep.mubr.f32.mxu0 0.0
        %681 = vmatmul.mubr.f32.gmra.mxu0 %v260
        %v682 = vpop.f32.mrf.mxu0
        %v683 = vadd.f32 0.0, %v682
        %v684 = vpop.f32.mrf.mxu0
        %685 = vmatprep.mubr.f32.mxu0 0.0
        %686 = vmatmul.mubr.f32.gmra.mxu0 %v261
        %v687 = vpop.f32.mrf.mxu0
        %v688 = vadd.f32 0.0, %v687
        %v689 = vpop.f32.mrf.mxu0
        %690 = vmatprep.mubr.f32.mxu0 0.0
        %691 = vmatmul.mubr.f32.gmra.mxu0 %v262
        %v692 = vpop.f32.mrf.mxu0
        %v693 = vadd.f32 0.0, %v692
        %v694 = vpop.f32.mrf.mxu0
        %695 = vmatprep.mubr.f32.mxu0 0.0
        %696 = vmatmul.mubr.f32.gmra.mxu0 %v263
        %v697 = vpop.f32.mrf.mxu0
        %v698 = vadd.f32 0.0, %v697
        %v699 = vpop.f32.mrf.mxu0
        %700 = vmatprep.mubr.f32.mxu0 0.0
        %701 = vmatmul.mubr.f32.gmra.mxu0 %v264
        %v702 = vpop.f32.mrf.mxu0
        %v703 = vadd.f32 0.0, %v702
        %v704 = vpop.f32.mrf.mxu0
        %705 = vmatprep.mubr.f32.mxu0 0.0
        %706 = vmatmul.mubr.f32.gmra.mxu0 %v265
        %v707 = vpop.f32.mrf.mxu0
        %v708 = vadd.f32 0.0, %v707
        %v709 = vpop.f32.mrf.mxu0
        %710 = vmatprep.mubr.f32.mxu0 0.0
        %711 = vmatmul.mubr.f32.gmra.mxu0 %v266
        %v712 = vpop.f32.mrf.mxu0
        %v713 = vadd.f32 0.0, %v712
        %v714 = vpop.f32.mrf.mxu0
        %715 = vmatprep.mubr.f32.mxu0 0.0
        %716 = vmatmul.mubr.f32.gmra.mxu0 %v267
        %v717 = vpop.f32.mrf.mxu0
        %v718 = vadd.f32 0.0, %v717
        %v719 = vpop.f32.mrf.mxu0
        %720 = vmatprep.mubr.f32.mxu0 0.0
        %721 = vmatmul.mubr.f32.gmra.mxu0 %v268
        %v722 = vpop.f32.mrf.mxu0
        %v723 = vadd.f32 0.0, %v722
        %v724 = vpop.f32.mrf.mxu0
        %725 = vmatprep.mubr.f32.mxu0 0.0
        %726 = vmatmul.mubr.f32.gmra.mxu0 %v269
        %v727 = vpop.f32.mrf.mxu0
        %v728 = vadd.f32 0.0, %v727
        %v729 = vpop.f32.mrf.mxu0
        %730 = vmatprep.mubr.f32.mxu0 0.0
        %731 = vmatmul.mubr.f32.gmra.mxu0 %v270
        %v732 = vpop.f32.mrf.mxu0
        %v733 = vadd.f32 0.0, %v732
        %v734 = vpop.f32.mrf.mxu0
        %735 = vmatprep.mubr.f32.mxu0 0.0
        %736 = vmatmul.mubr.f32.gmra.mxu0 %v271
        %v737 = vpop.f32.mrf.mxu0
        %v738 = vadd.f32 0.0, %v737
        %v739 = vpop.f32.mrf.mxu0
        %740 = vmatprep.mubr.f32.mxu0 0.0
        %741 = vmatmul.mubr.f32.gmra.mxu0 %v272
        %v742 = vpop.f32.mrf.mxu0
        %v743 = vadd.f32 0.0, %v742
        %v744 = vpop.f32.mrf.mxu0
        %745 = vmatprep.mubr.f32.mxu0 0.0
        %746 = vmatmul.mubr.f32.gmra.mxu0 %v273
        %v747 = vpop.f32.mrf.mxu0
        %v748 = vadd.f32 0.0, %v747
        %v749 = vpop.f32.mrf.mxu0
        %750 = vmatprep.mubr.f32.mxu0 0.0
        %751 = vmatmul.mubr.f32.gmra.mxu0 %v274
        %v752 = vpop.f32.mrf.mxu0
        %v753 = vadd.f32 0.0, %v752
        %v754 = vpop.f32.mrf.mxu0
        %755 = vmatprep.mubr.f32.mxu0 0.0
        %756 = vmatmul.mubr.f32.gmra.mxu0 %v275
        %v757 = vpop.f32.mrf.mxu0
        %v758 = vadd.f32 0.0, %v757
        %v759 = vpop.f32.mrf.mxu0
        %760 = vmatprep.mubr.f32.mxu0 0.0
        %761 = vmatmul.mubr.f32.gmra.mxu0 %v276
        %v762 = vpop.f32.mrf.mxu0
        %v763 = vadd.f32 0.0, %v762
        %v764 = vpop.f32.mrf.mxu0
        %765 = vmatprep.mubr.f32.mxu0 0.0
        %766 = vmatmul.mubr.f32.gmra.mxu0 %v277
        %v767 = vpop.f32.mrf.mxu0
        %v768 = vadd.f32 0.0, %v767
        %v769 = vpop.f32.mrf.mxu0
        %770 = vmatprep.mubr.f32.mxu0 0.0
        %771 = vmatmul.mubr.f32.gmra.mxu0 %v278
        %v772 = vpop.f32.mrf.mxu0
        %v773 = vadd.f32 0.0, %v772
        %v774 = vpop.f32.mrf.mxu0
        %775 = vdwg.mxu0
        %v776 = vld [vmem:[#allocation4] sm:$0xff]
        %v777 = vld [vmem:[#allocation4 + $0x8] sm:$0xff]
        %v778 = vld [vmem:[#allocation4 + $0x10] sm:$0xff]
        %v779 = vld [vmem:[#allocation4 + $0x18] sm:$0xff]
        %v780 = vld [vmem:[#allocation4 + $0x20] sm:$0xff]
        %v781 = vld [vmem:[#allocation4 + $0x28] sm:$0xff]
        %v782 = vld [vmem:[#allocation4 + $0x30] sm:$0xff]
        %v783 = vld [vmem:[#allocation4 + $0x38] sm:$0xff]
        %v784 = vld [vmem:[#allocation4 + $0x40] sm:$0xff]
        %v785 = vld [vmem:[#allocation4 + $0x48] sm:$0xff]
        %v786 = vld [vmem:[#allocation4 + $0x50] sm:$0xff]
        %v787 = vld [vmem:[#allocation4 + $0x58] sm:$0xff]
        %v788 = vld [vmem:[#allocation4 + $0x60] sm:$0xff]
        %v789 = vld [vmem:[#allocation4 + $0x68] sm:$0xff]
        %v790 = vld [vmem:[#allocation4 + $0x70] sm:$0xff]
        %v791 = vld [vmem:[#allocation4 + $0x78] sm:$0xff]
        %v792 = vld [vmem:[#allocation4 + $0x80] sm:$0xff]
        %v793 = vld [vmem:[#allocation4 + $0x88] sm:$0xff]
        %v794 = vld [vmem:[#allocation4 + $0x90] sm:$0xff]
        %v795 = vld [vmem:[#allocation4 + $0x98] sm:$0xff]
        %v796 = vld [vmem:[#allocation4 + $0xa0] sm:$0xff]
        %v797 = vld [vmem:[#allocation4 + $0xa8] sm:$0xff]
        %v798 = vld [vmem:[#allocation4 + $0xb0] sm:$0xff]
        %v799 = vld [vmem:[#allocation4 + $0xb8] sm:$0xff]
        %v800 = vld [vmem:[#allocation4 + $0xc0] sm:$0xff]
        %v801 = vld [vmem:[#allocation4 + $0xc8] sm:$0xff]
        %v802 = vld [vmem:[#allocation4 + $0xd0] sm:$0xff]
        %v803 = vld [vmem:[#allocation4 + $0xd8] sm:$0xff]
        %v804 = vld [vmem:[#allocation4 + $0xe0] sm:$0xff]
        %v805 = vld [vmem:[#allocation4 + $0xe8] sm:$0xff]
        %v806 = vadd.f32 %v776, %v628
        %v807 = vadd.f32 %v777, %v633
        %v808 = vadd.f32 %v778, %v638
        %v809 = vadd.f32 %v779, %v643
        %v810 = vadd.f32 %v780, %v648
        %v811 = vadd.f32 %v781, %v653
        %v812 = vadd.f32 %v782, %v658
        %v813 = vadd.f32 %v783, %v663
        %v814 = vadd.f32 %v784, %v668
        %v815 = vadd.f32 %v785, %v673
        %v816 = vadd.f32 %v786, %v678
        %v817 = vadd.f32 %v787, %v683
        %v818 = vadd.f32 %v788, %v688
        %v819 = vadd.f32 %v789, %v693
        %v820 = vadd.f32 %v790, %v698
        %v821 = vadd.f32 %v791, %v703
        %v822 = vadd.f32 %v792, %v708
        %v823 = vadd.f32 %v793, %v713
        %v824 = vadd.f32 %v794, %v718
        %v825 = vadd.f32 %v795, %v723
        %v826 = vadd.f32 %v796, %v728
        %v827 = vadd.f32 %v797, %v733
        %v828 = vadd.f32 %v798, %v738
        %v829 = vadd.f32 %v799, %v743
        %v830 = vadd.f32 %v800, %v748
        %v831 = vadd.f32 %v801, %v753
        %v832 = vadd.f32 %v802, %v758
        %v833 = vadd.f32 %v803, %v763
        %v834 = vadd.f32 %v804, %v768
        %v835 = vadd.f32 %v805, %v773
        %836 = vst [vmem:[#allocation4] sm:$0xff] %v806
        %837 = vst [vmem:[#allocation4 + $0x8] sm:$0xff] %v807
        %838 = vst [vmem:[#allocation4 + $0x10] sm:$0xff] %v808
        %839 = vst [vmem:[#allocation4 + $0x18] sm:$0xff] %v809
        %840 = vst [vmem:[#allocation4 + $0x20] sm:$0xff] %v810
        %841 = vst [vmem:[#allocation4 + $0x28] sm:$0xff] %v811
        %842 = vst [vmem:[#allocation4 + $0x30] sm:$0xff] %v812
        %843 = vst [vmem:[#allocation4 + $0x38] sm:$0xff] %v813
        %844 = vst [vmem:[#allocation4 + $0x40] sm:$0xff] %v814
        %845 = vst [vmem:[#allocation4 + $0x48] sm:$0xff] %v815
        %846 = vst [vmem:[#allocation4 + $0x50] sm:$0xff] %v816
        %847 = vst [vmem:[#allocation4 + $0x58] sm:$0xff] %v817
        %848 = vst [vmem:[#allocation4 + $0x60] sm:$0xff] %v818
        %849 = vst [vmem:[#allocation4 + $0x68] sm:$0xff] %v819
        %850 = vst [vmem:[#allocation4 + $0x70] sm:$0xff] %v820
        %851 = vst [vmem:[#allocation4 + $0x78] sm:$0xff] %v821
        %852 = vst [vmem:[#allocation4 + $0x80] sm:$0xff] %v822
        %853 = vst [vmem:[#allocation4 + $0x88] sm:$0xff] %v823
        %854 = vst [vmem:[#allocation4 + $0x90] sm:$0xff] %v824
        %855 = vst [vmem:[#allocation4 + $0x98] sm:$0xff] %v825
        %856 = vst [vmem:[#allocation4 + $0xa0] sm:$0xff] %v826
        %857 = vst [vmem:[#allocation4 + $0xa8] sm:$0xff] %v827
        %858 = vst [vmem:[#allocation4 + $0xb0] sm:$0xff] %v828
        %859 = vst [vmem:[#allocation4 + $0xb8] sm:$0xff] %v829
        %860 = vst [vmem:[#allocation4 + $0xc0] sm:$0xff] %v830
        %861 = vst [vmem:[#allocation4 + $0xc8] sm:$0xff] %v831
        %862 = vst [vmem:[#allocation4 + $0xd0] sm:$0xff] %v832
        %863 = vst [vmem:[#allocation4 + $0xd8] sm:$0xff] %v833
        %864 = vst [vmem:[#allocation4 + $0xe0] sm:$0xff] %v834
        %865 = vst [vmem:[#allocation4 + $0xe8] sm:$0xff] %v835
        %s866 = scalar_lea.vmem [#allocation5], 768
        %v867 = vld [vmem:[%s866] sm:$0xff]
        %v868 = vld [vmem:[%s866 + $0x8] sm:$0xff]
        %v869 = vld [vmem:[%s866 + $0x10] sm:$0xff]
        %v870 = vld [vmem:[%s866 + $0x18] sm:$0xff]
        %v871 = vld [vmem:[%s866 + $0x20] sm:$0xff]
        %v872 = vld [vmem:[%s866 + $0x28] sm:$0xff]
        %v873 = vld [vmem:[%s866 + $0x30] sm:$0xff]
        %v874 = vld [vmem:[%s866 + $0x38] sm:$0xff]
        %v875 = vld [vmem:[%s866 + $0x40] sm:$0xff]
        %v876 = vld [vmem:[%s866 + $0x48] sm:$0xff]
        %v877 = vld [vmem:[%s866 + $0x50] sm:$0xff]
        %v878 = vld [vmem:[%s866 + $0x58] sm:$0xff]
        %v879 = vld [vmem:[%s866 + $0x60] sm:$0xff]
        %v880 = vld [vmem:[%s866 + $0x68] sm:$0xff]
        %v881 = vld [vmem:[%s866 + $0x70] sm:$0xff]
        %v882 = vld [vmem:[%s866 + $0x78] sm:$0xff]
        %883 = vmatprep.subr.mxu0 0.0
        %884 = vmatpush1.msra.mxu0 %v882
        %885 = vmatprep.subr.mxu0 0.0
        %886 = vmatpush1.msra.mxu0 %v881
        %887 = vmatprep.subr.mxu0 0.0
        %888 = vmatpush1.msra.mxu0 %v880
        %889 = vmatprep.subr.mxu0 0.0
        %890 = vmatpush1.msra.mxu0 %v879
        %891 = vmatprep.subr.mxu0 0.0
        %892 = vmatpush1.msra.mxu0 %v878
        %893 = vmatprep.subr.mxu0 0.0
        %894 = vmatpush1.msra.mxu0 %v877
        %895 = vmatprep.subr.mxu0 0.0
        %896 = vmatpush1.msra.mxu0 %v876
        %897 = vmatprep.subr.mxu0 0.0
        %898 = vmatpush1.msra.mxu0 %v875
        %899 = vmatprep.subr.mxu0 0.0
        %900 = vmatpush1.msra.mxu0 %v874
        %901 = vmatprep.subr.mxu0 0.0
        %902 = vmatpush1.msra.mxu0 %v873
        %903 = vmatprep.subr.mxu0 0.0
        %904 = vmatpush1.msra.mxu0 %v872
        %905 = vmatprep.subr.mxu0 0.0
        %906 = vmatpush1.msra.mxu0 %v871
        %907 = vmatprep.subr.mxu0 0.0
        %908 = vmatpush1.msra.mxu0 %v870
        %909 = vmatprep.subr.mxu0 0.0
        %910 = vmatpush1.msra.mxu0 %v869
        %911 = vmatprep.subr.mxu0 0.0
        %912 = vmatpush1.msra.mxu0 %v868
        %913 = vmatprep.subr.mxu0 0.0
        %914 = vmatpush1.msra.mxu0 %v867
        %915 = vmatprep.subr.mxu0 0.0
        %916 = vmatpush2.msra.mxu0 0.0
        %917 = vmatprep.subr.mxu0 0.0
        %918 = vmatpush2.msra.mxu0 0.0
        %919 = vmatprep.subr.mxu0 0.0
        %920 = vmatpush2.msra.mxu0 0.0
        %921 = vmatprep.subr.mxu0 0.0
        %922 = vmatpush2.msra.mxu0 0.0
        %923 = vmatprep.subr.mxu0 0.0
        %924 = vmatpush2.msra.mxu0 0.0
        %925 = vmatprep.subr.mxu0 0.0
        %926 = vmatpush2.msra.mxu0 0.0
        %927 = vmatprep.subr.mxu0 0.0
        %928 = vmatpush2.msra.mxu0 0.0
        %929 = vmatprep.subr.mxu0 0.0
        %930 = vmatpush2.msra.mxu0 0.0
        %931 = vmatprep.subr.mxu0 0.0
        %932 = vmatpush2.msra.mxu0 0.0
        %933 = vmatprep.subr.mxu0 0.0
        %934 = vmatpush2.msra.mxu0 0.0
        %935 = vmatprep.subr.mxu0 0.0
        %936 = vmatpush2.msra.mxu0 0.0
        %937 = vmatprep.subr.mxu0 0.0
        %938 = vmatpush2.msra.mxu0 0.0
        %939 = vmatprep.subr.mxu0 0.0
        %940 = vmatpush2.msra.mxu0 0.0
        %941 = vmatprep.subr.mxu0 0.0
        %942 = vmatpush2.msra.mxu0 0.0
        %943 = vmatprep.subr.mxu0 0.0
        %944 = vmatpush2.msra.mxu0 0.0
        %945 = vmatprep.subr.mxu0 0.0
        %946 = vmatpush2.msra.mxu0 0.0
        %947 = vmatprep.mubr.f32.mxu0 0.0
        %948 = vmatmul.mubr.f32.gmra.mxu0 %v252
        %v949 = vpop.f32.mrf.mxu0
        %v950 = vadd.f32 0.0, %v949
        %v951 = vpop.f32.mrf.mxu0
        %952 = vmatprep.mubr.f32.mxu0 0.0
        %953 = vmatmul.mubr.f32.gmra.mxu0 %v253
        %v954 = vpop.f32.mrf.mxu0
        %v955 = vadd.f32 0.0, %v954
        %v956 = vpop.f32.mrf.mxu0
        %957 = vmatprep.mubr.f32.mxu0 0.0
        %958 = vmatmul.mubr.f32.gmra.mxu0 %v254
        %v959 = vpop.f32.mrf.mxu0
        %v960 = vadd.f32 0.0, %v959
        %v961 = vpop.f32.mrf.mxu0
        %962 = vmatprep.mubr.f32.mxu0 0.0
        %963 = vmatmul.mubr.f32.gmra.mxu0 %v255
        %v964 = vpop.f32.mrf.mxu0
        %v965 = vadd.f32 0.0, %v964
        %v966 = vpop.f32.mrf.mxu0
        %967 = vmatprep.mubr.f32.mxu0 0.0
        %968 = vmatmul.mubr.f32.gmra.mxu0 %v256
        %v969 = vpop.f32.mrf.mxu0
        %v970 = vadd.f32 0.0, %v969
        %v971 = vpop.f32.mrf.mxu0
        %972 = vmatprep.mubr.f32.mxu0 0.0
        %973 = vmatmul.mubr.f32.gmra.mxu0 %v257
        %v974 = vpop.f32.mrf.mxu0
        %v975 = vadd.f32 0.0, %v974
        %v976 = vpop.f32.mrf.mxu0
        %977 = vmatprep.mubr.f32.mxu0 0.0
        %978 = vmatmul.mubr.f32.gmra.mxu0 %v258
        %v979 = vpop.f32.mrf.mxu0
        %v980 = vadd.f32 0.0, %v979
        %v981 = vpop.f32.mrf.mxu0
        %982 = vmatprep.mubr.f32.mxu0 0.0
        %983 = vmatmul.mubr.f32.gmra.mxu0 %v259
        %v984 = vpop.f32.mrf.mxu0
        %v985 = vadd.f32 0.0, %v984
        %v986 = vpop.f32.mrf.mxu0
        %987 = vmatprep.mubr.f32.mxu0 0.0
        %988 = vmatmul.mubr.f32.gmra.mxu0 %v260
        %v989 = vpop.f32.mrf.mxu0
        %v990 = vadd.f32 0.0, %v989
        %v991 = vpop.f32.mrf.mxu0
        %992 = vmatprep.mubr.f32.mxu0 0.0
        %993 = vmatmul.mubr.f32.gmra.mxu0 %v261
        %v994 = vpop.f32.mrf.mxu0
        %v995 = vadd.f32 0.0, %v994
        %v996 = vpop.f32.mrf.mxu0
        %997 = vmatprep.mubr.f32.mxu0 0.0
        %998 = vmatmul.mubr.f32.gmra.mxu0 %v262
        %v999 = vpop.f32.mrf.mxu0
        %v1000 = vadd.f32 0.0, %v999
        %v1001 = vpop.f32.mrf.mxu0
        %1002 = vmatprep.mubr.f32.mxu0 0.0
        %1003 = vmatmul.mubr.f32.gmra.mxu0 %v263
        %v1004 = vpop.f32.mrf.mxu0
        %v1005 = vadd.f32 0.0, %v1004
        %v1006 = vpop.f32.mrf.mxu0
        %1007 = vmatprep.mubr.f32.mxu0 0.0
        %1008 = vmatmul.mubr.f32.gmra.mxu0 %v264
        %v1009 = vpop.f32.mrf.mxu0
        %v1010 = vadd.f32 0.0, %v1009
        %v1011 = vpop.f32.mrf.mxu0
        %1012 = vmatprep.mubr.f32.mxu0 0.0
        %1013 = vmatmul.mubr.f32.gmra.mxu0 %v265
        %v1014 = vpop.f32.mrf.mxu0
        %v1015 = vadd.f32 0.0, %v1014
        %v1016 = vpop.f32.mrf.mxu0
        %1017 = vmatprep.mubr.f32.mxu0 0.0
        %1018 = vmatmul.mubr.f32.gmra.mxu0 %v266
        %v1019 = vpop.f32.mrf.mxu0
        %v1020 = vadd.f32 0.0, %v1019
        %v1021 = vpop.f32.mrf.mxu0
        %1022 = vmatprep.mubr.f32.mxu0 0.0
        %1023 = vmatmul.mubr.f32.gmra.mxu0 %v267
        %v1024 = vpop.f32.mrf.mxu0
        %v1025 = vadd.f32 0.0, %v1024
        %v1026 = vpop.f32.mrf.mxu0
        %1027 = vmatprep.mubr.f32.mxu0 0.0
        %1028 = vmatmul.mubr.f32.gmra.mxu0 %v268
        %v1029 = vpop.f32.mrf.mxu0
        %v1030 = vadd.f32 0.0, %v1029
        %v1031 = vpop.f32.mrf.mxu0
        %1032 = vmatprep.mubr.f32.mxu0 0.0
        %1033 = vmatmul.mubr.f32.gmra.mxu0 %v269
        %v1034 = vpop.f32.mrf.mxu0
        %v1035 = vadd.f32 0.0, %v1034
        %v1036 = vpop.f32.mrf.mxu0
        %1037 = vmatprep.mubr.f32.mxu0 0.0
        %1038 = vmatmul.mubr.f32.gmra.mxu0 %v270
        %v1039 = vpop.f32.mrf.mxu0
        %v1040 = vadd.f32 0.0, %v1039
        %v1041 = vpop.f32.mrf.mxu0
        %1042 = vmatprep.mubr.f32.mxu0 0.0
        %1043 = vmatmul.mubr.f32.gmra.mxu0 %v271
        %v1044 = vpop.f32.mrf.mxu0
        %v1045 = vadd.f32 0.0, %v1044
        %v1046 = vpop.f32.mrf.mxu0
        %1047 = vmatprep.mubr.f32.mxu0 0.0
        %1048 = vmatmul.mubr.f32.gmra.mxu0 %v272
        %v1049 = vpop.f32.mrf.mxu0
        %v1050 = vadd.f32 0.0, %v1049
        %v1051 = vpop.f32.mrf.mxu0
        %1052 = vmatprep.mubr.f32.mxu0 0.0
        %1053 = vmatmul.mubr.f32.gmra.mxu0 %v273
        %v1054 = vpop.f32.mrf.mxu0
        %v1055 = vadd.f32 0.0, %v1054
        %v1056 = vpop.f32.mrf.mxu0
        %1057 = vmatprep.mubr.f32.mxu0 0.0
        %1058 = vmatmul.mubr.f32.gmra.mxu0 %v274
        %v1059 = vpop.f32.mrf.mxu0
        %v1060 = vadd.f32 0.0, %v1059
        %v1061 = vpop.f32.mrf.mxu0
        %1062 = vmatprep.mubr.f32.mxu0 0.0
        %1063 = vmatmul.mubr.f32.gmra.mxu0 %v275
        %v1064 = vpop.f32.mrf.mxu0
        %v1065 = vadd.f32 0.0, %v1064
        %v1066 = vpop.f32.mrf.mxu0
        %1067 = vmatprep.mubr.f32.mxu0 0.0
        %1068 = vmatmul.mubr.f32.gmra.mxu0 %v276
        %v1069 = vpop.f32.mrf.mxu0
        %v1070 = vadd.f32 0.0, %v1069
        %v1071 = vpop.f32.mrf.mxu0
        %1072 = vmatprep.mubr.f32.mxu0 0.0
        %1073 = vmatmul.mubr.f32.gmra.mxu0 %v277
        %v1074 = vpop.f32.mrf.mxu0
        %v1075 = vadd.f32 0.0, %v1074
        %v1076 = vpop.f32.mrf.mxu0
        %1077 = vmatprep.mubr.f32.mxu0 0.0
        %1078 = vmatmul.mubr.f32.gmra.mxu0 %v278
        %v1079 = vpop.f32.mrf.mxu0
        %v1080 = vadd.f32 0.0, %v1079
        %v1081 = vpop.f32.mrf.mxu0
        %1082 = vmatprep.mubr.f32.mxu0 0.0
        %1083 = vmatmul.mubr.f32.gmra.mxu0 %v279
        %v1084 = vpop.f32.mrf.mxu0
        %v1085 = vadd.f32 0.0, %v1084
        %v1086 = vpop.f32.mrf.mxu0
        %1087 = vmatprep.mubr.f32.mxu0 0.0
        %1088 = vmatmul.mubr.f32.gmra.mxu0 %v280
        %v1089 = vpop.f32.mrf.mxu0
        %v1090 = vadd.f32 0.0, %v1089
        %v1091 = vpop.f32.mrf.mxu0
        %1092 = vmatprep.mubr.f32.mxu0 0.0
        %1093 = vmatmul.mubr.f32.gmra.mxu0 %v281
        %v1094 = vpop.f32.mrf.mxu0
        %v1095 = vadd.f32 0.0, %v1094
        %v1096 = vpop.f32.mrf.mxu0
        %1097 = vdwg.mxu0
        %v1098 = vld [vmem:[#allocation4] sm:$0xff]
        %v1099 = vld [vmem:[#allocation4 + $0x8] sm:$0xff]
        %v1100 = vld [vmem:[#allocation4 + $0x10] sm:$0xff]
        %v1101 = vld [vmem:[#allocation4 + $0x18] sm:$0xff]
        %v1102 = vld [vmem:[#allocation4 + $0x20] sm:$0xff]
        %v1103 = vld [vmem:[#allocation4 + $0x28] sm:$0xff]
        %v1104 = vld [vmem:[#allocation4 + $0x30] sm:$0xff]
        %v1105 = vld [vmem:[#allocation4 + $0x38] sm:$0xff]
        %v1106 = vld [vmem:[#allocation4 + $0x40] sm:$0xff]
        %v1107 = vld [vmem:[#allocation4 + $0x48] sm:$0xff]
        %v1108 = vld [vmem:[#allocation4 + $0x50] sm:$0xff]
        %v1109 = vld [vmem:[#allocation4 + $0x58] sm:$0xff]
        %v1110 = vld [vmem:[#allocation4 + $0x60] sm:$0xff]
        %v1111 = vld [vmem:[#allocation4 + $0x68] sm:$0xff]
        %v1112 = vld [vmem:[#allocation4 + $0x70] sm:$0xff]
        %v1113 = vld [vmem:[#allocation4 + $0x78] sm:$0xff]
        %v1114 = vld [vmem:[#allocation4 + $0x80] sm:$0xff]
        %v1115 = vld [vmem:[#allocation4 + $0x88] sm:$0xff]
        %v1116 = vld [vmem:[#allocation4 + $0x90] sm:$0xff]
        %v1117 = vld [vmem:[#allocation4 + $0x98] sm:$0xff]
        %v1118 = vld [vmem:[#allocation4 + $0xa0] sm:$0xff]
        %v1119 = vld [vmem:[#allocation4 + $0xa8] sm:$0xff]
        %v1120 = vld [vmem:[#allocation4 + $0xb0] sm:$0xff]
        %v1121 = vld [vmem:[#allocation4 + $0xb8] sm:$0xff]
        %v1122 = vld [vmem:[#allocation4 + $0xc0] sm:$0xff]
        %v1123 = vld [vmem:[#allocation4 + $0xc8] sm:$0xff]
        %v1124 = vld [vmem:[#allocation4 + $0xd0] sm:$0xff]
        %v1125 = vld [vmem:[#allocation4 + $0xd8] sm:$0xff]
        %v1126 = vld [vmem:[#allocation4 + $0xe0] sm:$0xff]
        %v1127 = vld [vmem:[#allocation4 + $0xe8] sm:$0xff]
        %v1128 = vadd.f32 %v1098, %v950
        %v1129 = vadd.f32 %v1099, %v955
        %v1130 = vadd.f32 %v1100, %v960
        %v1131 = vadd.f32 %v1101, %v965
        %v1132 = vadd.f32 %v1102, %v970
        %v1133 = vadd.f32 %v1103, %v975
        %v1134 = vadd.f32 %v1104, %v980
        %v1135 = vadd.f32 %v1105, %v985
        %v1136 = vadd.f32 %v1106, %v990
        %v1137 = vadd.f32 %v1107, %v995
        %v1138 = vadd.f32 %v1108, %v1000
        %v1139 = vadd.f32 %v1109, %v1005
        %v1140 = vadd.f32 %v1110, %v1010
        %v1141 = vadd.f32 %v1111, %v1015
        %v1142 = vadd.f32 %v1112, %v1020
        %v1143 = vadd.f32 %v1113, %v1025
        %v1144 = vadd.f32 %v1114, %v1030
        %v1145 = vadd.f32 %v1115, %v1035
        %v1146 = vadd.f32 %v1116, %v1040
        %v1147 = vadd.f32 %v1117, %v1045
        %v1148 = vadd.f32 %v1118, %v1050
        %v1149 = vadd.f32 %v1119, %v1055
        %v1150 = vadd.f32 %v1120, %v1060
        %v1151 = vadd.f32 %v1121, %v1065
        %v1152 = vadd.f32 %v1122, %v1070
        %v1153 = vadd.f32 %v1123, %v1075
        %v1154 = vadd.f32 %v1124, %v1080
        %v1155 = vadd.f32 %v1125, %v1085
        %v1156 = vadd.f32 %v1126, %v1090
        %v1157 = vadd.f32 %v1127, %v1095
        %1158 = vst [vmem:[#allocation4] sm:$0xff] %v1128
        %1159 = vst [vmem:[#allocation4 + $0x8] sm:$0xff] %v1129
        %1160 = vst [vmem:[#allocation4 + $0x10] sm:$0xff] %v1130
        %1161 = vst [vmem:[#allocation4 + $0x18] sm:$0xff] %v1131
        %1162 = vst [vmem:[#allocation4 + $0x20] sm:$0xff] %v1132
        %1163 = vst [vmem:[#allocation4 + $0x28] sm:$0xff] %v1133
        %1164 = vst [vmem:[#allocation4 + $0x30] sm:$0xff] %v1134
        %1165 = vst [vmem:[#allocation4 + $0x38] sm:$0xff] %v1135
        %1166 = vst [vmem:[#allocation4 + $0x40] sm:$0xff] %v1136
        %1167 = vst [vmem:[#allocation4 + $0x48] sm:$0xff] %v1137
        %1168 = vst [vmem:[#allocation4 + $0x50] sm:$0xff] %v1138
        %1169 = vst [vmem:[#allocation4 + $0x58] sm:$0xff] %v1139
        %1170 = vst [vmem:[#allocation4 + $0x60] sm:$0xff] %v1140
        %1171 = vst [vmem:[#allocation4 + $0x68] sm:$0xff] %v1141
        %1172 = vst [vmem:[#allocation4 + $0x70] sm:$0xff] %v1142
        %1173 = vst [vmem:[#allocation4 + $0x78] sm:$0xff] %v1143
        %1174 = vst [vmem:[#allocation4 + $0x80] sm:$0xff] %v1144
        %1175 = vst [vmem:[#allocation4 + $0x88] sm:$0xff] %v1145
        %1176 = vst [vmem:[#allocation4 + $0x90] sm:$0xff] %v1146
        %1177 = vst [vmem:[#allocation4 + $0x98] sm:$0xff] %v1147
        %1178 = vst [vmem:[#allocation4 + $0xa0] sm:$0xff] %v1148
        %1179 = vst [vmem:[#allocation4 + $0xa8] sm:$0xff] %v1149
        %1180 = vst [vmem:[#allocation4 + $0xb0] sm:$0xff] %v1150
        %1181 = vst [vmem:[#allocation4 + $0xb8] sm:$0xff] %v1151
        %1182 = vst [vmem:[#allocation4 + $0xc0] sm:$0xff] %v1152
        %1183 = vst [vmem:[#allocation4 + $0xc8] sm:$0xff] %v1153
        %1184 = vst [vmem:[#allocation4 + $0xd0] sm:$0xff] %v1154
        %1185 = vst [vmem:[#allocation4 + $0xd8] sm:$0xff] %v1155
        %1186 = vst [vmem:[#allocation4 + $0xe0] sm:$0xff] %v1156
        %1187 = vst [vmem:[#allocation4 + $0xe8] sm:$0xff] %v1157
        %v1188 = vrot.slane %v246, 1
        %v1189 = vrot.slane %v247, 1
        %v1190 = vrot.slane %v248, 1
        %v1191 = vrot.slane %v249, 1
        %v1192 = vrot.slane %v250, 1
        %v1193 = vrot.slane %v251, 1
        %v1194 = vrot.slane %v252, 1
        %v1195 = vrot.slane %v253, 1
        %v1196 = vrot.slane %v254, 1
        %v1197 = vrot.slane %v255, 1
        %v1198 = vrot.slane %v256, 1
        %v1199 = vrot.slane %v257, 1
        %v1200 = vrot.slane %v258, 1
        %v1201 = vrot.slane %v259, 1
        %v1202 = vrot.slane %v260, 1
        %v1203 = vrot.slane %v261, 1
        %v1204 = vrot.slane %v262, 1
        %v1205 = vrot.slane %v263, 1
        %v1206 = vrot.slane %v264, 1
        %v1207 = vrot.slane %v265, 1
        %v1208 = vrot.slane %v266, 1
        %v1209 = vrot.slane %v267, 1
        %v1210 = vrot.slane %v268, 1
        %v1211 = vrot.slane %v269, 1
        %v1212 = vrot.slane %v270, 1
        %v1213 = vrot.slane %v271, 1
        %v1214 = vrot.slane %v272, 1
        %v1215 = vrot.slane %v273, 1
        %v1216 = vrot.slane %v274, 1
        %v1217 = vrot.slane %v275, 1
        %v1218 = vrot.slane %v276, 1
        %v1219 = vrot.slane %v277, 1
        %v1220 = vrot.slane %v278, 1
        %v1221 = vrot.slane %v279, 1
        %v1222 = vrot.slane %v280, 1
        %v1223 = vrot.slane %v281, 1
        %v1224 = vrot.slane %v282, 1
        %v1225 = vlaneseq
        %v1226 = vshrl.u32 %v1225, 7
        %vm1227 = vcmp.lt.s32.totalorder %v1226, 7
        %v1228 = vsel %vm1227, %v1223, %v1224
        %v1229 = vsel %vm1227, %v1222, %v1223
        %v1230 = vsel %vm1227, %v1221, %v1222
        %v1231 = vsel %vm1227, %v1220, %v1221
        %v1232 = vsel %vm1227, %v1219, %v1220
        %v1233 = vsel %vm1227, %v1218, %v1219
        %v1234 = vsel %vm1227, %v1217, %v1218
        %v1235 = vsel %vm1227, %v1216, %v1217
        %v1236 = vsel %vm1227, %v1215, %v1216
        %v1237 = vsel %vm1227, %v1214, %v1215
        %v1238 = vsel %vm1227, %v1213, %v1214
        %v1239 = vsel %vm1227, %v1212, %v1213
        %v1240 = vsel %vm1227, %v1211, %v1212
        %v1241 = vsel %vm1227, %v1210, %v1211
        %v1242 = vsel %vm1227, %v1209, %v1210
        %v1243 = vsel %vm1227, %v1208, %v1209
        %v1244 = vsel %vm1227, %v1207, %v1208
        %v1245 = vsel %vm1227, %v1206, %v1207
        %v1246 = vsel %vm1227, %v1205, %v1206
        %v1247 = vsel %vm1227, %v1204, %v1205
        %v1248 = vsel %vm1227, %v1203, %v1204
        %v1249 = vsel %vm1227, %v1202, %v1203
        %v1250 = vsel %vm1227, %v1201, %v1202
        %v1251 = vsel %vm1227, %v1200, %v1201
        %v1252 = vsel %vm1227, %v1199, %v1200
        %v1253 = vsel %vm1227, %v1198, %v1199
        %v1254 = vsel %vm1227, %v1197, %v1198
        %v1255 = vsel %vm1227, %v1196, %v1197
        %v1256 = vsel %vm1227, %v1195, %v1196
        %v1257 = vsel %vm1227, %v1194, %v1195
        %v1258 = vsel %vm1227, %v1193, %v1194
        %v1259 = vsel %vm1227, %v1192, %v1193
        %v1260 = vsel %vm1227, %v1191, %v1192
        %v1261 = vsel %vm1227, %v1190, %v1191
        %v1262 = vsel %vm1227, %v1189, %v1190
        %v1263 = vsel %vm1227, %v1188, %v1189
        %s1264 = scalar_lea.vmem [#allocation5], 128
        %v1265 = vld [vmem:[%s1264] sm:$0xff]
        %v1266 = vld [vmem:[%s1264 + $0x8] sm:$0xff]
        %v1267 = vld [vmem:[%s1264 + $0x10] sm:$0xff]
        %v1268 = vld [vmem:[%s1264 + $0x18] sm:$0xff]
        %v1269 = vld [vmem:[%s1264 + $0x20] sm:$0xff]
        %v1270 = vld [vmem:[%s1264 + $0x28] sm:$0xff]
        %v1271 = vld [vmem:[%s1264 + $0x30] sm:$0xff]
        %v1272 = vld [vmem:[%s1264 + $0x38] sm:$0xff]
        %v1273 = vld [vmem:[%s1264 + $0x40] sm:$0xff]
        %v1274 = vld [vmem:[%s1264 + $0x48] sm:$0xff]
        %v1275 = vld [vmem:[%s1264 + $0x50] sm:$0xff]
        %v1276 = vld [vmem:[%s1264 + $0x58] sm:$0xff]
        %v1277 = vld [vmem:[%s1264 + $0x60] sm:$0xff]
        %v1278 = vld [vmem:[%s1264 + $0x68] sm:$0xff]
        %v1279 = vld [vmem:[%s1264 + $0x70] sm:$0xff]
        %v1280 = vld [vmem:[%s1264 + $0x78] sm:$0xff]
        %1281 = vmatprep.subr.mxu0 0.0
        %1282 = vmatpush1.msra.mxu0 %v1280
        %1283 = vmatprep.subr.mxu0 0.0
        %1284 = vmatpush1.msra.mxu0 %v1279
        %1285 = vmatprep.subr.mxu0 0.0
        %1286 = vmatpush1.msra.mxu0 %v1278
        %1287 = vmatprep.subr.mxu0 0.0
        %1288 = vmatpush1.msra.mxu0 %v1277
        %1289 = vmatprep.subr.mxu0 0.0
        %1290 = vmatpush1.msra.mxu0 %v1276
        %1291 = vmatprep.subr.mxu0 0.0
        %1292 = vmatpush1.msra.mxu0 %v1275
        %1293 = vmatprep.subr.mxu0 0.0
        %1294 = vmatpush1.msra.mxu0 %v1274
        %1295 = vmatprep.subr.mxu0 0.0
        %1296 = vmatpush1.msra.mxu0 %v1273
        %1297 = vmatprep.subr.mxu0 0.0
        %1298 = vmatpush1.msra.mxu0 %v1272
        %1299 = vmatprep.subr.mxu0 0.0
        %1300 = vmatpush1.msra.mxu0 %v1271
        %1301 = vmatprep.subr.mxu0 0.0
        %1302 = vmatpush1.msra.mxu0 %v1270
        %1303 = vmatprep.subr.mxu0 0.0
        %1304 = vmatpush1.msra.mxu0 %v1269
        %1305 = vmatprep.subr.mxu0 0.0
        %1306 = vmatpush1.msra.mxu0 %v1268
        %1307 = vmatprep.subr.mxu0 0.0
        %1308 = vmatpush1.msra.mxu0 %v1267
        %1309 = vmatprep.subr.mxu0 0.0
        %1310 = vmatpush1.msra.mxu0 %v1266
        %1311 = vmatprep.subr.mxu0 0.0
        %1312 = vmatpush1.msra.mxu0 %v1265
        %1313 = vmatprep.subr.mxu0 0.0
        %1314 = vmatpush2.msra.mxu0 0.0
        %1315 = vmatprep.subr.mxu0 0.0
        %1316 = vmatpush2.msra.mxu0 0.0
        %1317 = vmatprep.subr.mxu0 0.0
        %1318 = vmatpush2.msra.mxu0 0.0
        %1319 = vmatprep.subr.mxu0 0.0
        %1320 = vmatpush2.msra.mxu0 0.0
        %1321 = vmatprep.subr.mxu0 0.0
        %1322 = vmatpush2.msra.mxu0 0.0
        %1323 = vmatprep.subr.mxu0 0.0
        %1324 = vmatpush2.msra.mxu0 0.0
        %1325 = vmatprep.subr.mxu0 0.0
        %1326 = vmatpush2.msra.mxu0 0.0
        %1327 = vmatprep.subr.mxu0 0.0
        %1328 = vmatpush2.msra.mxu0 0.0
        %1329 = vmatprep.subr.mxu0 0.0
        %1330 = vmatpush2.msra.mxu0 0.0
        %1331 = vmatprep.subr.mxu0 0.0
        %1332 = vmatpush2.msra.mxu0 0.0
        %1333 = vmatprep.subr.mxu0 0.0
        %1334 = vmatpush2.msra.mxu0 0.0
        %1335 = vmatprep.subr.mxu0 0.0
        %1336 = vmatpush2.msra.mxu0 0.0
        %1337 = vmatprep.subr.mxu0 0.0
        %1338 = vmatpush2.msra.mxu0 0.0
        %1339 = vmatprep.subr.mxu0 0.0
        %1340 = vmatpush2.msra.mxu0 0.0
        %1341 = vmatprep.subr.mxu0 0.0
        %1342 = vmatpush2.msra.mxu0 0.0
        %1343 = vmatprep.subr.mxu0 0.0
        %1344 = vmatpush2.msra.mxu0 0.0
        %1345 = vmatprep.mubr.f32.mxu0 0.0
        %1346 = vmatmul.mubr.f32.gmra.mxu0 %v1263
        %v1347 = vpop.f32.mrf.mxu0
        %v1348 = vadd.f32 0.0, %v1347
        %v1349 = vpop.f32.mrf.mxu0
        %1350 = vmatprep.mubr.f32.mxu0 0.0
        %1351 = vmatmul.mubr.f32.gmra.mxu0 %v1262
        %v1352 = vpop.f32.mrf.mxu0
        %v1353 = vadd.f32 0.0, %v1352
        %v1354 = vpop.f32.mrf.mxu0
        %1355 = vmatprep.mubr.f32.mxu0 0.0
        %1356 = vmatmul.mubr.f32.gmra.mxu0 %v1261
        %v1357 = vpop.f32.mrf.mxu0
        %v1358 = vadd.f32 0.0, %v1357
        %v1359 = vpop.f32.mrf.mxu0
        %1360 = vmatprep.mubr.f32.mxu0 0.0
        %1361 = vmatmul.mubr.f32.gmra.mxu0 %v1260
        %v1362 = vpop.f32.mrf.mxu0
        %v1363 = vadd.f32 0.0, %v1362
        %v1364 = vpop.f32.mrf.mxu0
        %1365 = vmatprep.mubr.f32.mxu0 0.0
        %1366 = vmatmul.mubr.f32.gmra.mxu0 %v1259
        %v1367 = vpop.f32.mrf.mxu0
        %v1368 = vadd.f32 0.0, %v1367
        %v1369 = vpop.f32.mrf.mxu0
        %1370 = vmatprep.mubr.f32.mxu0 0.0
        %1371 = vmatmul.mubr.f32.gmra.mxu0 %v1258
        %v1372 = vpop.f32.mrf.mxu0
        %v1373 = vadd.f32 0.0, %v1372
        %v1374 = vpop.f32.mrf.mxu0
        %1375 = vmatprep.mubr.f32.mxu0 0.0
        %1376 = vmatmul.mubr.f32.gmra.mxu0 %v1257
        %v1377 = vpop.f32.mrf.mxu0
        %v1378 = vadd.f32 0.0, %v1377
        %v1379 = vpop.f32.mrf.mxu0
        %1380 = vmatprep.mubr.f32.mxu0 0.0
        %1381 = vmatmul.mubr.f32.gmra.mxu0 %v1256
        %v1382 = vpop.f32.mrf.mxu0
        %v1383 = vadd.f32 0.0, %v1382
        %v1384 = vpop.f32.mrf.mxu0
        %1385 = vmatprep.mubr.f32.mxu0 0.0
        %1386 = vmatmul.mubr.f32.gmra.mxu0 %v1255
        %v1387 = vpop.f32.mrf.mxu0
        %v1388 = vadd.f32 0.0, %v1387
        %v1389 = vpop.f32.mrf.mxu0
        %1390 = vmatprep.mubr.f32.mxu0 0.0
        %1391 = vmatmul.mubr.f32.gmra.mxu0 %v1254
        %v1392 = vpop.f32.mrf.mxu0
        %v1393 = vadd.f32 0.0, %v1392
        %v1394 = vpop.f32.mrf.mxu0
        %1395 = vmatprep.mubr.f32.mxu0 0.0
        %1396 = vmatmul.mubr.f32.gmra.mxu0 %v1253
        %v1397 = vpop.f32.mrf.mxu0
        %v1398 = vadd.f32 0.0, %v1397
        %v1399 = vpop.f32.mrf.mxu0
        %1400 = vmatprep.mubr.f32.mxu0 0.0
        %1401 = vmatmul.mubr.f32.gmra.mxu0 %v1252
        %v1402 = vpop.f32.mrf.mxu0
        %v1403 = vadd.f32 0.0, %v1402
        %v1404 = vpop.f32.mrf.mxu0
        %1405 = vmatprep.mubr.f32.mxu0 0.0
        %1406 = vmatmul.mubr.f32.gmra.mxu0 %v1251
        %v1407 = vpop.f32.mrf.mxu0
        %v1408 = vadd.f32 0.0, %v1407
        %v1409 = vpop.f32.mrf.mxu0
        %1410 = vmatprep.mubr.f32.mxu0 0.0
        %1411 = vmatmul.mubr.f32.gmra.mxu0 %v1250
        %v1412 = vpop.f32.mrf.mxu0
        %v1413 = vadd.f32 0.0, %v1412
        %v1414 = vpop.f32.mrf.mxu0
        %1415 = vmatprep.mubr.f32.mxu0 0.0
        %1416 = vmatmul.mubr.f32.gmra.mxu0 %v1249
        %v1417 = vpop.f32.mrf.mxu0
        %v1418 = vadd.f32 0.0, %v1417
        %v1419 = vpop.f32.mrf.mxu0
        %1420 = vmatprep.mubr.f32.mxu0 0.0
        %1421 = vmatmul.mubr.f32.gmra.mxu0 %v1248
        %v1422 = vpop.f32.mrf.mxu0
        %v1423 = vadd.f32 0.0, %v1422
        %v1424 = vpop.f32.mrf.mxu0
        %1425 = vmatprep.mubr.f32.mxu0 0.0
        %1426 = vmatmul.mubr.f32.gmra.mxu0 %v1247
        %v1427 = vpop.f32.mrf.mxu0
        %v1428 = vadd.f32 0.0, %v1427
        %v1429 = vpop.f32.mrf.mxu0
        %1430 = vmatprep.mubr.f32.mxu0 0.0
        %1431 = vmatmul.mubr.f32.gmra.mxu0 %v1246
        %v1432 = vpop.f32.mrf.mxu0
        %v1433 = vadd.f32 0.0, %v1432
        %v1434 = vpop.f32.mrf.mxu0
        %1435 = vmatprep.mubr.f32.mxu0 0.0
        %1436 = vmatmul.mubr.f32.gmra.mxu0 %v1245
        %v1437 = vpop.f32.mrf.mxu0
        %v1438 = vadd.f32 0.0, %v1437
        %v1439 = vpop.f32.mrf.mxu0
        %1440 = vmatprep.mubr.f32.mxu0 0.0
        %1441 = vmatmul.mubr.f32.gmra.mxu0 %v1244
        %v1442 = vpop.f32.mrf.mxu0
        %v1443 = vadd.f32 0.0, %v1442
        %v1444 = vpop.f32.mrf.mxu0
        %1445 = vmatprep.mubr.f32.mxu0 0.0
        %1446 = vmatmul.mubr.f32.gmra.mxu0 %v1243
        %v1447 = vpop.f32.mrf.mxu0
        %v1448 = vadd.f32 0.0, %v1447
        %v1449 = vpop.f32.mrf.mxu0
        %1450 = vmatprep.mubr.f32.mxu0 0.0
        %1451 = vmatmul.mubr.f32.gmra.mxu0 %v1242
        %v1452 = vpop.f32.mrf.mxu0
        %v1453 = vadd.f32 0.0, %v1452
        %v1454 = vpop.f32.mrf.mxu0
        %1455 = vmatprep.mubr.f32.mxu0 0.0
        %1456 = vmatmul.mubr.f32.gmra.mxu0 %v1241
        %v1457 = vpop.f32.mrf.mxu0
        %v1458 = vadd.f32 0.0, %v1457
        %v1459 = vpop.f32.mrf.mxu0
        %1460 = vmatprep.mubr.f32.mxu0 0.0
        %1461 = vmatmul.mubr.f32.gmra.mxu0 %v1240
        %v1462 = vpop.f32.mrf.mxu0
        %v1463 = vadd.f32 0.0, %v1462
        %v1464 = vpop.f32.mrf.mxu0
        %1465 = vmatprep.mubr.f32.mxu0 0.0
        %1466 = vmatmul.mubr.f32.gmra.mxu0 %v1239
        %v1467 = vpop.f32.mrf.mxu0
        %v1468 = vadd.f32 0.0, %v1467
        %v1469 = vpop.f32.mrf.mxu0
        %1470 = vmatprep.mubr.f32.mxu0 0.0
        %1471 = vmatmul.mubr.f32.gmra.mxu0 %v1238
        %v1472 = vpop.f32.mrf.mxu0
        %v1473 = vadd.f32 0.0, %v1472
        %v1474 = vpop.f32.mrf.mxu0
        %1475 = vmatprep.mubr.f32.mxu0 0.0
        %1476 = vmatmul.mubr.f32.gmra.mxu0 %v1237
        %v1477 = vpop.f32.mrf.mxu0
        %v1478 = vadd.f32 0.0, %v1477
        %v1479 = vpop.f32.mrf.mxu0
        %1480 = vmatprep.mubr.f32.mxu0 0.0
        %1481 = vmatmul.mubr.f32.gmra.mxu0 %v1236
        %v1482 = vpop.f32.mrf.mxu0
        %v1483 = vadd.f32 0.0, %v1482
        %v1484 = vpop.f32.mrf.mxu0
        %1485 = vmatprep.mubr.f32.mxu0 0.0
        %1486 = vmatmul.mubr.f32.gmra.mxu0 %v1235
        %v1487 = vpop.f32.mrf.mxu0
        %v1488 = vadd.f32 0.0, %v1487
        %v1489 = vpop.f32.mrf.mxu0
        %1490 = vmatprep.mubr.f32.mxu0 0.0
        %1491 = vmatmul.mubr.f32.gmra.mxu0 %v1234
        %v1492 = vpop.f32.mrf.mxu0
        %v1493 = vadd.f32 0.0, %v1492
        %v1494 = vpop.f32.mrf.mxu0
        %1495 = vdwg.mxu0
        %v1496 = vld [vmem:[#allocation4] sm:$0xff]
        %v1497 = vld [vmem:[#allocation4 + $0x8] sm:$0xff]
        %v1498 = vld [vmem:[#allocation4 + $0x10] sm:$0xff]
        %v1499 = vld [vmem:[#allocation4 + $0x18] sm:$0xff]
        %v1500 = vld [vmem:[#allocation4 + $0x20] sm:$0xff]
        %v1501 = vld [vmem:[#allocation4 + $0x28] sm:$0xff]
        %v1502 = vld [vmem:[#allocation4 + $0x30] sm:$0xff]
        %v1503 = vld [vmem:[#allocation4 + $0x38] sm:$0xff]
        %v1504 = vld [vmem:[#allocation4 + $0x40] sm:$0xff]
        %v1505 = vld [vmem:[#allocation4 + $0x48] sm:$0xff]
        %v1506 = vld [vmem:[#allocation4 + $0x50] sm:$0xff]
        %v1507 = vld [vmem:[#allocation4 + $0x58] sm:$0xff]
        %v1508 = vld [vmem:[#allocation4 + $0x60] sm:$0xff]
        %v1509 = vld [vmem:[#allocation4 + $0x68] sm:$0xff]
        %v1510 = vld [vmem:[#allocation4 + $0x70] sm:$0xff]
        %v1511 = vld [vmem:[#allocation4 + $0x78] sm:$0xff]
        %v1512 = vld [vmem:[#allocation4 + $0x80] sm:$0xff]
        %v1513 = vld [vmem:[#allocation4 + $0x88] sm:$0xff]
        %v1514 = vld [vmem:[#allocation4 + $0x90] sm:$0xff]
        %v1515 = vld [vmem:[#allocation4 + $0x98] sm:$0xff]
        %v1516 = vld [vmem:[#allocation4 + $0xa0] sm:$0xff]
        %v1517 = vld [vmem:[#allocation4 + $0xa8] sm:$0xff]
        %v1518 = vld [vmem:[#allocation4 + $0xb0] sm:$0xff]
        %v1519 = vld [vmem:[#allocation4 + $0xb8] sm:$0xff]
        %v1520 = vld [vmem:[#allocation4 + $0xc0] sm:$0xff]
        %v1521 = vld [vmem:[#allocation4 + $0xc8] sm:$0xff]
        %v1522 = vld [vmem:[#allocation4 + $0xd0] sm:$0xff]
        %v1523 = vld [vmem:[#allocation4 + $0xd8] sm:$0xff]
        %v1524 = vld [vmem:[#allocation4 + $0xe0] sm:$0xff]
        %v1525 = vld [vmem:[#allocation4 + $0xe8] sm:$0xff]
        %v1526 = vadd.f32 %v1496, %v1348
        %v1527 = vadd.f32 %v1497, %v1353
        %v1528 = vadd.f32 %v1498, %v1358
        %v1529 = vadd.f32 %v1499, %v1363
        %v1530 = vadd.f32 %v1500, %v1368
        %v1531 = vadd.f32 %v1501, %v1373
        %v1532 = vadd.f32 %v1502, %v1378
        %v1533 = vadd.f32 %v1503, %v1383
        %v1534 = vadd.f32 %v1504, %v1388
        %v1535 = vadd.f32 %v1505, %v1393
        %v1536 = vadd.f32 %v1506, %v1398
        %v1537 = vadd.f32 %v1507, %v1403
        %v1538 = vadd.f32 %v1508, %v1408
        %v1539 = vadd.f32 %v1509, %v1413
        %v1540 = vadd.f32 %v1510, %v1418
        %v1541 = vadd.f32 %v1511, %v1423
        %v1542 = vadd.f32 %v1512, %v1428
        %v1543 = vadd.f32 %v1513, %v1433
        %v1544 = vadd.f32 %v1514, %v1438
        %v1545 = vadd.f32 %v1515, %v1443
        %v1546 = vadd.f32 %v1516, %v1448
        %v1547 = vadd.f32 %v1517, %v1453
        %v1548 = vadd.f32 %v1518, %v1458
        %v1549 = vadd.f32 %v1519, %v1463
        %v1550 = vadd.f32 %v1520, %v1468
        %v1551 = vadd.f32 %v1521, %v1473
        %v1552 = vadd.f32 %v1522, %v1478
        %v1553 = vadd.f32 %v1523, %v1483
        %v1554 = vadd.f32 %v1524, %v1488
        %v1555 = vadd.f32 %v1525, %v1493
        %1556 = vst [vmem:[#allocation4] sm:$0xff] %v1526
        %1557 = vst [vmem:[#allocation4 + $0x8] sm:$0xff] %v1527
        %1558 = vst [vmem:[#allocation4 + $0x10] sm:$0xff] %v1528
        %1559 = vst [vmem:[#allocation4 + $0x18] sm:$0xff] %v1529
        %1560 = vst [vmem:[#allocation4 + $0x20] sm:$0xff] %v1530
        %1561 = vst [vmem:[#allocation4 + $0x28] sm:$0xff] %v1531
        %1562 = vst [vmem:[#allocation4 + $0x30] sm:$0xff] %v1532
        %1563 = vst [vmem:[#allocation4 + $0x38] sm:$0xff] %v1533
        %1564 = vst [vmem:[#allocation4 + $0x40] sm:$0xff] %v1534
        %1565 = vst [vmem:[#allocation4 + $0x48] sm:$0xff] %v1535
        %1566 = vst [vmem:[#allocation4 + $0x50] sm:$0xff] %v1536
        %1567 = vst [vmem:[#allocation4 + $0x58] sm:$0xff] %v1537
        %1568 = vst [vmem:[#allocation4 + $0x60] sm:$0xff] %v1538
        %1569 = vst [vmem:[#allocation4 + $0x68] sm:$0xff] %v1539
        %1570 = vst [vmem:[#allocation4 + $0x70] sm:$0xff] %v1540
        %1571 = vst [vmem:[#allocation4 + $0x78] sm:$0xff] %v1541
        %1572 = vst [vmem:[#allocation4 + $0x80] sm:$0xff] %v1542
        %1573 = vst [vmem:[#allocation4 + $0x88] sm:$0xff] %v1543
        %1574 = vst [vmem:[#allocation4 + $0x90] sm:$0xff] %v1544
        %1575 = vst [vmem:[#allocation4 + $0x98] sm:$0xff] %v1545
        %1576 = vst [vmem:[#allocation4 + $0xa0] sm:$0xff] %v1546
        %1577 = vst [vmem:[#allocation4 + $0xa8] sm:$0xff] %v1547
        %1578 = vst [vmem:[#allocation4 + $0xb0] sm:$0xff] %v1548
        %1579 = vst [vmem:[#allocation4 + $0xb8] sm:$0xff] %v1549
        %1580 = vst [vmem:[#allocation4 + $0xc0] sm:$0xff] %v1550
        %1581 = vst [vmem:[#allocation4 + $0xc8] sm:$0xff] %v1551
        %1582 = vst [vmem:[#allocation4 + $0xd0] sm:$0xff] %v1552
        %1583 = vst [vmem:[#allocation4 + $0xd8] sm:$0xff] %v1553
        %1584 = vst [vmem:[#allocation4 + $0xe0] sm:$0xff] %v1554
        %1585 = vst [vmem:[#allocation4 + $0xe8] sm:$0xff] %v1555
        %s1586 = scalar_lea.vmem [#allocation5], 512
        %v1587 = vld [vmem:[%s1586] sm:$0xff]
        %v1588 = vld [vmem:[%s1586 + $0x8] sm:$0xff]
        %v1589 = vld [vmem:[%s1586 + $0x10] sm:$0xff]
        %v1590 = vld [vmem:[%s1586 + $0x18] sm:$0xff]
        %v1591 = vld [vmem:[%s1586 + $0x20] sm:$0xff]
        %v1592 = vld [vmem:[%s1586 + $0x28] sm:$0xff]
        %v1593 = vld [vmem:[%s1586 + $0x30] sm:$0xff]
        %v1594 = vld [vmem:[%s1586 + $0x38] sm:$0xff]
        %v1595 = vld [vmem:[%s1586 + $0x40] sm:$0xff]
        %v1596 = vld [vmem:[%s1586 + $0x48] sm:$0xff]
        %v1597 = vld [vmem:[%s1586 + $0x50] sm:$0xff]
        %v1598 = vld [vmem:[%s1586 + $0x58] sm:$0xff]
        %v1599 = vld [vmem:[%s1586 + $0x60] sm:$0xff]
        %v1600 = vld [vmem:[%s1586 + $0x68] sm:$0xff]
        %v1601 = vld [vmem:[%s1586 + $0x70] sm:$0xff]
        %v1602 = vld [vmem:[%s1586 + $0x78] sm:$0xff]
        %1603 = vmatprep.subr.mxu0 0.0
        %1604 = vmatpush1.msra.mxu0 %v1602
        %1605 = vmatprep.subr.mxu0 0.0
        %1606 = vmatpush1.msra.mxu0 %v1601
        %1607 = vmatprep.subr.mxu0 0.0
        %1608 = vmatpush1.msra.mxu0 %v1600
        %1609 = vmatprep.subr.mxu0 0.0
        %1610 = vmatpush1.msra.mxu0 %v1599
        %1611 = vmatprep.subr.mxu0 0.0
        %1612 = vmatpush1.msra.mxu0 %v1598
        %1613 = vmatprep.subr.mxu0 0.0
        %1614 = vmatpush1.msra.mxu0 %v1597
        %1615 = vmatprep.subr.mxu0 0.0
        %1616 = vmatpush1.msra.mxu0 %v1596
        %1617 = vmatprep.subr.mxu0 0.0
        %1618 = vmatpush1.msra.mxu0 %v1595
        %1619 = vmatprep.subr.mxu0 0.0
        %1620 = vmatpush1.msra.mxu0 %v1594
        %1621 = vmatprep.subr.mxu0 0.0
        %1622 = vmatpush1.msra.mxu0 %v1593
        %1623 = vmatprep.subr.mxu0 0.0
        %1624 = vmatpush1.msra.mxu0 %v1592
        %1625 = vmatprep.subr.mxu0 0.0
        %1626 = vmatpush1.msra.mxu0 %v1591
        %1627 = vmatprep.subr.mxu0 0.0
        %1628 = vmatpush1.msra.mxu0 %v1590
        %1629 = vmatprep.subr.mxu0 0.0
        %1630 = vmatpush1.msra.mxu0 %v1589
        %1631 = vmatprep.subr.mxu0 0.0
        %1632 = vmatpush1.msra.mxu0 %v1588
        %1633 = vmatprep.subr.mxu0 0.0
        %1634 = vmatpush1.msra.mxu0 %v1587
        %1635 = vmatprep.subr.mxu0 0.0
        %1636 = vmatpush2.msra.mxu0 0.0
        %1637 = vmatprep.subr.mxu0 0.0
        %1638 = vmatpush2.msra.mxu0 0.0
        %1639 = vmatprep.subr.mxu0 0.0
        %1640 = vmatpush2.msra.mxu0 0.0
        %1641 = vmatprep.subr.mxu0 0.0
        %1642 = vmatpush2.msra.mxu0 0.0
        %1643 = vmatprep.subr.mxu0 0.0
        %1644 = vmatpush2.msra.mxu0 0.0
        %1645 = vmatprep.subr.mxu0 0.0
        %1646 = vmatpush2.msra.mxu0 0.0
        %1647 = vmatprep.subr.mxu0 0.0
        %1648 = vmatpush2.msra.mxu0 0.0
        %1649 = vmatprep.subr.mxu0 0.0
        %1650 = vmatpush2.msra.mxu0 0.0
        %1651 = vmatprep.subr.mxu0 0.0
        %1652 = vmatpush2.msra.mxu0 0.0
        %1653 = vmatprep.subr.mxu0 0.0
        %1654 = vmatpush2.msra.mxu0 0.0
        %1655 = vmatprep.subr.mxu0 0.0
        %1656 = vmatpush2.msra.mxu0 0.0
        %1657 = vmatprep.subr.mxu0 0.0
        %1658 = vmatpush2.msra.mxu0 0.0
        %1659 = vmatprep.subr.mxu0 0.0
        %1660 = vmatpush2.msra.mxu0 0.0
        %1661 = vmatprep.subr.mxu0 0.0
        %1662 = vmatpush2.msra.mxu0 0.0
        %1663 = vmatprep.subr.mxu0 0.0
        %1664 = vmatpush2.msra.mxu0 0.0
        %1665 = vmatprep.subr.mxu0 0.0
        %1666 = vmatpush2.msra.mxu0 0.0
        %1667 = vmatprep.mubr.f32.mxu0 0.0
        %1668 = vmatmul.mubr.f32.gmra.mxu0 %v1260
        %v1669 = vpop.f32.mrf.mxu0
        %v1670 = vadd.f32 0.0, %v1669
        %v1671 = vpop.f32.mrf.mxu0
        %1672 = vmatprep.mubr.f32.mxu0 0.0
        %1673 = vmatmul.mubr.f32.gmra.mxu0 %v1259
        %v1674 = vpop.f32.mrf.mxu0
        %v1675 = vadd.f32 0.0, %v1674
        %v1676 = vpop.f32.mrf.mxu0
        %1677 = vmatprep.mubr.f32.mxu0 0.0
        %1678 = vmatmul.mubr.f32.gmra.mxu0 %v1258
        %v1679 = vpop.f32.mrf.mxu0
        %v1680 = vadd.f32 0.0, %v1679
        %v1681 = vpop.f32.mrf.mxu0
        %1682 = vmatprep.mubr.f32.mxu0 0.0
        %1683 = vmatmul.mubr.f32.gmra.mxu0 %v1257
        %v1684 = vpop.f32.mrf.mxu0
        %v1685 = vadd.f32 0.0, %v1684
        %v1686 = vpop.f32.mrf.mxu0
        %1687 = vmatprep.mubr.f32.mxu0 0.0
        %1688 = vmatmul.mubr.f32.gmra.mxu0 %v1256
        %v1689 = vpop.f32.mrf.mxu0
        %v1690 = vadd.f32 0.0, %v1689
        %v1691 = vpop.f32.mrf.mxu0
        %1692 = vmatprep.mubr.f32.mxu0 0.0
        %1693 = vmatmul.mubr.f32.gmra.mxu0 %v1255
        %v1694 = vpop.f32.mrf.mxu0
        %v1695 = vadd.f32 0.0, %v1694
        %v1696 = vpop.f32.mrf.mxu0
        %1697 = vmatprep.mubr.f32.mxu0 0.0
        %1698 = vmatmul.mubr.f32.gmra.mxu0 %v1254
        %v1699 = vpop.f32.mrf.mxu0
        %v1700 = vadd.f32 0.0, %v1699
        %v1701 = vpop.f32.mrf.mxu0
        %1702 = vmatprep.mubr.f32.mxu0 0.0
        %1703 = vmatmul.mubr.f32.gmra.mxu0 %v1253
        %v1704 = vpop.f32.mrf.mxu0
        %v1705 = vadd.f32 0.0, %v1704
        %v1706 = vpop.f32.mrf.mxu0
        %1707 = vmatprep.mubr.f32.mxu0 0.0
        %1708 = vmatmul.mubr.f32.gmra.mxu0 %v1252
        %v1709 = vpop.f32.mrf.mxu0
        %v1710 = vadd.f32 0.0, %v1709
        %v1711 = vpop.f32.mrf.mxu0
        %1712 = vmatprep.mubr.f32.mxu0 0.0
        %1713 = vmatmul.mubr.f32.gmra.mxu0 %v1251
        %v1714 = vpop.f32.mrf.mxu0
        %v1715 = vadd.f32 0.0, %v1714
        %v1716 = vpop.f32.mrf.mxu0
        %1717 = vmatprep.mubr.f32.mxu0 0.0
        %1718 = vmatmul.mubr.f32.gmra.mxu0 %v1250
        %v1719 = vpop.f32.mrf.mxu0
        %v1720 = vadd.f32 0.0, %v1719
        %v1721 = vpop.f32.mrf.mxu0
        %1722 = vmatprep.mubr.f32.mxu0 0.0
        %1723 = vmatmul.mubr.f32.gmra.mxu0 %v1249
        %v1724 = vpop.f32.mrf.mxu0
        %v1725 = vadd.f32 0.0, %v1724
        %v1726 = vpop.f32.mrf.mxu0
        %1727 = vmatprep.mubr.f32.mxu0 0.0
        %1728 = vmatmul.mubr.f32.gmra.mxu0 %v1248
        %v1729 = vpop.f32.mrf.mxu0
        %v1730 = vadd.f32 0.0, %v1729
        %v1731 = vpop.f32.mrf.mxu0
        %1732 = vmatprep.mubr.f32.mxu0 0.0
        %1733 = vmatmul.mubr.f32.gmra.mxu0 %v1247
        %v1734 = vpop.f32.mrf.mxu0
        %v1735 = vadd.f32 0.0, %v1734
        %v1736 = vpop.f32.mrf.mxu0
        %1737 = vmatprep.mubr.f32.mxu0 0.0
        %1738 = vmatmul.mubr.f32.gmra.mxu0 %v1246
        %v1739 = vpop.f32.mrf.mxu0
        %v1740 = vadd.f32 0.0, %v1739
        %v1741 = vpop.f32.mrf.mxu0
        %1742 = vmatprep.mubr.f32.mxu0 0.0
        %1743 = vmatmul.mubr.f32.gmra.mxu0 %v1245
        %v1744 = vpop.f32.mrf.mxu0
        %v1745 = vadd.f32 0.0, %v1744
        %v1746 = vpop.f32.mrf.mxu0
        %1747 = vmatprep.mubr.f32.mxu0 0.0
        %1748 = vmatmul.mubr.f32.gmra.mxu0 %v1244
        %v1749 = vpop.f32.mrf.mxu0
        %v1750 = vadd.f32 0.0, %v1749
        %v1751 = vpop.f32.mrf.mxu0
        %1752 = vmatprep.mubr.f32.mxu0 0.0
        %1753 = vmatmul.mubr.f32.gmra.mxu0 %v1243
        %v1754 = vpop.f32.mrf.mxu0
        %v1755 = vadd.f32 0.0, %v1754
        %v1756 = vpop.f32.mrf.mxu0
        %1757 = vmatprep.mubr.f32.mxu0 0.0
        %1758 = vmatmul.mubr.f32.gmra.mxu0 %v1242
        %v1759 = vpop.f32.mrf.mxu0
        %v1760 = vadd.f32 0.0, %v1759
        %v1761 = vpop.f32.mrf.mxu0
        %1762 = vmatprep.mubr.f32.mxu0 0.0
        %1763 = vmatmul.mubr.f32.gmra.mxu0 %v1241
        %v1764 = vpop.f32.mrf.mxu0
        %v1765 = vadd.f32 0.0, %v1764
        %v1766 = vpop.f32.mrf.mxu0
        %1767 = vmatprep.mubr.f32.mxu0 0.0
        %1768 = vmatmul.mubr.f32.gmra.mxu0 %v1240
        %v1769 = vpop.f32.mrf.mxu0
        %v1770 = vadd.f32 0.0, %v1769
        %v1771 = vpop.f32.mrf.mxu0
        %1772 = vmatprep.mubr.f32.mxu0 0.0
        %1773 = vmatmul.mubr.f32.gmra.mxu0 %v1239
        %v1774 = vpop.f32.mrf.mxu0
        %v1775 = vadd.f32 0.0, %v1774
        %v1776 = vpop.f32.mrf.mxu0
        %1777 = vmatprep.mubr.f32.mxu0 0.0
        %1778 = vmatmul.mubr.f32.gmra.mxu0 %v1238
        %v1779 = vpop.f32.mrf.mxu0
        %v1780 = vadd.f32 0.0, %v1779
        %v1781 = vpop.f32.mrf.mxu0
        %1782 = vmatprep.mubr.f32.mxu0 0.0
        %1783 = vmatmul.mubr.f32.gmra.mxu0 %v1237
        %v1784 = vpop.f32.mrf.mxu0
        %v1785 = vadd.f32 0.0, %v1784
        %v1786 = vpop.f32.mrf.mxu0
        %1787 = vmatprep.mubr.f32.mxu0 0.0
        %1788 = vmatmul.mubr.f32.gmra.mxu0 %v1236
        %v1789 = vpop.f32.mrf.mxu0
        %v1790 = vadd.f32 0.0, %v1789
        %v1791 = vpop.f32.mrf.mxu0
        %1792 = vmatprep.mubr.f32.mxu0 0.0
        %1793 = vmatmul.mubr.f32.gmra.mxu0 %v1235
        %v1794 = vpop.f32.mrf.mxu0
        %v1795 = vadd.f32 0.0, %v1794
        %v1796 = vpop.f32.mrf.mxu0
        %1797 = vmatprep.mubr.f32.mxu0 0.0
        %1798 = vmatmul.mubr.f32.gmra.mxu0 %v1234
        %v1799 = vpop.f32.mrf.mxu0
        %v1800 = vadd.f32 0.0, %v1799
        %v1801 = vpop.f32.mrf.mxu0
        %1802 = vmatprep.mubr.f32.mxu0 0.0
        %1803 = vmatmul.mubr.f32.gmra.mxu0 %v1233
        %v1804 = vpop.f32.mrf.mxu0
        %v1805 = vadd.f32 0.0, %v1804
        %v1806 = vpop.f32.mrf.mxu0
        %1807 = vmatprep.mubr.f32.mxu0 0.0
        %1808 = vmatmul.mubr.f32.gmra.mxu0 %v1232
        %v1809 = vpop.f32.mrf.mxu0
        %v1810 = vadd.f32 0.0, %v1809
        %v1811 = vpop.f32.mrf.mxu0
        %1812 = vmatprep.mubr.f32.mxu0 0.0
        %1813 = vmatmul.mubr.f32.gmra.mxu0 %v1231
        %v1814 = vpop.f32.mrf.mxu0
        %v1815 = vadd.f32 0.0, %v1814
        %v1816 = vpop.f32.mrf.mxu0
        %1817 = vdwg.mxu0
        %v1818 = vld [vmem:[#allocation4] sm:$0xff]
        %v1819 = vld [vmem:[#allocation4 + $0x8] sm:$0xff]
        %v1820 = vld [vmem:[#allocation4 + $0x10] sm:$0xff]
        %v1821 = vld [vmem:[#allocation4 + $0x18] sm:$0xff]
        %v1822 = vld [vmem:[#allocation4 + $0x20] sm:$0xff]
        %v1823 = vld [vmem:[#allocation4 + $0x28] sm:$0xff]
        %v1824 = vld [vmem:[#allocation4 + $0x30] sm:$0xff]
        %v1825 = vld [vmem:[#allocation4 + $0x38] sm:$0xff]
        %v1826 = vld [vmem:[#allocation4 + $0x40] sm:$0xff]
        %v1827 = vld [vmem:[#allocation4 + $0x48] sm:$0xff]
        %v1828 = vld [vmem:[#allocation4 + $0x50] sm:$0xff]
        %v1829 = vld [vmem:[#allocation4 + $0x58] sm:$0xff]
        %v1830 = vld [vmem:[#allocation4 + $0x60] sm:$0xff]
        %v1831 = vld [vmem:[#allocation4 + $0x68] sm:$0xff]
        %v1832 = vld [vmem:[#allocation4 + $0x70] sm:$0xff]
        %v1833 = vld [vmem:[#allocation4 + $0x78] sm:$0xff]
        %v1834 = vld [vmem:[#allocation4 + $0x80] sm:$0xff]
        %v1835 = vld [vmem:[#allocation4 + $0x88] sm:$0xff]
        %v1836 = vld [vmem:[#allocation4 + $0x90] sm:$0xff]
        %v1837 = vld [vmem:[#allocation4 + $0x98] sm:$0xff]
        %v1838 = vld [vmem:[#allocation4 + $0xa0] sm:$0xff]
        %v1839 = vld [vmem:[#allocation4 + $0xa8] sm:$0xff]
        %v1840 = vld [vmem:[#allocation4 + $0xb0] sm:$0xff]
        %v1841 = vld [vmem:[#allocation4 + $0xb8] sm:$0xff]
        %v1842 = vld [vmem:[#allocation4 + $0xc0] sm:$0xff]
        %v1843 = vld [vmem:[#allocation4 + $0xc8] sm:$0xff]
        %v1844 = vld [vmem:[#allocation4 + $0xd0] sm:$0xff]
        %v1845 = vld [vmem:[#allocation4 + $0xd8] sm:$0xff]
        %v1846 = vld [vmem:[#allocation4 + $0xe0] sm:$0xff]
        %v1847 = vld [vmem:[#allocation4 + $0xe8] sm:$0xff]
        %v1848 = vadd.f32 %v1818, %v1670
        %v1849 = vadd.f32 %v1819, %v1675
        %v1850 = vadd.f32 %v1820, %v1680
        %v1851 = vadd.f32 %v1821, %v1685
        %v1852 = vadd.f32 %v1822, %v1690
        %v1853 = vadd.f32 %v1823, %v1695
        %v1854 = vadd.f32 %v1824, %v1700
        %v1855 = vadd.f32 %v1825, %v1705
        %v1856 = vadd.f32 %v1826, %v1710
        %v1857 = vadd.f32 %v1827, %v1715
        %v1858 = vadd.f32 %v1828, %v1720
        %v1859 = vadd.f32 %v1829, %v1725
        %v1860 = vadd.f32 %v1830, %v1730
        %v1861 = vadd.f32 %v1831, %v1735
        %v1862 = vadd.f32 %v1832, %v1740
        %v1863 = vadd.f32 %v1833, %v1745
        %v1864 = vadd.f32 %v1834, %v1750
        %v1865 = vadd.f32 %v1835, %v1755
        %v1866 = vadd.f32 %v1836, %v1760
        %v1867 = vadd.f32 %v1837, %v1765
        %v1868 = vadd.f32 %v1838, %v1770
        %v1869 = vadd.f32 %v1839, %v1775
        %v1870 = vadd.f32 %v1840, %v1780
        %v1871 = vadd.f32 %v1841, %v1785
        %v1872 = vadd.f32 %v1842, %v1790
        %v1873 = vadd.f32 %v1843, %v1795
        %v1874 = vadd.f32 %v1844, %v1800
        %v1875 = vadd.f32 %v1845, %v1805
        %v1876 = vadd.f32 %v1846, %v1810
        %v1877 = vadd.f32 %v1847, %v1815
        %1878 = vst [vmem:[#allocation4] sm:$0xff] %v1848
        %1879 = vst [vmem:[#allocation4 + $0x8] sm:$0xff] %v1849
        %1880 = vst [vmem:[#allocation4 + $0x10] sm:$0xff] %v1850
        %1881 = vst [vmem:[#allocation4 + $0x18] sm:$0xff] %v1851
        %1882 = vst [vmem:[#allocation4 + $0x20] sm:$0xff] %v1852
        %1883 = vst [vmem:[#allocation4 + $0x28] sm:$0xff] %v1853
        %1884 = vst [vmem:[#allocation4 + $0x30] sm:$0xff] %v1854
        %1885 = vst [vmem:[#allocation4 + $0x38] sm:$0xff] %v1855
        %1886 = vst [vmem:[#allocation4 + $0x40] sm:$0xff] %v1856
        %1887 = vst [vmem:[#allocation4 + $0x48] sm:$0xff] %v1857
        %1888 = vst [vmem:[#allocation4 + $0x50] sm:$0xff] %v1858
        %1889 = vst [vmem:[#allocation4 + $0x58] sm:$0xff] %v1859
        %1890 = vst [vmem:[#allocation4 + $0x60] sm:$0xff] %v1860
        %1891 = vst [vmem:[#allocation4 + $0x68] sm:$0xff] %v1861
        %1892 = vst [vmem:[#allocation4 + $0x70] sm:$0xff] %v1862
        %1893 = vst [vmem:[#allocation4 + $0x78] sm:$0xff] %v1863
        %1894 = vst [vmem:[#allocation4 + $0x80] sm:$0xff] %v1864
        %1895 = vst [vmem:[#allocation4 + $0x88] sm:$0xff] %v1865
        %1896 = vst [vmem:[#allocation4 + $0x90] sm:$0xff] %v1866
        %1897 = vst [vmem:[#allocation4 + $0x98] sm:$0xff] %v1867
        %1898 = vst [vmem:[#allocation4 + $0xa0] sm:$0xff] %v1868
        %1899 = vst [vmem:[#allocation4 + $0xa8] sm:$0xff] %v1869
        %1900 = vst [vmem:[#allocation4 + $0xb0] sm:$0xff] %v1870
        %1901 = vst [vmem:[#allocation4 + $0xb8] sm:$0xff] %v1871
        %1902 = vst [vmem:[#allocation4 + $0xc0] sm:$0xff] %v1872
        %1903 = vst [vmem:[#allocation4 + $0xc8] sm:$0xff] %v1873
        %1904 = vst [vmem:[#allocation4 + $0xd0] sm:$0xff] %v1874
        %1905 = vst [vmem:[#allocation4 + $0xd8] sm:$0xff] %v1875
        %1906 = vst [vmem:[#allocation4 + $0xe0] sm:$0xff] %v1876
        %1907 = vst [vmem:[#allocation4 + $0xe8] sm:$0xff] %v1877
        %s1908 = scalar_lea.vmem [#allocation5], 896
        %v1909 = vld [vmem:[%s1908] sm:$0xff]
        %v1910 = vld [vmem:[%s1908 + $0x8] sm:$0xff]
        %v1911 = vld [vmem:[%s1908 + $0x10] sm:$0xff]
        %v1912 = vld [vmem:[%s1908 + $0x18] sm:$0xff]
        %v1913 = vld [vmem:[%s1908 + $0x20] sm:$0xff]
        %v1914 = vld [vmem:[%s1908 + $0x28] sm:$0xff]
        %v1915 = vld [vmem:[%s1908 + $0x30] sm:$0xff]
        %v1916 = vld [vmem:[%s1908 + $0x38] sm:$0xff]
        %v1917 = vld [vmem:[%s1908 + $0x40] sm:$0xff]
        %v1918 = vld [vmem:[%s1908 + $0x48] sm:$0xff]
        %v1919 = vld [vmem:[%s1908 + $0x50] sm:$0xff]
        %v1920 = vld [vmem:[%s1908 + $0x58] sm:$0xff]
        %v1921 = vld [vmem:[%s1908 + $0x60] sm:$0xff]
        %v1922 = vld [vmem:[%s1908 + $0x68] sm:$0xff]
        %v1923 = vld [vmem:[%s1908 + $0x70] sm:$0xff]
        %v1924 = vld [vmem:[%s1908 + $0x78] sm:$0xff]
        %1925 = vmatprep.subr.mxu0 0.0
        %1926 = vmatpush1.msra.mxu0 %v1924
        %1927 = vmatprep.subr.mxu0 0.0
        %1928 = vmatpush1.msra.mxu0 %v1923
        %1929 = vmatprep.subr.mxu0 0.0
        %1930 = vmatpush1.msra.mxu0 %v1922
        %1931 = vmatprep.subr.mxu0 0.0
        %1932 = vmatpush1.msra.mxu0 %v1921
        %1933 = vmatprep.subr.mxu0 0.0
        %1934 = vmatpush1.msra.mxu0 %v1920
        %1935 = vmatprep.subr.mxu0 0.0
        %1936 = vmatpush1.msra.mxu0 %v1919
        %1937 = vmatprep.subr.mxu0 0.0
        %1938 = vmatpush1.msra.mxu0 %v1918
        %1939 = vmatprep.subr.mxu0 0.0
        %1940 = vmatpush1.msra.mxu0 %v1917
        %1941 = vmatprep.subr.mxu0 0.0
        %1942 = vmatpush1.msra.mxu0 %v1916
        %1943 = vmatprep.subr.mxu0 0.0
        %1944 = vmatpush1.msra.mxu0 %v1915
        %1945 = vmatprep.subr.mxu0 0.0
        %1946 = vmatpush1.msra.mxu0 %v1914
        %1947 = vmatprep.subr.mxu0 0.0
        %1948 = vmatpush1.msra.mxu0 %v1913
        %1949 = vmatprep.subr.mxu0 0.0
        %1950 = vmatpush1.msra.mxu0 %v1912
        %1951 = vmatprep.subr.mxu0 0.0
        %1952 = vmatpush1.msra.mxu0 %v1911
        %1953 = vmatprep.subr.mxu0 0.0
        %1954 = vmatpush1.msra.mxu0 %v1910
        %1955 = vmatprep.subr.mxu0 0.0
        %1956 = vmatpush1.msra.mxu0 %v1909
        %1957 = vmatprep.subr.mxu0 0.0
        %1958 = vmatpush2.msra.mxu0 0.0
        %1959 = vmatprep.subr.mxu0 0.0
        %1960 = vmatpush2.msra.mxu0 0.0
        %1961 = vmatprep.subr.mxu0 0.0
        %1962 = vmatpush2.msra.mxu0 0.0
        %1963 = vmatprep.subr.mxu0 0.0
        %1964 = vmatpush2.msra.mxu0 0.0
        %1965 = vmatprep.subr.mxu0 0.0
        %1966 = vmatpush2.msra.mxu0 0.0
        %1967 = vmatprep.subr.mxu0 0.0
        %1968 = vmatpush2.msra.mxu0 0.0
        %1969 = vmatprep.subr.mxu0 0.0
        %1970 = vmatpush2.msra.mxu0 0.0
        %1971 = vmatprep.subr.mxu0 0.0
        %1972 = vmatpush2.msra.mxu0 0.0
        %1973 = vmatprep.subr.mxu0 0.0
        %1974 = vmatpush2.msra.mxu0 0.0
        %1975 = vmatprep.subr.mxu0 0.0
        %1976 = vmatpush2.msra.mxu0 0.0
        %1977 = vmatprep.subr.mxu0 0.0
        %1978 = vmatpush2.msra.mxu0 0.0
        %1979 = vmatprep.subr.mxu0 0.0
        %1980 = vmatpush2.msra.mxu0 0.0
        %1981 = vmatprep.subr.mxu0 0.0
        %1982 = vmatpush2.msra.mxu0 0.0
        %1983 = vmatprep.subr.mxu0 0.0
        %1984 = vmatpush2.msra.mxu0 0.0
        %1985 = vmatprep.subr.mxu0 0.0
        %1986 = vmatpush2.msra.mxu0 0.0
        %1987 = vmatprep.subr.mxu0 0.0
        %1988 = vmatpush2.msra.mxu0 0.0
        %1989 = vmatprep.mubr.f32.mxu0 0.0
        %1990 = vmatmul.mubr.f32.gmra.mxu0 %v1257
        %v1991 = vpop.f32.mrf.mxu0
        %v1992 = vadd.f32 0.0, %v1991
        %v1993 = vpop.f32.mrf.mxu0
        %1994 = vmatprep.mubr.f32.mxu0 0.0
        %1995 = vmatmul.mubr.f32.gmra.mxu0 %v1256
        %v1996 = vpop.f32.mrf.mxu0
        %v1997 = vadd.f32 0.0, %v1996
        %v1998 = vpop.f32.mrf.mxu0
        %1999 = vmatprep.mubr.f32.mxu0 0.0
        %2000 = vmatmul.mubr.f32.gmra.mxu0 %v1255
        %v2001 = vpop.f32.mrf.mxu0
        %v2002 = vadd.f32 0.0, %v2001
        %v2003 = vpop.f32.mrf.mxu0
        %2004 = vmatprep.mubr.f32.mxu0 0.0
        %2005 = vmatmul.mubr.f32.gmra.mxu0 %v1254
        %v2006 = vpop.f32.mrf.mxu0
        %v2007 = vadd.f32 0.0, %v2006
        %v2008 = vpop.f32.mrf.mxu0
        %2009 = vmatprep.mubr.f32.mxu0 0.0
        %2010 = vmatmul.mubr.f32.gmra.mxu0 %v1253
        %v2011 = vpop.f32.mrf.mxu0
        %v2012 = vadd.f32 0.0, %v2011
        %v2013 = vpop.f32.mrf.mxu0
        %2014 = vmatprep.mubr.f32.mxu0 0.0
        %2015 = vmatmul.mubr.f32.gmra.mxu0 %v1252
        %v2016 = vpop.f32.mrf.mxu0
        %v2017 = vadd.f32 0.0, %v2016
        %v2018 = vpop.f32.mrf.mxu0
        %2019 = vmatprep.mubr.f32.mxu0 0.0
        %2020 = vmatmul.mubr.f32.gmra.mxu0 %v1251
        %v2021 = vpop.f32.mrf.mxu0
        %v2022 = vadd.f32 0.0, %v2021
        %v2023 = vpop.f32.mrf.mxu0
        %2024 = vmatprep.mubr.f32.mxu0 0.0
        %2025 = vmatmul.mubr.f32.gmra.mxu0 %v1250
        %v2026 = vpop.f32.mrf.mxu0
        %v2027 = vadd.f32 0.0, %v2026
        %v2028 = vpop.f32.mrf.mxu0
        %2029 = vmatprep.mubr.f32.mxu0 0.0
        %2030 = vmatmul.mubr.f32.gmra.mxu0 %v1249
        %v2031 = vpop.f32.mrf.mxu0
        %v2032 = vadd.f32 0.0, %v2031
        %v2033 = vpop.f32.mrf.mxu0
        %2034 = vmatprep.mubr.f32.mxu0 0.0
        %2035 = vmatmul.mubr.f32.gmra.mxu0 %v1248
        %v2036 = vpop.f32.mrf.mxu0
        %v2037 = vadd.f32 0.0, %v2036
        %v2038 = vpop.f32.mrf.mxu0
        %2039 = vmatprep.mubr.f32.mxu0 0.0
        %2040 = vmatmul.mubr.f32.gmra.mxu0 %v1247
        %v2041 = vpop.f32.mrf.mxu0
        %v2042 = vadd.f32 0.0, %v2041
        %v2043 = vpop.f32.mrf.mxu0
        %2044 = vmatprep.mubr.f32.mxu0 0.0
        %2045 = vmatmul.mubr.f32.gmra.mxu0 %v1246
        %v2046 = vpop.f32.mrf.mxu0
        %v2047 = vadd.f32 0.0, %v2046
        %v2048 = vpop.f32.mrf.mxu0
        %2049 = vmatprep.mubr.f32.mxu0 0.0
        %2050 = vmatmul.mubr.f32.gmra.mxu0 %v1245
        %v2051 = vpop.f32.mrf.mxu0
        %v2052 = vadd.f32 0.0, %v2051
        %v2053 = vpop.f32.mrf.mxu0
        %2054 = vmatprep.mubr.f32.mxu0 0.0
        %2055 = vmatmul.mubr.f32.gmra.mxu0 %v1244
        %v2056 = vpop.f32.mrf.mxu0
        %v2057 = vadd.f32 0.0, %v2056
        %v2058 = vpop.f32.mrf.mxu0
        %2059 = vmatprep.mubr.f32.mxu0 0.0
        %2060 = vmatmul.mubr.f32.gmra.mxu0 %v1243
        %v2061 = vpop.f32.mrf.mxu0
        %v2062 = vadd.f32 0.0, %v2061
        %v2063 = vpop.f32.mrf.mxu0
        %2064 = vmatprep.mubr.f32.mxu0 0.0
        %2065 = vmatmul.mubr.f32.gmra.mxu0 %v1242
        %v2066 = vpop.f32.mrf.mxu0
        %v2067 = vadd.f32 0.0, %v2066
        %v2068 = vpop.f32.mrf.mxu0
        %2069 = vmatprep.mubr.f32.mxu0 0.0
        %2070 = vmatmul.mubr.f32.gmra.mxu0 %v1241
        %v2071 = vpop.f32.mrf.mxu0
        %v2072 = vadd.f32 0.0, %v2071
        %v2073 = vpop.f32.mrf.mxu0
        %2074 = vmatprep.mubr.f32.mxu0 0.0
        %2075 = vmatmul.mubr.f32.gmra.mxu0 %v1240
        %v2076 = vpop.f32.mrf.mxu0
        %v2077 = vadd.f32 0.0, %v2076
        %v2078 = vpop.f32.mrf.mxu0
        %2079 = vmatprep.mubr.f32.mxu0 0.0
        %2080 = vmatmul.mubr.f32.gmra.mxu0 %v1239
        %v2081 = vpop.f32.mrf.mxu0
        %v2082 = vadd.f32 0.0, %v2081
        %v2083 = vpop.f32.mrf.mxu0
        %2084 = vmatprep.mubr.f32.mxu0 0.0
        %2085 = vmatmul.mubr.f32.gmra.mxu0 %v1238
        %v2086 = vpop.f32.mrf.mxu0
        %v2087 = vadd.f32 0.0, %v2086
        %v2088 = vpop.f32.mrf.mxu0
        %2089 = vmatprep.mubr.f32.mxu0 0.0
        %2090 = vmatmul.mubr.f32.gmra.mxu0 %v1237
        %v2091 = vpop.f32.mrf.mxu0
        %v2092 = vadd.f32 0.0, %v2091
        %v2093 = vpop.f32.mrf.mxu0
        %2094 = vmatprep.mubr.f32.mxu0 0.0
        %2095 = vmatmul.mubr.f32.gmra.mxu0 %v1236
        %v2096 = vpop.f32.mrf.mxu0
        %v2097 = vadd.f32 0.0, %v2096
        %v2098 = vpop.f32.mrf.mxu0
        %2099 = vmatprep.mubr.f32.mxu0 0.0
        %2100 = vmatmul.mubr.f32.gmra.mxu0 %v1235
        %v2101 = vpop.f32.mrf.mxu0
        %v2102 = vadd.f32 0.0, %v2101
        %v2103 = vpop.f32.mrf.mxu0
        %2104 = vmatprep.mubr.f32.mxu0 0.0
        %2105 = vmatmul.mubr.f32.gmra.mxu0 %v1234
        %v2106 = vpop.f32.mrf.mxu0
        %v2107 = vadd.f32 0.0, %v2106
        %v2108 = vpop.f32.mrf.mxu0
        %2109 = vmatprep.mubr.f32.mxu0 0.0
        %2110 = vmatmul.mubr.f32.gmra.mxu0 %v1233
        %v2111 = vpop.f32.mrf.mxu0
        %v2112 = vadd.f32 0.0, %v2111
        %v2113 = vpop.f32.mrf.mxu0
        %2114 = vmatprep.mubr.f32.mxu0 0.0
        %2115 = vmatmul.mubr.f32.gmra.mxu0 %v1232
        %v2116 = vpop.f32.mrf.mxu0
        %v2117 = vadd.f32 0.0, %v2116
        %v2118 = vpop.f32.mrf.mxu0
        %2119 = vmatprep.mubr.f32.mxu0 0.0
        %2120 = vmatmul.mubr.f32.gmra.mxu0 %v1231
        %v2121 = vpop.f32.mrf.mxu0
        %v2122 = vadd.f32 0.0, %v2121
        %v2123 = vpop.f32.mrf.mxu0
        %2124 = vmatprep.mubr.f32.mxu0 0.0
        %2125 = vmatmul.mubr.f32.gmra.mxu0 %v1230
        %v2126 = vpop.f32.mrf.mxu0
        %v2127 = vadd.f32 0.0, %v2126
        %v2128 = vpop.f32.mrf.mxu0
        %2129 = vmatprep.mubr.f32.mxu0 0.0
        %2130 = vmatmul.mubr.f32.gmra.mxu0 %v1229
        %v2131 = vpop.f32.mrf.mxu0
        %v2132 = vadd.f32 0.0, %v2131
        %v2133 = vpop.f32.mrf.mxu0
        %2134 = vmatprep.mubr.f32.mxu0 0.0
        %2135 = vmatmul.mubr.f32.gmra.mxu0 %v1228
        %v2136 = vpop.f32.mrf.mxu0
        %v2137 = vadd.f32 0.0, %v2136
        %v2138 = vpop.f32.mrf.mxu0
        %2139 = vdwg.mxu0
        %v2140 = vld [vmem:[#allocation4] sm:$0xff]
        %v2141 = vld [vmem:[#allocation4 + $0x8] sm:$0xff]
        %v2142 = vld [vmem:[#allocation4 + $0x10] sm:$0xff]
        %v2143 = vld [vmem:[#allocation4 + $0x18] sm:$0xff]
        %v2144 = vld [vmem:[#allocation4 + $0x20] sm:$0xff]
        %v2145 = vld [vmem:[#allocation4 + $0x28] sm:$0xff]
        %v2146 = vld [vmem:[#allocation4 + $0x30] sm:$0xff]
        %v2147 = vld [vmem:[#allocation4 + $0x38] sm:$0xff]
        %v2148 = vld [vmem:[#allocation4 + $0x40] sm:$0xff]
        %v2149 = vld [vmem:[#allocation4 + $0x48] sm:$0xff]
        %v2150 = vld [vmem:[#allocation4 + $0x50] sm:$0xff]
        %v2151 = vld [vmem:[#allocation4 + $0x58] sm:$0xff]
        %v2152 = vld [vmem:[#allocation4 + $0x60] sm:$0xff]
        %v2153 = vld [vmem:[#allocation4 + $0x68] sm:$0xff]
        %v2154 = vld [vmem:[#allocation4 + $0x70] sm:$0xff]
        %v2155 = vld [vmem:[#allocation4 + $0x78] sm:$0xff]
        %v2156 = vld [vmem:[#allocation4 + $0x80] sm:$0xff]
        %v2157 = vld [vmem:[#allocation4 + $0x88] sm:$0xff]
        %v2158 = vld [vmem:[#allocation4 + $0x90] sm:$0xff]
        %v2159 = vld [vmem:[#allocation4 + $0x98] sm:$0xff]
        %v2160 = vld [vmem:[#allocation4 + $0xa0] sm:$0xff]
        %v2161 = vld [vmem:[#allocation4 + $0xa8] sm:$0xff]
        %v2162 = vld [vmem:[#allocation4 + $0xb0] sm:$0xff]
        %v2163 = vld [vmem:[#allocation4 + $0xb8] sm:$0xff]
        %v2164 = vld [vmem:[#allocation4 + $0xc0] sm:$0xff]
        %v2165 = vld [vmem:[#allocation4 + $0xc8] sm:$0xff]
        %v2166 = vld [vmem:[#allocation4 + $0xd0] sm:$0xff]
        %v2167 = vld [vmem:[#allocation4 + $0xd8] sm:$0xff]
        %v2168 = vld [vmem:[#allocation4 + $0xe0] sm:$0xff]
        %v2169 = vld [vmem:[#allocation4 + $0xe8] sm:$0xff]
        %v2170 = vadd.f32 %v2140, %v1992
        %v2171 = vadd.f32 %v2141, %v1997
        %v2172 = vadd.f32 %v2142, %v2002
        %v2173 = vadd.f32 %v2143, %v2007
        %v2174 = vadd.f32 %v2144, %v2012
        %v2175 = vadd.f32 %v2145, %v2017
        %v2176 = vadd.f32 %v2146, %v2022
        %v2177 = vadd.f32 %v2147, %v2027
        %v2178 = vadd.f32 %v2148, %v2032
        %v2179 = vadd.f32 %v2149, %v2037
        %v2180 = vadd.f32 %v2150, %v2042
        %v2181 = vadd.f32 %v2151, %v2047
        %v2182 = vadd.f32 %v2152, %v2052
        %v2183 = vadd.f32 %v2153, %v2057
        %v2184 = vadd.f32 %v2154, %v2062
        %v2185 = vadd.f32 %v2155, %v2067
        %v2186 = vadd.f32 %v2156, %v2072
        %v2187 = vadd.f32 %v2157, %v2077
        %v2188 = vadd.f32 %v2158, %v2082
        %v2189 = vadd.f32 %v2159, %v2087
        %v2190 = vadd.f32 %v2160, %v2092
        %v2191 = vadd.f32 %v2161, %v2097
        %v2192 = vadd.f32 %v2162, %v2102
        %v2193 = vadd.f32 %v2163, %v2107
        %v2194 = vadd.f32 %v2164, %v2112
        %v2195 = vadd.f32 %v2165, %v2117
        %v2196 = vadd.f32 %v2166, %v2122
        %v2197 = vadd.f32 %v2167, %v2127
        %v2198 = vadd.f32 %v2168, %v2132
        %v2199 = vadd.f32 %v2169, %v2137
        %2200 = vst [vmem:[#allocation4] sm:$0xff] %v2170
        %2201 = vst [vmem:[#allocation4 + $0x8] sm:$0xff] %v2171
        %2202 = vst [vmem:[#allocation4 + $0x10] sm:$0xff] %v2172
        %2203 = vst [vmem:[#allocation4 + $0x18] sm:$0xff] %v2173
        %2204 = vst [vmem:[#allocation4 + $0x20] sm:$0xff] %v2174
        %2205 = vst [vmem:[#allocation4 + $0x28] sm:$0xff] %v2175
        %2206 = vst [vmem:[#allocation4 + $0x30] sm:$0xff] %v2176
        %2207 = vst [vmem:[#allocation4 + $0x38] sm:$0xff] %v2177
        %2208 = vst [vmem:[#allocation4 + $0x40] sm:$0xff] %v2178
        %2209 = vst [vmem:[#allocation4 + $0x48] sm:$0xff] %v2179
        %2210 = vst [vmem:[#allocation4 + $0x50] sm:$0xff] %v2180
        %2211 = vst [vmem:[#allocation4 + $0x58] sm:$0xff] %v2181
        %2212 = vst [vmem:[#allocation4 + $0x60] sm:$0xff] %v2182
        %2213 = vst [vmem:[#allocation4 + $0x68] sm:$0xff] %v2183
        %2214 = vst [vmem:[#allocation4 + $0x70] sm:$0xff] %v2184
        %2215 = vst [vmem:[#allocation4 + $0x78] sm:$0xff] %v2185
        %2216 = vst [vmem:[#allocation4 + $0x80] sm:$0xff] %v2186
        %2217 = vst [vmem:[#allocation4 + $0x88] sm:$0xff] %v2187
        %2218 = vst [vmem:[#allocation4 + $0x90] sm:$0xff] %v2188
        %2219 = vst [vmem:[#allocation4 + $0x98] sm:$0xff] %v2189
        %2220 = vst [vmem:[#allocation4 + $0xa0] sm:$0xff] %v2190
        %2221 = vst [vmem:[#allocation4 + $0xa8] sm:$0xff] %v2191
        %2222 = vst [vmem:[#allocation4 + $0xb0] sm:$0xff] %v2192
        %2223 = vst [vmem:[#allocation4 + $0xb8] sm:$0xff] %v2193
        %2224 = vst [vmem:[#allocation4 + $0xc0] sm:$0xff] %v2194
        %2225 = vst [vmem:[#allocation4 + $0xc8] sm:$0xff] %v2195
        %2226 = vst [vmem:[#allocation4 + $0xd0] sm:$0xff] %v2196
        %2227 = vst [vmem:[#allocation4 + $0xd8] sm:$0xff] %v2197
        %2228 = vst [vmem:[#allocation4 + $0xe0] sm:$0xff] %v2198
        %2229 = vst [vmem:[#allocation4 + $0xe8] sm:$0xff] %v2199
        %v2230 = vrot.slane %v246, 2
        %v2231 = vrot.slane %v247, 2
        %v2232 = vrot.slane %v248, 2
        %v2233 = vrot.slane %v249, 2
        %v2234 = vrot.slane %v250, 2
        %v2235 = vrot.slane %v251, 2
        %v2236 = vrot.slane %v252, 2
        %v2237 = vrot.slane %v253, 2
        %v2238 = vrot.slane %v254, 2
        %v2239 = vrot.slane %v255, 2
        %v2240 = vrot.slane %v256, 2
        %v2241 = vrot.slane %v257, 2
        %v2242 = vrot.slane %v258, 2
        %v2243 = vrot.slane %v259, 2
        %v2244 = vrot.slane %v260, 2
        %v2245 = vrot.slane %v261, 2
        %v2246 = vrot.slane %v262, 2
        %v2247 = vrot.slane %v263, 2
        %v2248 = vrot.slane %v264, 2
        %v2249 = vrot.slane %v265, 2
        %v2250 = vrot.slane %v266, 2
        %v2251 = vrot.slane %v267, 2
        %v2252 = vrot.slane %v268, 2
        %v2253 = vrot.slane %v269, 2
        %v2254 = vrot.slane %v270, 2
        %v2255 = vrot.slane %v271, 2
        %v2256 = vrot.slane %v272, 2
        %v2257 = vrot.slane %v273, 2
        %v2258 = vrot.slane %v274, 2
        %v2259 = vrot.slane %v275, 2
        %v2260 = vrot.slane %v276, 2
        %v2261 = vrot.slane %v277, 2
        %v2262 = vrot.slane %v278, 2
        %v2263 = vrot.slane %v279, 2
        %v2264 = vrot.slane %v280, 2
        %v2265 = vrot.slane %v281, 2
        %v2266 = vrot.slane %v282, 2
        %vm2267 = vcmp.lt.s32.totalorder %v1226, 6
        %v2268 = vsel %vm2267, %v2265, %v2266
        %v2269 = vsel %vm2267, %v2264, %v2265
        %v2270 = vsel %vm2267, %v2263, %v2264
        %v2271 = vsel %vm2267, %v2262, %v2263
        %v2272 = vsel %vm2267, %v2261, %v2262
        %v2273 = vsel %vm2267, %v2260, %v2261
        %v2274 = vsel %vm2267, %v2259, %v2260
        %v2275 = vsel %vm2267, %v2258, %v2259
        %v2276 = vsel %vm2267, %v2257, %v2258
        %v2277 = vsel %vm2267, %v2256, %v2257
        %v2278 = vsel %vm2267, %v2255, %v2256
        %v2279 = vsel %vm2267, %v2254, %v2255
        %v2280 = vsel %vm2267, %v2253, %v2254
        %v2281 = vsel %vm2267, %v2252, %v2253
        %v2282 = vsel %vm2267, %v2251, %v2252
        %v2283 = vsel %vm2267, %v2250, %v2251
        %v2284 = vsel %vm2267, %v2249, %v2250
        %v2285 = vsel %vm2267, %v2248, %v2249
        %v2286 = vsel %vm2267, %v2247, %v2248
        %v2287 = vsel %vm2267, %v2246, %v2247
        %v2288 = vsel %vm2267, %v2245, %v2246
        %v2289 = vsel %vm2267, %v2244, %v2245
        %v2290 = vsel %vm2267, %v2243, %v2244
        %v2291 = vsel %vm2267, %v2242, %v2243
        %v2292 = vsel %vm2267, %v2241, %v2242
        %v2293 = vsel %vm2267, %v2240, %v2241
        %v2294 = vsel %vm2267, %v2239, %v2240
        %v2295 = vsel %vm2267, %v2238, %v2239
        %v2296 = vsel %vm2267, %v2237, %v2238
        %v2297 = vsel %vm2267, %v2236, %v2237
        %v2298 = vsel %vm2267, %v2235, %v2236
        %v2299 = vsel %vm2267, %v2234, %v2235
        %v2300 = vsel %vm2267, %v2233, %v2234
        %v2301 = vsel %vm2267, %v2232, %v2233
        %v2302 = vsel %vm2267, %v2231, %v2232
        %v2303 = vsel %vm2267, %v2230, %v2231
        %s2304 = scalar_lea.vmem [#allocation5], 256
        %v2305 = vld [vmem:[%s2304] sm:$0xff]
        %v2306 = vld [vmem:[%s2304 + $0x8] sm:$0xff]
        %v2307 = vld [vmem:[%s2304 + $0x10] sm:$0xff]
        %v2308 = vld [vmem:[%s2304 + $0x18] sm:$0xff]
        %v2309 = vld [vmem:[%s2304 + $0x20] sm:$0xff]
        %v2310 = vld [vmem:[%s2304 + $0x28] sm:$0xff]
        %v2311 = vld [vmem:[%s2304 + $0x30] sm:$0xff]
        %v2312 = vld [vmem:[%s2304 + $0x38] sm:$0xff]
        %v2313 = vld [vmem:[%s2304 + $0x40] sm:$0xff]
        %v2314 = vld [vmem:[%s2304 + $0x48] sm:$0xff]
        %v2315 = vld [vmem:[%s2304 + $0x50] sm:$0xff]
        %v2316 = vld [vmem:[%s2304 + $0x58] sm:$0xff]
        %v2317 = vld [vmem:[%s2304 + $0x60] sm:$0xff]
        %v2318 = vld [vmem:[%s2304 + $0x68] sm:$0xff]
        %v2319 = vld [vmem:[%s2304 + $0x70] sm:$0xff]
        %v2320 = vld [vmem:[%s2304 + $0x78] sm:$0xff]
        %2321 = vmatprep.subr.mxu0 0.0
        %2322 = vmatpush1.msra.mxu0 %v2320
        %2323 = vmatprep.subr.mxu0 0.0
        %2324 = vmatpush1.msra.mxu0 %v2319
        %2325 = vmatprep.subr.mxu0 0.0
        %2326 = vmatpush1.msra.mxu0 %v2318
        %2327 = vmatprep.subr.mxu0 0.0
        %2328 = vmatpush1.msra.mxu0 %v2317
        %2329 = vmatprep.subr.mxu0 0.0
        %2330 = vmatpush1.msra.mxu0 %v2316
        %2331 = vmatprep.subr.mxu0 0.0
        %2332 = vmatpush1.msra.mxu0 %v2315
        %2333 = vmatprep.subr.mxu0 0.0
        %2334 = vmatpush1.msra.mxu0 %v2314
        %2335 = vmatprep.subr.mxu0 0.0
        %2336 = vmatpush1.msra.mxu0 %v2313
        %2337 = vmatprep.subr.mxu0 0.0
        %2338 = vmatpush1.msra.mxu0 %v2312
        %2339 = vmatprep.subr.mxu0 0.0
        %2340 = vmatpush1.msra.mxu0 %v2311
        %2341 = vmatprep.subr.mxu0 0.0
        %2342 = vmatpush1.msra.mxu0 %v2310
        %2343 = vmatprep.subr.mxu0 0.0
        %2344 = vmatpush1.msra.mxu0 %v2309
        %2345 = vmatprep.subr.mxu0 0.0
        %2346 = vmatpush1.msra.mxu0 %v2308
        %2347 = vmatprep.subr.mxu0 0.0
        %2348 = vmatpush1.msra.mxu0 %v2307
        %2349 = vmatprep.subr.mxu0 0.0
        %2350 = vmatpush1.msra.mxu0 %v2306
        %2351 = vmatprep.subr.mxu0 0.0
        %2352 = vmatpush1.msra.mxu0 %v2305
        %2353 = vmatprep.subr.mxu0 0.0
        %2354 = vmatpush2.msra.mxu0 0.0
        %2355 = vmatprep.subr.mxu0 0.0
        %2356 = vmatpush2.msra.mxu0 0.0
        %2357 = vmatprep.subr.mxu0 0.0
        %2358 = vmatpush2.msra.mxu0 0.0
        %2359 = vmatprep.subr.mxu0 0.0
        %2360 = vmatpush2.msra.mxu0 0.0
        %2361 = vmatprep.subr.mxu0 0.0
        %2362 = vmatpush2.msra.mxu0 0.0
        %2363 = vmatprep.subr.mxu0 0.0
        %2364 = vmatpush2.msra.mxu0 0.0
        %2365 = vmatprep.subr.mxu0 0.0
        %2366 = vmatpush2.msra.mxu0 0.0
        %2367 = vmatprep.subr.mxu0 0.0
        %2368 = vmatpush2.msra.mxu0 0.0
        %2369 = vmatprep.subr.mxu0 0.0
        %2370 = vmatpush2.msra.mxu0 0.0
        %2371 = vmatprep.subr.mxu0 0.0
        %2372 = vmatpush2.msra.mxu0 0.0
        %2373 = vmatprep.subr.mxu0 0.0
        %2374 = vmatpush2.msra.mxu0 0.0
        %2375 = vmatprep.subr.mxu0 0.0
        %2376 = vmatpush2.msra.mxu0 0.0
        %2377 = vmatprep.subr.mxu0 0.0
        %2378 = vmatpush2.msra.mxu0 0.0
        %2379 = vmatprep.subr.mxu0 0.0
        %2380 = vmatpush2.msra.mxu0 0.0
        %2381 = vmatprep.subr.mxu0 0.0
        %2382 = vmatpush2.msra.mxu0 0.0
        %2383 = vmatprep.subr.mxu0 0.0
        %2384 = vmatpush2.msra.mxu0 0.0
        %2385 = vmatprep.mubr.f32.mxu0 0.0
        %2386 = vmatmul.mubr.f32.gmra.mxu0 %v2303
        %v2387 = vpop.f32.mrf.mxu0
        %v2388 = vadd.f32 0.0, %v2387
        %v2389 = vpop.f32.mrf.mxu0
        %2390 = vmatprep.mubr.f32.mxu0 0.0
        %2391 = vmatmul.mubr.f32.gmra.mxu0 %v2302
        %v2392 = vpop.f32.mrf.mxu0
        %v2393 = vadd.f32 0.0, %v2392
        %v2394 = vpop.f32.mrf.mxu0
        %2395 = vmatprep.mubr.f32.mxu0 0.0
        %2396 = vmatmul.mubr.f32.gmra.mxu0 %v2301
        %v2397 = vpop.f32.mrf.mxu0
        %v2398 = vadd.f32 0.0, %v2397
        %v2399 = vpop.f32.mrf.mxu0
        %2400 = vmatprep.mubr.f32.mxu0 0.0
        %2401 = vmatmul.mubr.f32.gmra.mxu0 %v2300
        %v2402 = vpop.f32.mrf.mxu0
        %v2403 = vadd.f32 0.0, %v2402
        %v2404 = vpop.f32.mrf.mxu0
        %2405 = vmatprep.mubr.f32.mxu0 0.0
        %2406 = vmatmul.mubr.f32.gmra.mxu0 %v2299
        %v2407 = vpop.f32.mrf.mxu0
        %v2408 = vadd.f32 0.0, %v2407
        %v2409 = vpop.f32.mrf.mxu0
        %2410 = vmatprep.mubr.f32.mxu0 0.0
        %2411 = vmatmul.mubr.f32.gmra.mxu0 %v2298
        %v2412 = vpop.f32.mrf.mxu0
        %v2413 = vadd.f32 0.0, %v2412
        %v2414 = vpop.f32.mrf.mxu0
        %2415 = vmatprep.mubr.f32.mxu0 0.0
        %2416 = vmatmul.mubr.f32.gmra.mxu0 %v2297
        %v2417 = vpop.f32.mrf.mxu0
        %v2418 = vadd.f32 0.0, %v2417
        %v2419 = vpop.f32.mrf.mxu0
        %2420 = vmatprep.mubr.f32.mxu0 0.0
        %2421 = vmatmul.mubr.f32.gmra.mxu0 %v2296
        %v2422 = vpop.f32.mrf.mxu0
        %v2423 = vadd.f32 0.0, %v2422
        %v2424 = vpop.f32.mrf.mxu0
        %2425 = vmatprep.mubr.f32.mxu0 0.0
        %2426 = vmatmul.mubr.f32.gmra.mxu0 %v2295
        %v2427 = vpop.f32.mrf.mxu0
        %v2428 = vadd.f32 0.0, %v2427
        %v2429 = vpop.f32.mrf.mxu0
        %2430 = vmatprep.mubr.f32.mxu0 0.0
        %2431 = vmatmul.mubr.f32.gmra.mxu0 %v2294
        %v2432 = vpop.f32.mrf.mxu0
        %v2433 = vadd.f32 0.0, %v2432
        %v2434 = vpop.f32.mrf.mxu0
        %2435 = vmatprep.mubr.f32.mxu0 0.0
        %2436 = vmatmul.mubr.f32.gmra.mxu0 %v2293
        %v2437 = vpop.f32.mrf.mxu0
        %v2438 = vadd.f32 0.0, %v2437
        %v2439 = vpop.f32.mrf.mxu0
        %2440 = vmatprep.mubr.f32.mxu0 0.0
        %2441 = vmatmul.mubr.f32.gmra.mxu0 %v2292
        %v2442 = vpop.f32.mrf.mxu0
        %v2443 = vadd.f32 0.0, %v2442
        %v2444 = vpop.f32.mrf.mxu0
        %2445 = vmatprep.mubr.f32.mxu0 0.0
        %2446 = vmatmul.mubr.f32.gmra.mxu0 %v2291
        %v2447 = vpop.f32.mrf.mxu0
        %v2448 = vadd.f32 0.0, %v2447
        %v2449 = vpop.f32.mrf.mxu0
        %2450 = vmatprep.mubr.f32.mxu0 0.0
        %2451 = vmatmul.mubr.f32.gmra.mxu0 %v2290
        %v2452 = vpop.f32.mrf.mxu0
        %v2453 = vadd.f32 0.0, %v2452
        %v2454 = vpop.f32.mrf.mxu0
        %2455 = vmatprep.mubr.f32.mxu0 0.0
        %2456 = vmatmul.mubr.f32.gmra.mxu0 %v2289
        %v2457 = vpop.f32.mrf.mxu0
        %v2458 = vadd.f32 0.0, %v2457
        %v2459 = vpop.f32.mrf.mxu0
        %2460 = vmatprep.mubr.f32.mxu0 0.0
        %2461 = vmatmul.mubr.f32.gmra.mxu0 %v2288
        %v2462 = vpop.f32.mrf.mxu0
        %v2463 = vadd.f32 0.0, %v2462
        %v2464 = vpop.f32.mrf.mxu0
        %2465 = vmatprep.mubr.f32.mxu0 0.0
        %2466 = vmatmul.mubr.f32.gmra.mxu0 %v2287
        %v2467 = vpop.f32.mrf.mxu0
        %v2468 = vadd.f32 0.0, %v2467
        %v2469 = vpop.f32.mrf.mxu0
        %2470 = vmatprep.mubr.f32.mxu0 0.0
        %2471 = vmatmul.mubr.f32.gmra.mxu0 %v2286
        %v2472 = vpop.f32.mrf.mxu0
        %v2473 = vadd.f32 0.0, %v2472
        %v2474 = vpop.f32.mrf.mxu0
        %2475 = vmatprep.mubr.f32.mxu0 0.0
        %2476 = vmatmul.mubr.f32.gmra.mxu0 %v2285
        %v2477 = vpop.f32.mrf.mxu0
        %v2478 = vadd.f32 0.0, %v2477
        %v2479 = vpop.f32.mrf.mxu0
        %2480 = vmatprep.mubr.f32.mxu0 0.0
        %2481 = vmatmul.mubr.f32.gmra.mxu0 %v2284
        %v2482 = vpop.f32.mrf.mxu0
        %v2483 = vadd.f32 0.0, %v2482
        %v2484 = vpop.f32.mrf.mxu0
        %2485 = vmatprep.mubr.f32.mxu0 0.0
        %2486 = vmatmul.mubr.f32.gmra.mxu0 %v2283
        %v2487 = vpop.f32.mrf.mxu0
        %v2488 = vadd.f32 0.0, %v2487
        %v2489 = vpop.f32.mrf.mxu0
        %2490 = vmatprep.mubr.f32.mxu0 0.0
        %2491 = vmatmul.mubr.f32.gmra.mxu0 %v2282
        %v2492 = vpop.f32.mrf.mxu0
        %v2493 = vadd.f32 0.0, %v2492
        %v2494 = vpop.f32.mrf.mxu0
        %2495 = vmatprep.mubr.f32.mxu0 0.0
        %2496 = vmatmul.mubr.f32.gmra.mxu0 %v2281
        %v2497 = vpop.f32.mrf.mxu0
        %v2498 = vadd.f32 0.0, %v2497
        %v2499 = vpop.f32.mrf.mxu0
        %2500 = vmatprep.mubr.f32.mxu0 0.0
        %2501 = vmatmul.mubr.f32.gmra.mxu0 %v2280
        %v2502 = vpop.f32.mrf.mxu0
        %v2503 = vadd.f32 0.0, %v2502
        %v2504 = vpop.f32.mrf.mxu0
        %2505 = vmatprep.mubr.f32.mxu0 0.0
        %2506 = vmatmul.mubr.f32.gmra.mxu0 %v2279
        %v2507 = vpop.f32.mrf.mxu0
        %v2508 = vadd.f32 0.0, %v2507
        %v2509 = vpop.f32.mrf.mxu0
        %2510 = vmatprep.mubr.f32.mxu0 0.0
        %2511 = vmatmul.mubr.f32.gmra.mxu0 %v2278
        %v2512 = vpop.f32.mrf.mxu0
        %v2513 = vadd.f32 0.0, %v2512
        %v2514 = vpop.f32.mrf.mxu0
        %2515 = vmatprep.mubr.f32.mxu0 0.0
        %2516 = vmatmul.mubr.f32.gmra.mxu0 %v2277
        %v2517 = vpop.f32.mrf.mxu0
        %v2518 = vadd.f32 0.0, %v2517
        %v2519 = vpop.f32.mrf.mxu0
        %2520 = vmatprep.mubr.f32.mxu0 0.0
        %2521 = vmatmul.mubr.f32.gmra.mxu0 %v2276
        %v2522 = vpop.f32.mrf.mxu0
        %v2523 = vadd.f32 0.0, %v2522
        %v2524 = vpop.f32.mrf.mxu0
        %2525 = vmatprep.mubr.f32.mxu0 0.0
        %2526 = vmatmul.mubr.f32.gmra.mxu0 %v2275
        %v2527 = vpop.f32.mrf.mxu0
        %v2528 = vadd.f32 0.0, %v2527
        %v2529 = vpop.f32.mrf.mxu0
        %2530 = vmatprep.mubr.f32.mxu0 0.0
        %2531 = vmatmul.mubr.f32.gmra.mxu0 %v2274
        %v2532 = vpop.f32.mrf.mxu0
        %v2533 = vadd.f32 0.0, %v2532
        %v2534 = vpop.f32.mrf.mxu0
        %2535 = vdwg.mxu0
        %v2536 = vld [vmem:[#allocation4] sm:$0xff]
        %v2537 = vld [vmem:[#allocation4 + $0x8] sm:$0xff]
        %v2538 = vld [vmem:[#allocation4 + $0x10] sm:$0xff]
        %v2539 = vld [vmem:[#allocation4 + $0x18] sm:$0xff]
        %v2540 = vld [vmem:[#allocation4 + $0x20] sm:$0xff]
        %v2541 = vld [vmem:[#allocation4 + $0x28] sm:$0xff]
        %v2542 = vld [vmem:[#allocation4 + $0x30] sm:$0xff]
        %v2543 = vld [vmem:[#allocation4 + $0x38] sm:$0xff]
        %v2544 = vld [vmem:[#allocation4 + $0x40] sm:$0xff]
        %v2545 = vld [vmem:[#allocation4 + $0x48] sm:$0xff]
        %v2546 = vld [vmem:[#allocation4 + $0x50] sm:$0xff]
        %v2547 = vld [vmem:[#allocation4 + $0x58] sm:$0xff]
        %v2548 = vld [vmem:[#allocation4 + $0x60] sm:$0xff]
        %v2549 = vld [vmem:[#allocation4 + $0x68] sm:$0xff]
        %v2550 = vld [vmem:[#allocation4 + $0x70] sm:$0xff]
        %v2551 = vld [vmem:[#allocation4 + $0x78] sm:$0xff]
        %v2552 = vld [vmem:[#allocation4 + $0x80] sm:$0xff]
        %v2553 = vld [vmem:[#allocation4 + $0x88] sm:$0xff]
        %v2554 = vld [vmem:[#allocation4 + $0x90] sm:$0xff]
        %v2555 = vld [vmem:[#allocation4 + $0x98] sm:$0xff]
        %v2556 = vld [vmem:[#allocation4 + $0xa0] sm:$0xff]
        %v2557 = vld [vmem:[#allocation4 + $0xa8] sm:$0xff]
        %v2558 = vld [vmem:[#allocation4 + $0xb0] sm:$0xff]
        %v2559 = vld [vmem:[#allocation4 + $0xb8] sm:$0xff]
        %v2560 = vld [vmem:[#allocation4 + $0xc0] sm:$0xff]
        %v2561 = vld [vmem:[#allocation4 + $0xc8] sm:$0xff]
        %v2562 = vld [vmem:[#allocation4 + $0xd0] sm:$0xff]
        %v2563 = vld [vmem:[#allocation4 + $0xd8] sm:$0xff]
        %v2564 = vld [vmem:[#allocation4 + $0xe0] sm:$0xff]
        %v2565 = vld [vmem:[#allocation4 + $0xe8] sm:$0xff]
        %v2566 = vadd.f32 %v2536, %v2388
        %v2567 = vadd.f32 %v2537, %v2393
        %v2568 = vadd.f32 %v2538, %v2398
        %v2569 = vadd.f32 %v2539, %v2403
        %v2570 = vadd.f32 %v2540, %v2408
        %v2571 = vadd.f32 %v2541, %v2413
        %v2572 = vadd.f32 %v2542, %v2418
        %v2573 = vadd.f32 %v2543, %v2423
        %v2574 = vadd.f32 %v2544, %v2428
        %v2575 = vadd.f32 %v2545, %v2433
        %v2576 = vadd.f32 %v2546, %v2438
        %v2577 = vadd.f32 %v2547, %v2443
        %v2578 = vadd.f32 %v2548, %v2448
        %v2579 = vadd.f32 %v2549, %v2453
        %v2580 = vadd.f32 %v2550, %v2458
        %v2581 = vadd.f32 %v2551, %v2463
        %v2582 = vadd.f32 %v2552, %v2468
        %v2583 = vadd.f32 %v2553, %v2473
        %v2584 = vadd.f32 %v2554, %v2478
        %v2585 = vadd.f32 %v2555, %v2483
        %v2586 = vadd.f32 %v2556, %v2488
        %v2587 = vadd.f32 %v2557, %v2493
        %v2588 = vadd.f32 %v2558, %v2498
        %v2589 = vadd.f32 %v2559, %v2503
        %v2590 = vadd.f32 %v2560, %v2508
        %v2591 = vadd.f32 %v2561, %v2513
        %v2592 = vadd.f32 %v2562, %v2518
        %v2593 = vadd.f32 %v2563, %v2523
        %v2594 = vadd.f32 %v2564, %v2528
        %v2595 = vadd.f32 %v2565, %v2533
        %2596 = vst [vmem:[#allocation4] sm:$0xff] %v2566
        %2597 = vst [vmem:[#allocation4 + $0x8] sm:$0xff] %v2567
        %2598 = vst [vmem:[#allocation4 + $0x10] sm:$0xff] %v2568
        %2599 = vst [vmem:[#allocation4 + $0x18] sm:$0xff] %v2569
        %2600 = vst [vmem:[#allocation4 + $0x20] sm:$0xff] %v2570
        %2601 = vst [vmem:[#allocation4 + $0x28] sm:$0xff] %v2571
        %2602 = vst [vmem:[#allocation4 + $0x30] sm:$0xff] %v2572
        %2603 = vst [vmem:[#allocation4 + $0x38] sm:$0xff] %v2573
        %2604 = vst [vmem:[#allocation4 + $0x40] sm:$0xff] %v2574
        %2605 = vst [vmem:[#allocation4 + $0x48] sm:$0xff] %v2575
        %2606 = vst [vmem:[#allocation4 + $0x50] sm:$0xff] %v2576
        %2607 = vst [vmem:[#allocation4 + $0x58] sm:$0xff] %v2577
        %2608 = vst [vmem:[#allocation4 + $0x60] sm:$0xff] %v2578
        %2609 = vst [vmem:[#allocation4 + $0x68] sm:$0xff] %v2579
        %2610 = vst [vmem:[#allocation4 + $0x70] sm:$0xff] %v2580
        %2611 = vst [vmem:[#allocation4 + $0x78] sm:$0xff] %v2581
        %2612 = vst [vmem:[#allocation4 + $0x80] sm:$0xff] %v2582
        %2613 = vst [vmem:[#allocation4 + $0x88] sm:$0xff] %v2583
        %2614 = vst [vmem:[#allocation4 + $0x90] sm:$0xff] %v2584
        %2615 = vst [vmem:[#allocation4 + $0x98] sm:$0xff] %v2585
        %2616 = vst [vmem:[#allocation4 + $0xa0] sm:$0xff] %v2586
        %2617 = vst [vmem:[#allocation4 + $0xa8] sm:$0xff] %v2587
        %2618 = vst [vmem:[#allocation4 + $0xb0] sm:$0xff] %v2588
        %2619 = vst [vmem:[#allocation4 + $0xb8] sm:$0xff] %v2589
        %2620 = vst [vmem:[#allocation4 + $0xc0] sm:$0xff] %v2590
        %2621 = vst [vmem:[#allocation4 + $0xc8] sm:$0xff] %v2591
        %2622 = vst [vmem:[#allocation4 + $0xd0] sm:$0xff] %v2592
        %2623 = vst [vmem:[#allocation4 + $0xd8] sm:$0xff] %v2593
        %2624 = vst [vmem:[#allocation4 + $0xe0] sm:$0xff] %v2594
        %2625 = vst [vmem:[#allocation4 + $0xe8] sm:$0xff] %v2595
        %s2626 = scalar_lea.vmem [#allocation5], 640
        %v2627 = vld [vmem:[%s2626] sm:$0xff]
        %v2628 = vld [vmem:[%s2626 + $0x8] sm:$0xff]
        %v2629 = vld [vmem:[%s2626 + $0x10] sm:$0xff]
        %v2630 = vld [vmem:[%s2626 + $0x18] sm:$0xff]
        %v2631 = vld [vmem:[%s2626 + $0x20] sm:$0xff]
        %v2632 = vld [vmem:[%s2626 + $0x28] sm:$0xff]
        %v2633 = vld [vmem:[%s2626 + $0x30] sm:$0xff]
        %v2634 = vld [vmem:[%s2626 + $0x38] sm:$0xff]
        %v2635 = vld [vmem:[%s2626 + $0x40] sm:$0xff]
        %v2636 = vld [vmem:[%s2626 + $0x48] sm:$0xff]
        %v2637 = vld [vmem:[%s2626 + $0x50] sm:$0xff]
        %v2638 = vld [vmem:[%s2626 + $0x58] sm:$0xff]
        %v2639 = vld [vmem:[%s2626 + $0x60] sm:$0xff]
        %v2640 = vld [vmem:[%s2626 + $0x68] sm:$0xff]
        %v2641 = vld [vmem:[%s2626 + $0x70] sm:$0xff]
        %v2642 = vld [vmem:[%s2626 + $0x78] sm:$0xff]
        %2643 = vmatprep.subr.mxu0 0.0
        %2644 = vmatpush1.msra.mxu0 %v2642
        %2645 = vmatprep.subr.mxu0 0.0
        %2646 = vmatpush1.msra.mxu0 %v2641
        %2647 = vmatprep.subr.mxu0 0.0
        %2648 = vmatpush1.msra.mxu0 %v2640
        %2649 = vmatprep.subr.mxu0 0.0
        %2650 = vmatpush1.msra.mxu0 %v2639
        %2651 = vmatprep.subr.mxu0 0.0
        %2652 = vmatpush1.msra.mxu0 %v2638
        %2653 = vmatprep.subr.mxu0 0.0
        %2654 = vmatpush1.msra.mxu0 %v2637
        %2655 = vmatprep.subr.mxu0 0.0
        %2656 = vmatpush1.msra.mxu0 %v2636
        %2657 = vmatprep.subr.mxu0 0.0
        %2658 = vmatpush1.msra.mxu0 %v2635
        %2659 = vmatprep.subr.mxu0 0.0
        %2660 = vmatpush1.msra.mxu0 %v2634
        %2661 = vmatprep.subr.mxu0 0.0
        %2662 = vmatpush1.msra.mxu0 %v2633
        %2663 = vmatprep.subr.mxu0 0.0
        %2664 = vmatpush1.msra.mxu0 %v2632
        %2665 = vmatprep.subr.mxu0 0.0
        %2666 = vmatpush1.msra.mxu0 %v2631
        %2667 = vmatprep.subr.mxu0 0.0
        %2668 = vmatpush1.msra.mxu0 %v2630
        %2669 = vmatprep.subr.mxu0 0.0
        %2670 = vmatpush1.msra.mxu0 %v2629
        %2671 = vmatprep.subr.mxu0 0.0
        %2672 = vmatpush1.msra.mxu0 %v2628
        %2673 = vmatprep.subr.mxu0 0.0
        %2674 = vmatpush1.msra.mxu0 %v2627
        %2675 = vmatprep.subr.mxu0 0.0
        %2676 = vmatpush2.msra.mxu0 0.0
        %2677 = vmatprep.subr.mxu0 0.0
        %2678 = vmatpush2.msra.mxu0 0.0
        %2679 = vmatprep.subr.mxu0 0.0
        %2680 = vmatpush2.msra.mxu0 0.0
        %2681 = vmatprep.subr.mxu0 0.0
        %2682 = vmatpush2.msra.mxu0 0.0
        %2683 = vmatprep.subr.mxu0 0.0
        %2684 = vmatpush2.msra.mxu0 0.0
        %2685 = vmatprep.subr.mxu0 0.0
        %2686 = vmatpush2.msra.mxu0 0.0
        %2687 = vmatprep.subr.mxu0 0.0
        %2688 = vmatpush2.msra.mxu0 0.0
        %2689 = vmatprep.subr.mxu0 0.0
        %2690 = vmatpush2.msra.mxu0 0.0
        %2691 = vmatprep.subr.mxu0 0.0
        %2692 = vmatpush2.msra.mxu0 0.0
        %2693 = vmatprep.subr.mxu0 0.0
        %2694 = vmatpush2.msra.mxu0 0.0
        %2695 = vmatprep.subr.mxu0 0.0
        %2696 = vmatpush2.msra.mxu0 0.0
        %2697 = vmatprep.subr.mxu0 0.0
        %2698 = vmatpush2.msra.mxu0 0.0
        %2699 = vmatprep.subr.mxu0 0.0
        %2700 = vmatpush2.msra.mxu0 0.0
        %2701 = vmatprep.subr.mxu0 0.0
        %2702 = vmatpush2.msra.mxu0 0.0
        %2703 = vmatprep.subr.mxu0 0.0
        %2704 = vmatpush2.msra.mxu0 0.0
        %2705 = vmatprep.subr.mxu0 0.0
        %2706 = vmatpush2.msra.mxu0 0.0
        %2707 = vmatprep.mubr.f32.mxu0 0.0
        %2708 = vmatmul.mubr.f32.gmra.mxu0 %v2300
        %v2709 = vpop.f32.mrf.mxu0
        %v2710 = vadd.f32 0.0, %v2709
        %v2711 = vpop.f32.mrf.mxu0
        %2712 = vmatprep.mubr.f32.mxu0 0.0
        %2713 = vmatmul.mubr.f32.gmra.mxu0 %v2299
        %v2714 = vpop.f32.mrf.mxu0
        %v2715 = vadd.f32 0.0, %v2714
        %v2716 = vpop.f32.mrf.mxu0
        %2717 = vmatprep.mubr.f32.mxu0 0.0
        %2718 = vmatmul.mubr.f32.gmra.mxu0 %v2298
        %v2719 = vpop.f32.mrf.mxu0
        %v2720 = vadd.f32 0.0, %v2719
        %v2721 = vpop.f32.mrf.mxu0
        %2722 = vmatprep.mubr.f32.mxu0 0.0
        %2723 = vmatmul.mubr.f32.gmra.mxu0 %v2297
        %v2724 = vpop.f32.mrf.mxu0
        %v2725 = vadd.f32 0.0, %v2724
        %v2726 = vpop.f32.mrf.mxu0
        %2727 = vmatprep.mubr.f32.mxu0 0.0
        %2728 = vmatmul.mubr.f32.gmra.mxu0 %v2296
        %v2729 = vpop.f32.mrf.mxu0
        %v2730 = vadd.f32 0.0, %v2729
        %v2731 = vpop.f32.mrf.mxu0
        %2732 = vmatprep.mubr.f32.mxu0 0.0
        %2733 = vmatmul.mubr.f32.gmra.mxu0 %v2295
        %v2734 = vpop.f32.mrf.mxu0
        %v2735 = vadd.f32 0.0, %v2734
        %v2736 = vpop.f32.mrf.mxu0
        %2737 = vmatprep.mubr.f32.mxu0 0.0
        %2738 = vmatmul.mubr.f32.gmra.mxu0 %v2294
        %v2739 = vpop.f32.mrf.mxu0
        %v2740 = vadd.f32 0.0, %v2739
        %v2741 = vpop.f32.mrf.mxu0
        %2742 = vmatprep.mubr.f32.mxu0 0.0
        %2743 = vmatmul.mubr.f32.gmra.mxu0 %v2293
        %v2744 = vpop.f32.mrf.mxu0
        %v2745 = vadd.f32 0.0, %v2744
        %v2746 = vpop.f32.mrf.mxu0
        %2747 = vmatprep.mubr.f32.mxu0 0.0
        %2748 = vmatmul.mubr.f32.gmra.mxu0 %v2292
        %v2749 = vpop.f32.mrf.mxu0
        %v2750 = vadd.f32 0.0, %v2749
        %v2751 = vpop.f32.mrf.mxu0
        %2752 = vmatprep.mubr.f32.mxu0 0.0
        %2753 = vmatmul.mubr.f32.gmra.mxu0 %v2291
        %v2754 = vpop.f32.mrf.mxu0
        %v2755 = vadd.f32 0.0, %v2754
        %v2756 = vpop.f32.mrf.mxu0
        %2757 = vmatprep.mubr.f32.mxu0 0.0
        %2758 = vmatmul.mubr.f32.gmra.mxu0 %v2290
        %v2759 = vpop.f32.mrf.mxu0
        %v2760 = vadd.f32 0.0, %v2759
        %v2761 = vpop.f32.mrf.mxu0
        %2762 = vmatprep.mubr.f32.mxu0 0.0
        %2763 = vmatmul.mubr.f32.gmra.mxu0 %v2289
        %v2764 = vpop.f32.mrf.mxu0
        %v2765 = vadd.f32 0.0, %v2764
        %v2766 = vpop.f32.mrf.mxu0
        %2767 = vmatprep.mubr.f32.mxu0 0.0
        %2768 = vmatmul.mubr.f32.gmra.mxu0 %v2288
        %v2769 = vpop.f32.mrf.mxu0
        %v2770 = vadd.f32 0.0, %v2769
        %v2771 = vpop.f32.mrf.mxu0
        %2772 = vmatprep.mubr.f32.mxu0 0.0
        %2773 = vmatmul.mubr.f32.gmra.mxu0 %v2287
        %v2774 = vpop.f32.mrf.mxu0
        %v2775 = vadd.f32 0.0, %v2774
        %v2776 = vpop.f32.mrf.mxu0
        %2777 = vmatprep.mubr.f32.mxu0 0.0
        %2778 = vmatmul.mubr.f32.gmra.mxu0 %v2286
        %v2779 = vpop.f32.mrf.mxu0
        %v2780 = vadd.f32 0.0, %v2779
        %v2781 = vpop.f32.mrf.mxu0
        %2782 = vmatprep.mubr.f32.mxu0 0.0
        %2783 = vmatmul.mubr.f32.gmra.mxu0 %v2285
        %v2784 = vpop.f32.mrf.mxu0
        %v2785 = vadd.f32 0.0, %v2784
        %v2786 = vpop.f32.mrf.mxu0
        %2787 = vmatprep.mubr.f32.mxu0 0.0
        %2788 = vmatmul.mubr.f32.gmra.mxu0 %v2284
        %v2789 = vpop.f32.mrf.mxu0
        %v2790 = vadd.f32 0.0, %v2789
        %v2791 = vpop.f32.mrf.mxu0
        %2792 = vmatprep.mubr.f32.mxu0 0.0
        %2793 = vmatmul.mubr.f32.gmra.mxu0 %v2283
        %v2794 = vpop.f32.mrf.mxu0
        %v2795 = vadd.f32 0.0, %v2794
        %v2796 = vpop.f32.mrf.mxu0
        %2797 = vmatprep.mubr.f32.mxu0 0.0
        %2798 = vmatmul.mubr.f32.gmra.mxu0 %v2282
        %v2799 = vpop.f32.mrf.mxu0
        %v2800 = vadd.f32 0.0, %v2799
        %v2801 = vpop.f32.mrf.mxu0
        %2802 = vmatprep.mubr.f32.mxu0 0.0
        %2803 = vmatmul.mubr.f32.gmra.mxu0 %v2281
        %v2804 = vpop.f32.mrf.mxu0
        %v2805 = vadd.f32 0.0, %v2804
        %v2806 = vpop.f32.mrf.mxu0
        %2807 = vmatprep.mubr.f32.mxu0 0.0
        %2808 = vmatmul.mubr.f32.gmra.mxu0 %v2280
        %v2809 = vpop.f32.mrf.mxu0
        %v2810 = vadd.f32 0.0, %v2809
        %v2811 = vpop.f32.mrf.mxu0
        %2812 = vmatprep.mubr.f32.mxu0 0.0
        %2813 = vmatmul.mubr.f32.gmra.mxu0 %v2279
        %v2814 = vpop.f32.mrf.mxu0
        %v2815 = vadd.f32 0.0, %v2814
        %v2816 = vpop.f32.mrf.mxu0
        %2817 = vmatprep.mubr.f32.mxu0 0.0
        %2818 = vmatmul.mubr.f32.gmra.mxu0 %v2278
        %v2819 = vpop.f32.mrf.mxu0
        %v2820 = vadd.f32 0.0, %v2819
        %v2821 = vpop.f32.mrf.mxu0
        %2822 = vmatprep.mubr.f32.mxu0 0.0
        %2823 = vmatmul.mubr.f32.gmra.mxu0 %v2277
        %v2824 = vpop.f32.mrf.mxu0
        %v2825 = vadd.f32 0.0, %v2824
        %v2826 = vpop.f32.mrf.mxu0
        %2827 = vmatprep.mubr.f32.mxu0 0.0
        %2828 = vmatmul.mubr.f32.gmra.mxu0 %v2276
        %v2829 = vpop.f32.mrf.mxu0
        %v2830 = vadd.f32 0.0, %v2829
        %v2831 = vpop.f32.mrf.mxu0
        %2832 = vmatprep.mubr.f32.mxu0 0.0
        %2833 = vmatmul.mubr.f32.gmra.mxu0 %v2275
        %v2834 = vpop.f32.mrf.mxu0
        %v2835 = vadd.f32 0.0, %v2834
        %v2836 = vpop.f32.mrf.mxu0
        %2837 = vmatprep.mubr.f32.mxu0 0.0
        %2838 = vmatmul.mubr.f32.gmra.mxu0 %v2274
        %v2839 = vpop.f32.mrf.mxu0
        %v2840 = vadd.f32 0.0, %v2839
        %v2841 = vpop.f32.mrf.mxu0
        %2842 = vmatprep.mubr.f32.mxu0 0.0
        %2843 = vmatmul.mubr.f32.gmra.mxu0 %v2273
        %v2844 = vpop.f32.mrf.mxu0
        %v2845 = vadd.f32 0.0, %v2844
        %v2846 = vpop.f32.mrf.mxu0
        %2847 = vmatprep.mubr.f32.mxu0 0.0
        %2848 = vmatmul.mubr.f32.gmra.mxu0 %v2272
        %v2849 = vpop.f32.mrf.mxu0
        %v2850 = vadd.f32 0.0, %v2849
        %v2851 = vpop.f32.mrf.mxu0
        %2852 = vmatprep.mubr.f32.mxu0 0.0
        %2853 = vmatmul.mubr.f32.gmra.mxu0 %v2271
        %v2854 = vpop.f32.mrf.mxu0
        %v2855 = vadd.f32 0.0, %v2854
        %v2856 = vpop.f32.mrf.mxu0
        %2857 = vdwg.mxu0
        %v2858 = vld [vmem:[#allocation4] sm:$0xff]
        %v2859 = vld [vmem:[#allocation4 + $0x8] sm:$0xff]
        %v2860 = vld [vmem:[#allocation4 + $0x10] sm:$0xff]
        %v2861 = vld [vmem:[#allocation4 + $0x18] sm:$0xff]
        %v2862 = vld [vmem:[#allocation4 + $0x20] sm:$0xff]
        %v2863 = vld [vmem:[#allocation4 + $0x28] sm:$0xff]
        %v2864 = vld [vmem:[#allocation4 + $0x30] sm:$0xff]
        %v2865 = vld [vmem:[#allocation4 + $0x38] sm:$0xff]
        %v2866 = vld [vmem:[#allocation4 + $0x40] sm:$0xff]
        %v2867 = vld [vmem:[#allocation4 + $0x48] sm:$0xff]
        %v2868 = vld [vmem:[#allocation4 + $0x50] sm:$0xff]
        %v2869 = vld [vmem:[#allocation4 + $0x58] sm:$0xff]
        %v2870 = vld [vmem:[#allocation4 + $0x60] sm:$0xff]
        %v2871 = vld [vmem:[#allocation4 + $0x68] sm:$0xff]
        %v2872 = vld [vmem:[#allocation4 + $0x70] sm:$0xff]
        %v2873 = vld [vmem:[#allocation4 + $0x78] sm:$0xff]
        %v2874 = vld [vmem:[#allocation4 + $0x80] sm:$0xff]
        %v2875 = vld [vmem:[#allocation4 + $0x88] sm:$0xff]
        %v2876 = vld [vmem:[#allocation4 + $0x90] sm:$0xff]
        %v2877 = vld [vmem:[#allocation4 + $0x98] sm:$0xff]
        %v2878 = vld [vmem:[#allocation4 + $0xa0] sm:$0xff]
        %v2879 = vld [vmem:[#allocation4 + $0xa8] sm:$0xff]
        %v2880 = vld [vmem:[#allocation4 + $0xb0] sm:$0xff]
        %v2881 = vld [vmem:[#allocation4 + $0xb8] sm:$0xff]
        %v2882 = vld [vmem:[#allocation4 + $0xc0] sm:$0xff]
        %v2883 = vld [vmem:[#allocation4 + $0xc8] sm:$0xff]
        %v2884 = vld [vmem:[#allocation4 + $0xd0] sm:$0xff]
        %v2885 = vld [vmem:[#allocation4 + $0xd8] sm:$0xff]
        %v2886 = vld [vmem:[#allocation4 + $0xe0] sm:$0xff]
        %v2887 = vld [vmem:[#allocation4 + $0xe8] sm:$0xff]
        %v2888 = vadd.f32 %v2858, %v2710
        %v2889 = vadd.f32 %v2859, %v2715
        %v2890 = vadd.f32 %v2860, %v2720
        %v2891 = vadd.f32 %v2861, %v2725
        %v2892 = vadd.f32 %v2862, %v2730
        %v2893 = vadd.f32 %v2863, %v2735
        %v2894 = vadd.f32 %v2864, %v2740
        %v2895 = vadd.f32 %v2865, %v2745
        %v2896 = vadd.f32 %v2866, %v2750
        %v2897 = vadd.f32 %v2867, %v2755
        %v2898 = vadd.f32 %v2868, %v2760
        %v2899 = vadd.f32 %v2869, %v2765
        %v2900 = vadd.f32 %v2870, %v2770
        %v2901 = vadd.f32 %v2871, %v2775
        %v2902 = vadd.f32 %v2872, %v2780
        %v2903 = vadd.f32 %v2873, %v2785
        %v2904 = vadd.f32 %v2874, %v2790
        %v2905 = vadd.f32 %v2875, %v2795
        %v2906 = vadd.f32 %v2876, %v2800
        %v2907 = vadd.f32 %v2877, %v2805
        %v2908 = vadd.f32 %v2878, %v2810
        %v2909 = vadd.f32 %v2879, %v2815
        %v2910 = vadd.f32 %v2880, %v2820
        %v2911 = vadd.f32 %v2881, %v2825
        %v2912 = vadd.f32 %v2882, %v2830
        %v2913 = vadd.f32 %v2883, %v2835
        %v2914 = vadd.f32 %v2884, %v2840
        %v2915 = vadd.f32 %v2885, %v2845
        %v2916 = vadd.f32 %v2886, %v2850
        %v2917 = vadd.f32 %v2887, %v2855
        %2918 = vst [vmem:[#allocation4] sm:$0xff] %v2888
        %2919 = vst [vmem:[#allocation4 + $0x8] sm:$0xff] %v2889
        %2920 = vst [vmem:[#allocation4 + $0x10] sm:$0xff] %v2890
        %2921 = vst [vmem:[#allocation4 + $0x18] sm:$0xff] %v2891
        %2922 = vst [vmem:[#allocation4 + $0x20] sm:$0xff] %v2892
        %2923 = vst [vmem:[#allocation4 + $0x28] sm:$0xff] %v2893
        %2924 = vst [vmem:[#allocation4 + $0x30] sm:$0xff] %v2894
        %2925 = vst [vmem:[#allocation4 + $0x38] sm:$0xff] %v2895
        %2926 = vst [vmem:[#allocation4 + $0x40] sm:$0xff] %v2896
        %2927 = vst [vmem:[#allocation4 + $0x48] sm:$0xff] %v2897
        %2928 = vst [vmem:[#allocation4 + $0x50] sm:$0xff] %v2898
        %2929 = vst [vmem:[#allocation4 + $0x58] sm:$0xff] %v2899
        %2930 = vst [vmem:[#allocation4 + $0x60] sm:$0xff] %v2900
        %2931 = vst [vmem:[#allocation4 + $0x68] sm:$0xff] %v2901
        %2932 = vst [vmem:[#allocation4 + $0x70] sm:$0xff] %v2902
        %2933 = vst [vmem:[#allocation4 + $0x78] sm:$0xff] %v2903
        %2934 = vst [vmem:[#allocation4 + $0x80] sm:$0xff] %v2904
        %2935 = vst [vmem:[#allocation4 + $0x88] sm:$0xff] %v2905
        %2936 = vst [vmem:[#allocation4 + $0x90] sm:$0xff] %v2906
        %2937 = vst [vmem:[#allocation4 + $0x98] sm:$0xff] %v2907
        %2938 = vst [vmem:[#allocation4 + $0xa0] sm:$0xff] %v2908
        %2939 = vst [vmem:[#allocation4 + $0xa8] sm:$0xff] %v2909
        %2940 = vst [vmem:[#allocation4 + $0xb0] sm:$0xff] %v2910
        %2941 = vst [vmem:[#allocation4 + $0xb8] sm:$0xff] %v2911
        %2942 = vst [vmem:[#allocation4 + $0xc0] sm:$0xff] %v2912
        %2943 = vst [vmem:[#allocation4 + $0xc8] sm:$0xff] %v2913
        %2944 = vst [vmem:[#allocation4 + $0xd0] sm:$0xff] %v2914
        %2945 = vst [vmem:[#allocation4 + $0xd8] sm:$0xff] %v2915
        %2946 = vst [vmem:[#allocation4 + $0xe0] sm:$0xff] %v2916
        %2947 = vst [vmem:[#allocation4 + $0xe8] sm:$0xff] %v2917
        %s2948 = scalar_lea.vmem [#allocation5], 1024
        %v2949 = vld [vmem:[%s2948] sm:$0xff]
        %v2950 = vld [vmem:[%s2948 + $0x8] sm:$0xff]
        %v2951 = vld [vmem:[%s2948 + $0x10] sm:$0xff]
        %v2952 = vld [vmem:[%s2948 + $0x18] sm:$0xff]
        %v2953 = vld [vmem:[%s2948 + $0x20] sm:$0xff]
        %v2954 = vld [vmem:[%s2948 + $0x28] sm:$0xff]
        %v2955 = vld [vmem:[%s2948 + $0x30] sm:$0xff]
        %v2956 = vld [vmem:[%s2948 + $0x38] sm:$0xff]
        %v2957 = vld [vmem:[%s2948 + $0x40] sm:$0xff]
        %v2958 = vld [vmem:[%s2948 + $0x48] sm:$0xff]
        %v2959 = vld [vmem:[%s2948 + $0x50] sm:$0xff]
        %v2960 = vld [vmem:[%s2948 + $0x58] sm:$0xff]
        %v2961 = vld [vmem:[%s2948 + $0x60] sm:$0xff]
        %v2962 = vld [vmem:[%s2948 + $0x68] sm:$0xff]
        %v2963 = vld [vmem:[%s2948 + $0x70] sm:$0xff]
        %v2964 = vld [vmem:[%s2948 + $0x78] sm:$0xff]
        %2965 = vmatprep.subr.mxu0 0.0
        %2966 = vmatpush1.msra.mxu0 %v2964
        %2967 = vmatprep.subr.mxu0 0.0
        %2968 = vmatpush1.msra.mxu0 %v2963
        %2969 = vmatprep.subr.mxu0 0.0
        %2970 = vmatpush1.msra.mxu0 %v2962
        %2971 = vmatprep.subr.mxu0 0.0
        %2972 = vmatpush1.msra.mxu0 %v2961
        %2973 = vmatprep.subr.mxu0 0.0
        %2974 = vmatpush1.msra.mxu0 %v2960
        %2975 = vmatprep.subr.mxu0 0.0
        %2976 = vmatpush1.msra.mxu0 %v2959
        %2977 = vmatprep.subr.mxu0 0.0
        %2978 = vmatpush1.msra.mxu0 %v2958
        %2979 = vmatprep.subr.mxu0 0.0
        %2980 = vmatpush1.msra.mxu0 %v2957
        %2981 = vmatprep.subr.mxu0 0.0
        %2982 = vmatpush1.msra.mxu0 %v2956
        %2983 = vmatprep.subr.mxu0 0.0
        %2984 = vmatpush1.msra.mxu0 %v2955
        %2985 = vmatprep.subr.mxu0 0.0
        %2986 = vmatpush1.msra.mxu0 %v2954
        %2987 = vmatprep.subr.mxu0 0.0
        %2988 = vmatpush1.msra.mxu0 %v2953
        %2989 = vmatprep.subr.mxu0 0.0
        %2990 = vmatpush1.msra.mxu0 %v2952
        %2991 = vmatprep.subr.mxu0 0.0
        %2992 = vmatpush1.msra.mxu0 %v2951
        %2993 = vmatprep.subr.mxu0 0.0
        %2994 = vmatpush1.msra.mxu0 %v2950
        %2995 = vmatprep.subr.mxu0 0.0
        %2996 = vmatpush1.msra.mxu0 %v2949
        %2997 = vmatprep.subr.mxu0 0.0
        %2998 = vmatpush2.msra.mxu0 0.0
        %2999 = vmatprep.subr.mxu0 0.0
        %3000 = vmatpush2.msra.mxu0 0.0
        %3001 = vmatprep.subr.mxu0 0.0
        %3002 = vmatpush2.msra.mxu0 0.0
        %3003 = vmatprep.subr.mxu0 0.0
        %3004 = vmatpush2.msra.mxu0 0.0
        %3005 = vmatprep.subr.mxu0 0.0
        %3006 = vmatpush2.msra.mxu0 0.0
        %3007 = vmatprep.subr.mxu0 0.0
        %3008 = vmatpush2.msra.mxu0 0.0
        %3009 = vmatprep.subr.mxu0 0.0
        %3010 = vmatpush2.msra.mxu0 0.0
        %3011 = vmatprep.subr.mxu0 0.0
        %3012 = vmatpush2.msra.mxu0 0.0
        %3013 = vmatprep.subr.mxu0 0.0
        %3014 = vmatpush2.msra.mxu0 0.0
        %3015 = vmatprep.subr.mxu0 0.0
        %3016 = vmatpush2.msra.mxu0 0.0
        %3017 = vmatprep.subr.mxu0 0.0
        %3018 = vmatpush2.msra.mxu0 0.0
        %3019 = vmatprep.subr.mxu0 0.0
        %3020 = vmatpush2.msra.mxu0 0.0
        %3021 = vmatprep.subr.mxu0 0.0
        %3022 = vmatpush2.msra.mxu0 0.0
        %3023 = vmatprep.subr.mxu0 0.0
        %3024 = vmatpush2.msra.mxu0 0.0
        %3025 = vmatprep.subr.mxu0 0.0
        %3026 = vmatpush2.msra.mxu0 0.0
        %3027 = vmatprep.subr.mxu0 0.0
        %3028 = vmatpush2.msra.mxu0 0.0
        %3029 = vmatprep.mubr.f32.mxu0 0.0
        %3030 = vmatmul.mubr.f32.gmra.mxu0 %v2297
        %v3031 = vpop.f32.mrf.mxu0
        %v3032 = vadd.f32 0.0, %v3031
        %v3033 = vpop.f32.mrf.mxu0
        %3034 = vmatprep.mubr.f32.mxu0 0.0
        %3035 = vmatmul.mubr.f32.gmra.mxu0 %v2296
        %v3036 = vpop.f32.mrf.mxu0
        %v3037 = vadd.f32 0.0, %v3036
        %v3038 = vpop.f32.mrf.mxu0
        %3039 = vmatprep.mubr.f32.mxu0 0.0
        %3040 = vmatmul.mubr.f32.gmra.mxu0 %v2295
        %v3041 = vpop.f32.mrf.mxu0
        %v3042 = vadd.f32 0.0, %v3041
        %v3043 = vpop.f32.mrf.mxu0
        %3044 = vmatprep.mubr.f32.mxu0 0.0
        %3045 = vmatmul.mubr.f32.gmra.mxu0 %v2294
        %v3046 = vpop.f32.mrf.mxu0
        %v3047 = vadd.f32 0.0, %v3046
        %v3048 = vpop.f32.mrf.mxu0
        %3049 = vmatprep.mubr.f32.mxu0 0.0
        %3050 = vmatmul.mubr.f32.gmra.mxu0 %v2293
        %v3051 = vpop.f32.mrf.mxu0
        %v3052 = vadd.f32 0.0, %v3051
        %v3053 = vpop.f32.mrf.mxu0
        %3054 = vmatprep.mubr.f32.mxu0 0.0
        %3055 = vmatmul.mubr.f32.gmra.mxu0 %v2292
        %v3056 = vpop.f32.mrf.mxu0
        %v3057 = vadd.f32 0.0, %v3056
        %v3058 = vpop.f32.mrf.mxu0
        %3059 = vmatprep.mubr.f32.mxu0 0.0
        %3060 = vmatmul.mubr.f32.gmra.mxu0 %v2291
        %v3061 = vpop.f32.mrf.mxu0
        %v3062 = vadd.f32 0.0, %v3061
        %v3063 = vpop.f32.mrf.mxu0
        %3064 = vmatprep.mubr.f32.mxu0 0.0
        %3065 = vmatmul.mubr.f32.gmra.mxu0 %v2290
        %v3066 = vpop.f32.mrf.mxu0
        %v3067 = vadd.f32 0.0, %v3066
        %v3068 = vpop.f32.mrf.mxu0
        %3069 = vmatprep.mubr.f32.mxu0 0.0
        %3070 = vmatmul.mubr.f32.gmra.mxu0 %v2289
        %v3071 = vpop.f32.mrf.mxu0
        %v3072 = vadd.f32 0.0, %v3071
        %v3073 = vpop.f32.mrf.mxu0
        %3074 = vmatprep.mubr.f32.mxu0 0.0
        %3075 = vmatmul.mubr.f32.gmra.mxu0 %v2288
        %v3076 = vpop.f32.mrf.mxu0
        %v3077 = vadd.f32 0.0, %v3076
        %v3078 = vpop.f32.mrf.mxu0
        %3079 = vmatprep.mubr.f32.mxu0 0.0
        %3080 = vmatmul.mubr.f32.gmra.mxu0 %v2287
        %v3081 = vpop.f32.mrf.mxu0
        %v3082 = vadd.f32 0.0, %v3081
        %v3083 = vpop.f32.mrf.mxu0
        %3084 = vmatprep.mubr.f32.mxu0 0.0
        %3085 = vmatmul.mubr.f32.gmra.mxu0 %v2286
        %v3086 = vpop.f32.mrf.mxu0
        %v3087 = vadd.f32 0.0, %v3086
        %v3088 = vpop.f32.mrf.mxu0
        %3089 = vmatprep.mubr.f32.mxu0 0.0
        %3090 = vmatmul.mubr.f32.gmra.mxu0 %v2285
        %v3091 = vpop.f32.mrf.mxu0
        %v3092 = vadd.f32 0.0, %v3091
        %v3093 = vpop.f32.mrf.mxu0
        %3094 = vmatprep.mubr.f32.mxu0 0.0
        %3095 = vmatmul.mubr.f32.gmra.mxu0 %v2284
        %v3096 = vpop.f32.mrf.mxu0
        %v3097 = vadd.f32 0.0, %v3096
        %v3098 = vpop.f32.mrf.mxu0
        %3099 = vmatprep.mubr.f32.mxu0 0.0
        %3100 = vmatmul.mubr.f32.gmra.mxu0 %v2283
        %v3101 = vpop.f32.mrf.mxu0
        %v3102 = vadd.f32 0.0, %v3101
        %v3103 = vpop.f32.mrf.mxu0
        %3104 = vmatprep.mubr.f32.mxu0 0.0
        %3105 = vmatmul.mubr.f32.gmra.mxu0 %v2282
        %v3106 = vpop.f32.mrf.mxu0
        %v3107 = vadd.f32 0.0, %v3106
        %v3108 = vpop.f32.mrf.mxu0
        %3109 = vmatprep.mubr.f32.mxu0 0.0
        %3110 = vmatmul.mubr.f32.gmra.mxu0 %v2281
        %v3111 = vpop.f32.mrf.mxu0
        %v3112 = vadd.f32 0.0, %v3111
        %v3113 = vpop.f32.mrf.mxu0
        %3114 = vmatprep.mubr.f32.mxu0 0.0
        %3115 = vmatmul.mubr.f32.gmra.mxu0 %v2280
        %v3116 = vpop.f32.mrf.mxu0
        %v3117 = vadd.f32 0.0, %v3116
        %v3118 = vpop.f32.mrf.mxu0
        %3119 = vmatprep.mubr.f32.mxu0 0.0
        %3120 = vmatmul.mubr.f32.gmra.mxu0 %v2279
        %v3121 = vpop.f32.mrf.mxu0
        %v3122 = vadd.f32 0.0, %v3121
        %v3123 = vpop.f32.mrf.mxu0
        %3124 = vmatprep.mubr.f32.mxu0 0.0
        %3125 = vmatmul.mubr.f32.gmra.mxu0 %v2278
        %v3126 = vpop.f32.mrf.mxu0
        %v3127 = vadd.f32 0.0, %v3126
        %v3128 = vpop.f32.mrf.mxu0
        %3129 = vmatprep.mubr.f32.mxu0 0.0
        %3130 = vmatmul.mubr.f32.gmra.mxu0 %v2277
        %v3131 = vpop.f32.mrf.mxu0
        %v3132 = vadd.f32 0.0, %v3131
        %v3133 = vpop.f32.mrf.mxu0
        %3134 = vmatprep.mubr.f32.mxu0 0.0
        %3135 = vmatmul.mubr.f32.gmra.mxu0 %v2276
        %v3136 = vpop.f32.mrf.mxu0
        %v3137 = vadd.f32 0.0, %v3136
        %v3138 = vpop.f32.mrf.mxu0
        %3139 = vmatprep.mubr.f32.mxu0 0.0
        %3140 = vmatmul.mubr.f32.gmra.mxu0 %v2275
        %v3141 = vpop.f32.mrf.mxu0
        %v3142 = vadd.f32 0.0, %v3141
        %v3143 = vpop.f32.mrf.mxu0
        %3144 = vmatprep.mubr.f32.mxu0 0.0
        %3145 = vmatmul.mubr.f32.gmra.mxu0 %v2274
        %v3146 = vpop.f32.mrf.mxu0
        %v3147 = vadd.f32 0.0, %v3146
        %v3148 = vpop.f32.mrf.mxu0
        %3149 = vmatprep.mubr.f32.mxu0 0.0
        %3150 = vmatmul.mubr.f32.gmra.mxu0 %v2273
        %v3151 = vpop.f32.mrf.mxu0
        %v3152 = vadd.f32 0.0, %v3151
        %v3153 = vpop.f32.mrf.mxu0
        %3154 = vmatprep.mubr.f32.mxu0 0.0
        %3155 = vmatmul.mubr.f32.gmra.mxu0 %v2272
        %v3156 = vpop.f32.mrf.mxu0
        %v3157 = vadd.f32 0.0, %v3156
        %v3158 = vpop.f32.mrf.mxu0
        %3159 = vmatprep.mubr.f32.mxu0 0.0
        %3160 = vmatmul.mubr.f32.gmra.mxu0 %v2271
        %v3161 = vpop.f32.mrf.mxu0
        %v3162 = vadd.f32 0.0, %v3161
        %v3163 = vpop.f32.mrf.mxu0
        %3164 = vmatprep.mubr.f32.mxu0 0.0
        %3165 = vmatmul.mubr.f32.gmra.mxu0 %v2270
        %v3166 = vpop.f32.mrf.mxu0
        %v3167 = vadd.f32 0.0, %v3166
        %v3168 = vpop.f32.mrf.mxu0
        %3169 = vmatprep.mubr.f32.mxu0 0.0
        %3170 = vmatmul.mubr.f32.gmra.mxu0 %v2269
        %v3171 = vpop.f32.mrf.mxu0
        %v3172 = vadd.f32 0.0, %v3171
        %v3173 = vpop.f32.mrf.mxu0
        %3174 = vmatprep.mubr.f32.mxu0 0.0
        %3175 = vmatmul.mubr.f32.gmra.mxu0 %v2268
        %v3176 = vpop.f32.mrf.mxu0
        %v3177 = vadd.f32 0.0, %v3176
        %v3178 = vpop.f32.mrf.mxu0
        %3179 = vdwg.mxu0
        %v3180 = vld [vmem:[#allocation4] sm:$0xff]
        %v3181 = vld [vmem:[#allocation4 + $0x8] sm:$0xff]
        %v3182 = vld [vmem:[#allocation4 + $0x10] sm:$0xff]
        %v3183 = vld [vmem:[#allocation4 + $0x18] sm:$0xff]
        %v3184 = vld [vmem:[#allocation4 + $0x20] sm:$0xff]
        %v3185 = vld [vmem:[#allocation4 + $0x28] sm:$0xff]
        %v3186 = vld [vmem:[#allocation4 + $0x30] sm:$0xff]
        %v3187 = vld [vmem:[#allocation4 + $0x38] sm:$0xff]
        %v3188 = vld [vmem:[#allocation4 + $0x40] sm:$0xff]
        %v3189 = vld [vmem:[#allocation4 + $0x48] sm:$0xff]
        %v3190 = vld [vmem:[#allocation4 + $0x50] sm:$0xff]
        %v3191 = vld [vmem:[#allocation4 + $0x58] sm:$0xff]
        %v3192 = vld [vmem:[#allocation4 + $0x60] sm:$0xff]
        %v3193 = vld [vmem:[#allocation4 + $0x68] sm:$0xff]
        %v3194 = vld [vmem:[#allocation4 + $0x70] sm:$0xff]
        %v3195 = vld [vmem:[#allocation4 + $0x78] sm:$0xff]
        %v3196 = vld [vmem:[#allocation4 + $0x80] sm:$0xff]
        %v3197 = vld [vmem:[#allocation4 + $0x88] sm:$0xff]
        %v3198 = vld [vmem:[#allocation4 + $0x90] sm:$0xff]
        %v3199 = vld [vmem:[#allocation4 + $0x98] sm:$0xff]
        %v3200 = vld [vmem:[#allocation4 + $0xa0] sm:$0xff]
        %v3201 = vld [vmem:[#allocation4 + $0xa8] sm:$0xff]
        %v3202 = vld [vmem:[#allocation4 + $0xb0] sm:$0xff]
        %v3203 = vld [vmem:[#allocation4 + $0xb8] sm:$0xff]
        %v3204 = vld [vmem:[#allocation4 + $0xc0] sm:$0xff]
        %v3205 = vld [vmem:[#allocation4 + $0xc8] sm:$0xff]
        %v3206 = vld [vmem:[#allocation4 + $0xd0] sm:$0xff]
        %v3207 = vld [vmem:[#allocation4 + $0xd8] sm:$0xff]
        %v3208 = vld [vmem:[#allocation4 + $0xe0] sm:$0xff]
        %v3209 = vld [vmem:[#allocation4 + $0xe8] sm:$0xff]
        %v3210 = vadd.f32 %v3180, %v3032
        %v3211 = vadd.f32 %v3181, %v3037
        %v3212 = vadd.f32 %v3182, %v3042
        %v3213 = vadd.f32 %v3183, %v3047
        %v3214 = vadd.f32 %v3184, %v3052
        %v3215 = vadd.f32 %v3185, %v3057
        %v3216 = vadd.f32 %v3186, %v3062
        %v3217 = vadd.f32 %v3187, %v3067
        %v3218 = vadd.f32 %v3188, %v3072
        %v3219 = vadd.f32 %v3189, %v3077
        %v3220 = vadd.f32 %v3190, %v3082
        %v3221 = vadd.f32 %v3191, %v3087
        %v3222 = vadd.f32 %v3192, %v3092
        %v3223 = vadd.f32 %v3193, %v3097
        %v3224 = vadd.f32 %v3194, %v3102
        %v3225 = vadd.f32 %v3195, %v3107
        %v3226 = vadd.f32 %v3196, %v3112
        %v3227 = vadd.f32 %v3197, %v3117
        %v3228 = vadd.f32 %v3198, %v3122
        %v3229 = vadd.f32 %v3199, %v3127
        %v3230 = vadd.f32 %v3200, %v3132
        %v3231 = vadd.f32 %v3201, %v3137
        %v3232 = vadd.f32 %v3202, %v3142
        %v3233 = vadd.f32 %v3203, %v3147
        %v3234 = vadd.f32 %v3204, %v3152
        %v3235 = vadd.f32 %v3205, %v3157
        %v3236 = vadd.f32 %v3206, %v3162
        %v3237 = vadd.f32 %v3207, %v3167
        %v3238 = vadd.f32 %v3208, %v3172
        %v3239 = vadd.f32 %v3209, %v3177
        %3240 = vst [vmem:[#allocation4] sm:$0xff] %v3210
        %3241 = vst [vmem:[#allocation4 + $0x8] sm:$0xff] %v3211
        %3242 = vst [vmem:[#allocation4 + $0x10] sm:$0xff] %v3212
        %3243 = vst [vmem:[#allocation4 + $0x18] sm:$0xff] %v3213
        %3244 = vst [vmem:[#allocation4 + $0x20] sm:$0xff] %v3214
        %3245 = vst [vmem:[#allocation4 + $0x28] sm:$0xff] %v3215
        %3246 = vst [vmem:[#allocation4 + $0x30] sm:$0xff] %v3216
        %3247 = vst [vmem:[#allocation4 + $0x38] sm:$0xff] %v3217
        %3248 = vst [vmem:[#allocation4 + $0x40] sm:$0xff] %v3218
        %3249 = vst [vmem:[#allocation4 + $0x48] sm:$0xff] %v3219
        %3250 = vst [vmem:[#allocation4 + $0x50] sm:$0xff] %v3220
        %3251 = vst [vmem:[#allocation4 + $0x58] sm:$0xff] %v3221
        %3252 = vst [vmem:[#allocation4 + $0x60] sm:$0xff] %v3222
        %3253 = vst [vmem:[#allocation4 + $0x68] sm:$0xff] %v3223
        %3254 = vst [vmem:[#allocation4 + $0x70] sm:$0xff] %v3224
        %3255 = vst [vmem:[#allocation4 + $0x78] sm:$0xff] %v3225
        %3256 = vst [vmem:[#allocation4 + $0x80] sm:$0xff] %v3226
        %3257 = vst [vmem:[#allocation4 + $0x88] sm:$0xff] %v3227
        %3258 = vst [vmem:[#allocation4 + $0x90] sm:$0xff] %v3228
        %3259 = vst [vmem:[#allocation4 + $0x98] sm:$0xff] %v3229
        %3260 = vst [vmem:[#allocation4 + $0xa0] sm:$0xff] %v3230
        %3261 = vst [vmem:[#allocation4 + $0xa8] sm:$0xff] %v3231
        %3262 = vst [vmem:[#allocation4 + $0xb0] sm:$0xff] %v3232
        %3263 = vst [vmem:[#allocation4 + $0xb8] sm:$0xff] %v3233
        %3264 = vst [vmem:[#allocation4 + $0xc0] sm:$0xff] %v3234
        %3265 = vst [vmem:[#allocation4 + $0xc8] sm:$0xff] %v3235
        %3266 = vst [vmem:[#allocation4 + $0xd0] sm:$0xff] %v3236
        %3267 = vst [vmem:[#allocation4 + $0xd8] sm:$0xff] %v3237
        %3268 = vst [vmem:[#allocation4 + $0xe0] sm:$0xff] %v3238
        %3269 = vst [vmem:[#allocation4 + $0xe8] sm:$0xff] %v3239
        %v3270 = vld [vmem:[#allocation4] sm:$0xff]
        %v3271 = vld [vmem:[#allocation4 + $0x8] sm:$0xff]
        %v3272 = vld [vmem:[#allocation4 + $0x10] sm:$0xff]
        %v3273 = vld [vmem:[#allocation4 + $0x18] sm:$0xff]
        %v3274 = vld [vmem:[#allocation4 + $0x20] sm:$0xff]
        %v3275 = vld [vmem:[#allocation4 + $0x28] sm:$0xff]
        %v3276 = vld [vmem:[#allocation4 + $0x30] sm:$0xff]
        %v3277 = vld [vmem:[#allocation4 + $0x38] sm:$0xff]
        %v3278 = vld [vmem:[#allocation4 + $0x40] sm:$0xff]
        %v3279 = vld [vmem:[#allocation4 + $0x48] sm:$0xff]
        %v3280 = vld [vmem:[#allocation4 + $0x50] sm:$0xff]
        %v3281 = vld [vmem:[#allocation4 + $0x58] sm:$0xff]
        %v3282 = vld [vmem:[#allocation4 + $0x60] sm:$0xff]
        %v3283 = vld [vmem:[#allocation4 + $0x68] sm:$0xff]
        %v3284 = vld [vmem:[#allocation4 + $0x70] sm:$0xff]
        %v3285 = vld [vmem:[#allocation4 + $0x78] sm:$0xff]
        %v3286 = vld [vmem:[#allocation4 + $0x80] sm:$0xff]
        %v3287 = vld [vmem:[#allocation4 + $0x88] sm:$0xff]
        %v3288 = vld [vmem:[#allocation4 + $0x90] sm:$0xff]
        %v3289 = vld [vmem:[#allocation4 + $0x98] sm:$0xff]
        %v3290 = vld [vmem:[#allocation4 + $0xa0] sm:$0xff]
        %v3291 = vld [vmem:[#allocation4 + $0xa8] sm:$0xff]
        %v3292 = vld [vmem:[#allocation4 + $0xb0] sm:$0xff]
        %v3293 = vld [vmem:[#allocation4 + $0xb8] sm:$0xff]
        %v3294 = vld [vmem:[#allocation4 + $0xc0] sm:$0xff]
        %v3295 = vld [vmem:[#allocation4 + $0xc8] sm:$0xff]
        %v3296 = vld [vmem:[#allocation4 + $0xd0] sm:$0xff]
        %v3297 = vld [vmem:[#allocation4 + $0xd8] sm:$0xff]
        %v3298 = vld [vmem:[#allocation4 + $0xe0] sm:$0xff]
        %v3299 = vld [vmem:[#allocation4 + $0xe8] sm:$0xff]
        %v3300 = vld [vmem:[%s2] sm:$0x1]
        %v3302 = vlaneseq
        %v3303 = vshrl.u32 %v3302, 7
        %v3304 = vsub.s32 0, %v3303
        %v3305 = vrot.slane %v3300, %v3304
        %v3307 = vmul.f32 %v3270, %v3305
        %v3308 = vmul.f32 %v3271, %v3305
        %v3309 = vmul.f32 %v3272, %v3305
        %v3310 = vmul.f32 %v3273, %v3305
        %v3311 = vmul.f32 %v3274, %v3305
        %v3312 = vmul.f32 %v3275, %v3305
        %v3313 = vmul.f32 %v3276, %v3305
        %v3314 = vmul.f32 %v3277, %v3305
        %v3315 = vmul.f32 %v3278, %v3305
        %v3316 = vmul.f32 %v3279, %v3305
        %v3317 = vmul.f32 %v3280, %v3305
        %v3318 = vmul.f32 %v3281, %v3305
        %v3319 = vmul.f32 %v3282, %v3305
        %v3320 = vmul.f32 %v3283, %v3305
        %v3321 = vmul.f32 %v3284, %v3305
        %v3322 = vmul.f32 %v3285, %v3305
        %v3323 = vmul.f32 %v3286, %v3305
        %v3324 = vmul.f32 %v3287, %v3305
        %v3325 = vmul.f32 %v3288, %v3305
        %v3326 = vmul.f32 %v3289, %v3305
        %v3327 = vmul.f32 %v3290, %v3305
        %v3328 = vmul.f32 %v3291, %v3305
        %v3329 = vmul.f32 %v3292, %v3305
        %v3330 = vmul.f32 %v3293, %v3305
        %v3331 = vmul.f32 %v3294, %v3305
        %v3332 = vmul.f32 %v3295, %v3305
        %v3333 = vmul.f32 %v3296, %v3305
        %v3334 = vmul.f32 %v3297, %v3305
        %v3335 = vmul.f32 %v3298, %v3305
        %v3336 = vmul.f32 %v3299, %v3305
        %v3337 = vld [vmem:[%s3] sm:$0x1]
        %v3339 = vlaneseq
        %v3340 = vshrl.u32 %v3339, 7
        %v3341 = vsub.s32 0, %v3340
        %v3342 = vrot.slane %v3337, %v3341
        %v3344 = vadd.f32 %v3307, %v3342
        %v3345 = vadd.f32 %v3308, %v3342
        %v3346 = vadd.f32 %v3309, %v3342
        %v3347 = vadd.f32 %v3310, %v3342
        %v3348 = vadd.f32 %v3311, %v3342
        %v3349 = vadd.f32 %v3312, %v3342
        %v3350 = vadd.f32 %v3313, %v3342
        %v3351 = vadd.f32 %v3314, %v3342
        %v3352 = vadd.f32 %v3315, %v3342
        %v3353 = vadd.f32 %v3316, %v3342
        %v3354 = vadd.f32 %v3317, %v3342
        %v3355 = vadd.f32 %v3318, %v3342
        %v3356 = vadd.f32 %v3319, %v3342
        %v3357 = vadd.f32 %v3320, %v3342
        %v3358 = vadd.f32 %v3321, %v3342
        %v3359 = vadd.f32 %v3322, %v3342
        %v3360 = vadd.f32 %v3323, %v3342
        %v3361 = vadd.f32 %v3324, %v3342
        %v3362 = vadd.f32 %v3325, %v3342
        %v3363 = vadd.f32 %v3326, %v3342
        %v3364 = vadd.f32 %v3327, %v3342
        %v3365 = vadd.f32 %v3328, %v3342
        %v3366 = vadd.f32 %v3329, %v3342
        %v3367 = vadd.f32 %v3330, %v3342
        %v3368 = vadd.f32 %v3331, %v3342
        %v3369 = vadd.f32 %v3332, %v3342
        %v3370 = vadd.f32 %v3333, %v3342
        %v3371 = vadd.f32 %v3334, %v3342
        %v3372 = vadd.f32 %v3335, %v3342
        %v3373 = vadd.f32 %v3336, %v3342
        %3374 = vst [vmem:[%s178] sm:$0xff] %v3344
        %3375 = vst [vmem:[%s178 + $0x8] sm:$0xff] %v3345
        %3376 = vst [vmem:[%s178 + $0x10] sm:$0xff] %v3346
        %3377 = vst [vmem:[%s178 + $0x18] sm:$0xff] %v3347
        %3378 = vst [vmem:[%s178 + $0x20] sm:$0xff] %v3348
        %3379 = vst [vmem:[%s178 + $0x28] sm:$0xff] %v3349
        %3380 = vst [vmem:[%s178 + $0x30] sm:$0xff] %v3350
        %3381 = vst [vmem:[%s178 + $0x38] sm:$0xff] %v3351
        %3382 = vst [vmem:[%s178 + $0x40] sm:$0xff] %v3352
        %3383 = vst [vmem:[%s178 + $0x48] sm:$0xff] %v3353
        %3384 = vst [vmem:[%s178 + $0x50] sm:$0xff] %v3354
        %3385 = vst [vmem:[%s178 + $0x58] sm:$0xff] %v3355
        %3386 = vst [vmem:[%s178 + $0x60] sm:$0xff] %v3356
        %3387 = vst [vmem:[%s178 + $0x68] sm:$0xff] %v3357
        %3388 = vst [vmem:[%s178 + $0x70] sm:$0xff] %v3358
        %3389 = vst [vmem:[%s178 + $0x78] sm:$0xff] %v3359
        %3390 = vst [vmem:[%s178 + $0x80] sm:$0xff] %v3360
        %3391 = vst [vmem:[%s178 + $0x88] sm:$0xff] %v3361
        %3392 = vst [vmem:[%s178 + $0x90] sm:$0xff] %v3362
        %3393 = vst [vmem:[%s178 + $0x98] sm:$0xff] %v3363
        %3394 = vst [vmem:[%s178 + $0xa0] sm:$0xff] %v3364
        %3395 = vst [vmem:[%s178 + $0xa8] sm:$0xff] %v3365
        %3396 = vst [vmem:[%s178 + $0xb0] sm:$0xff] %v3366
        %3397 = vst [vmem:[%s178 + $0xb8] sm:$0xff] %v3367
        %3398 = vst [vmem:[%s178 + $0xc0] sm:$0xff] %v3368
        %3399 = vst [vmem:[%s178 + $0xc8] sm:$0xff] %v3369
        %3400 = vst [vmem:[%s178 + $0xd0] sm:$0xff] %v3370
        %3401 = vst [vmem:[%s178 + $0xd8] sm:$0xff] %v3371
        %3402 = vst [vmem:[%s178 + $0xe0] sm:$0xff] %v3372
        %3403 = vst [vmem:[%s178 + $0xe8] sm:$0xff] %v3373
        %s3404 = sand.u32 %s104, 1
        %s3405 = scalar_lea.sflag [#allocation7], %s3404
        %s3406 = sand.u32 %s104, 1
        %s3407 = smul.addr %s3406, 240
        %s3408 = scalar_lea.vmem [#allocation8], %s3407
        // Predicated region
        $region53: #{tpu_custom_call.1} parent=31 // pred_check
          %p3409 = pneg %p114
        $region54: #{tpu_custom_call.1} parent=31 // pred_check_branch
          %3411 = sbr.rel (%p3409) target = $region56
        $region55: #{tpu_custom_call.1} parent=31 // pred_region
          %s3412 = smul.u32 30, %s24
          %s3414 = ssub.s32 3840, 3840
          %3415 = vsyncadd %s3405, %s3414
          %s3416 = smul.addr %s23, 60
          %s3417 = sadd.s32 %s3412, %s3416
          %s3418 = smul.addr %s3417, 128
          %s3419 = scalar_lea.hbm %s4, %s3418
          %s3420 = sshll.u32 %s3408, 4
          %s3421 = int_to_ptr.vmem [resolvable:$true] %s3420
          %3426 = dma.vmem_to_hbm [thread:$0]  %s3421, 3840, %s3419, %s3405, 128, 128, 8
        $region56: #{tpu_custom_call.1} parent=31 // pred_fallthru
          _
      $region32: #{tpu_custom_call.1} parent=5 // pred_fallthru
        _
      %p3427 = scmp.le.s32.totalorder 2, %s14
      // Predicated region
      $region57: #{tpu_custom_call.1} parent=5 // pred_check
        %p3428 = pneg %p3427
      $region58: #{tpu_custom_call.1} parent=5 // pred_check_branch
        %3430 = sbr.rel (%p3428) target = $region60
      $region59: #{tpu_custom_call.1} parent=5 // pred_region
        %s3431 = ssub.s32 %s14, 2
        // Predicated region
        $region61: #{tpu_custom_call.1} parent=59 // pred_check
          %p3432 = pneg %p120
        $region62: #{tpu_custom_call.1} parent=59 // pred_check_branch
          %3434 = sbr.rel (%p3432) target = $region64
        $region63: #{tpu_custom_call.1} parent=59 // pred_region
          %s3435 = sand.u32 %s105, 1
          %s3436 = scalar_lea.sflag [#allocation7], %s3435
          %s3437 = sand.u32 %s105, 1
          %s3438 = smul.addr %s3437, 240
          %s3439 = scalar_lea.vmem [#allocation8], %s3438
          %3440 = dma.done %s3436, 3840
        $region64: #{tpu_custom_call.1} parent=59 // pred_fallthru
          _
      $region60: #{tpu_custom_call.1} parent=5 // pred_fallthru
        _
    $region6: #{tpu_custom_call.1} parent=1 // loop_footer
      %s18 = sadd.s32 1, %s14
    $region7: #{tpu_custom_call.1} parent=1 // loop_footer_branch
      %13 = sbr.rel target = $region3
    $region8: #{tpu_custom_call.1} parent=1 // loop_exit
      _
    %3441 = vsyncpa [#allocation6], 1
    %s3442 = scalar_lea.sflag [#allocation6], 1
    %3443 = vsyncpa %s3442, 1
    %3444 = vsyncpa [#allocation7], 1
    %s3445 = scalar_lea.sflag [#allocation7], 1
    %3446 = vsyncpa %s3445, 1
  %3447 = vsyncmov [#allocation3]
  %s3448 = vpop.sfrf %3447
  %p3449 = scmp.eq.s32.totalorder %s3448, 0
  %p3450 = pneg %p3449
  %3452 = shalt.err (%p3450)
  %s3453 = scalar_lea.sflag [#allocation3], 1
  %3454 = vsyncmov %s3453
  %s3455 = vpop.sfrf %3454
  %p3456 = scmp.eq.s32.totalorder %s3455, 0
  %p3457 = pneg %p3456
  %3459 = shalt.err (%p3457)

</llo_original>
